<compile_context>
chip_gen: v7x
topology: tpu7x:2x2x1
jax: 0.10.0
libtpu: 0.0.40
codegen_flags: <defaults>
</compile_context>

<pallas_src>
import functools

import jax
import jax.numpy as jnp
from jax.experimental import pallas as pl
from jax.experimental.pallas import tpu as pltpu


def _round_up(x, m):
    return (x + m - 1) // m * m


def _pick_tile(dim, candidates):
    for c in candidates:
        if dim % c == 0:
            return c
    return dim


# ----------------------------------------------------------------------------
# Pallas kernel 1: fused  out = act(x @ w + b), tiled over (M, N), whole K
# ----------------------------------------------------------------------------
def _gemm_bias_act_kernel(x_ref, w_ref, b_ref, o_ref, *, relu):
    acc = jnp.dot(x_ref[...], w_ref[...], preferred_element_type=jnp.float32)
    acc = acc + b_ref[...]                 # (1, tn) broadcasts over rows
    if relu:
        acc = jnp.maximum(acc, 0.0)
    o_ref[...] = acc.astype(o_ref.dtype)


def matmul_bias_act(x, w, b, *, relu, out_dtype=jnp.bfloat16):
    """x:(M,K) bf16, w:(K,N) bf16, b:(N,) f32 -> (M,N) out_dtype."""
    M, K = x.shape
    K2, N = w.shape
    assert K == K2
    Mp = _round_up(M, 16)
    Np = _round_up(N, 128)                 # lane-dense, unmasked stores
    tm = _pick_tile(Mp, (512, 256, 128, 64, 32, 16))
    tn = _pick_tile(Np, (512, 256, 128))
    if Mp != M:
        x = jnp.pad(x, ((0, Mp - M), (0, 0)))
    if Np != N:
        w = jnp.pad(w, ((0, 0), (0, Np - N)))
        b = jnp.pad(b, (0, Np - N))
    b2 = b.reshape(1, Np).astype(jnp.float32)

    out = pl.pallas_call(
        functools.partial(_gemm_bias_act_kernel, relu=relu),
        out_shape=jax.ShapeDtypeStruct((Mp, Np), out_dtype),
        grid=(Mp // tm, Np // tn),
        in_specs=[
            pl.BlockSpec((tm, K), lambda i, j: (i, 0)),
            pl.BlockSpec((K, tn), lambda i, j: (0, j)),
            pl.BlockSpec((1, tn), lambda i, j: (0, j)),
        ],
        out_specs=pl.BlockSpec((tm, tn), lambda i, j: (i, j)),
        compiler_params=pltpu.CompilerParams(
            dimension_semantics=("parallel", "parallel"),
            vmem_limit_bytes=48 * 1024 * 1024,
        ),
    )(x, w, b2)
    if Mp != M or Np != N:
        out = out[:M, :N]
    return out


# ----------------------------------------------------------------------------
# Pallas kernel 2: fused fc1+fc2:  out = relu(x @ w1 + b1) @ w2 + b2
# (grid over fc1's output axis; per-tile relu'd partials feed fc2 accumulation)
# ----------------------------------------------------------------------------
def _fc_fused_kernel(x_ref, w1_ref, b1_ref, w2_ref, b2_ref, o_ref):
    @pl.when(pl.program_id(0) == 0)
    def _():
        o_ref[...] = jnp.zeros_like(o_ref) + b2_ref[...]

    h = jnp.dot(x_ref[...], w1_ref[...], preferred_element_type=jnp.float32)
    h = jnp.maximum(h + b1_ref[...], 0.0)
    o_ref[...] += jnp.dot(h.astype(w2_ref.dtype), w2_ref[...],
                          preferred_element_type=jnp.float32)


def fc1_fc2_fused(x, w1, b1, w2, b2):
    """x:(M,K) bf16, w1:(K,N1) bf16, b1:(N1,) f32, w2:(N1,A) bf16, b2:(A,) f32."""
    M, K = x.shape
    K1, N1 = w1.shape
    N1b, A = w2.shape
    assert K == K1 and N1 == N1b
    Mp = _round_up(M, 16)
    Ap = _round_up(A, 128)
    tn1 = _pick_tile(N1, (512, 256, 128))
    if Mp != M:
        x = jnp.pad(x, ((0, Mp - M), (0, 0)))
    if Ap != A:
        w2 = jnp.pad(w2, ((0, 0), (0, Ap - A)))
        b2 = jnp.pad(b2, (0, Ap - A))
    b1_2d = b1.reshape(1, N1).astype(jnp.float32)
    b2_2d = b2.reshape(1, Ap).astype(jnp.float32)

    out = pl.pallas_call(
        _fc_fused_kernel,
        out_shape=jax.ShapeDtypeStruct((Mp, Ap), jnp.float32),
        grid=(N1 // tn1,),
        in_specs=[
            pl.BlockSpec((Mp, K), lambda j: (0, 0)),
            pl.BlockSpec((K, tn1), lambda j: (0, j)),
            pl.BlockSpec((1, tn1), lambda j: (0, j)),
            pl.BlockSpec((tn1, Ap), lambda j: (j, 0)),
            pl.BlockSpec((1, Ap), lambda j: (0, 0)),
        ],
        out_specs=pl.BlockSpec((Mp, Ap), lambda j: (0, 0)),
        compiler_params=pltpu.CompilerParams(
            dimension_semantics=("arbitrary",),
            vmem_limit_bytes=48 * 1024 * 1024,
        ),
    )(x, w1, b1_2d, w2, b2_2d)
    return out[:M, :A]


# ----------------------------------------------------------------------------
# im2col (XLA glue, runs inside jit)
# ----------------------------------------------------------------------------
def _im2col(x, kh, kw, stride):
    # x: (B, H, W, C) NHWC, VALID padding -> (B, oh, ow, kh*kw*C)
    B, H, W, C = x.shape
    oh = (H - kh) // stride + 1
    ow = (W - kw) // stride + 1
    cols = []
    for di in range(kh):
        for dj in range(kw):
            patch = jax.lax.slice(
                x,
                (0, di, dj, 0),
                (B, di + stride * (oh - 1) + 1, dj + stride * (ow - 1) + 1, C),
                (1, stride, stride, 1),
            )
            cols.append(patch)                       # (B, oh, ow, C)
    cols = jnp.stack(cols, axis=3)                   # (B, oh, ow, kh*kw, C)
    return cols.reshape(B, oh, ow, kh * kw * C), oh, ow


# ----------------------------------------------------------------------------
# Weight packing (done once at init): fuse the n_head heads into one GEMM/layer
# ----------------------------------------------------------------------------
def _pack_conv_concat(w_list):
    # heads share the same input -> concat along Cout. w:(co,ci,kh,kw) -> (kh*kw*ci, n*co)
    mats = [jnp.transpose(w, (2, 3, 1, 0)).reshape(-1, w.shape[0]) for w in w_list]
    return jnp.concatenate(mats, axis=1)


def _pack_conv_blockdiag(w_list):
    # per-head inputs occupy disjoint channel slices -> block-diagonal packing.
    n = len(w_list)
    co, ci, kh, kw = w_list[0].shape
    blocks = jnp.zeros((kh, kw, n * ci, n * co), dtype=w_list[0].dtype)
    for h, w in enumerate(w_list):
        w_t = jnp.transpose(w, (2, 3, 1, 0))         # (kh, kw, ci, co)
        blocks = blocks.at[:, :, h * ci:(h + 1) * ci, h * co:(h + 1) * co].set(w_t)
    return blocks.reshape(kh * kw * n * ci, n * co)


def _pack_fc_blockdiag(w_list):
    # w:(out,in) each -> (n*in, n*out), block h = w_h.T  (pre-transposed, K-major)
    n = len(w_list)
    out_f, in_f = w_list[0].shape
    big = jnp.zeros((n * in_f, n * out_f), dtype=w_list[0].dtype)
    for h, w in enumerate(w_list):
        big = big.at[h * in_f:(h + 1) * in_f, h * out_f:(h + 1) * out_f].set(w.T)
    return big


# ----------------------------------------------------------------------------
# Parameters (deterministic synthetic init, PyTorch shapes + packed bf16 copies)
# ----------------------------------------------------------------------------
def _conv_out(s, k, st):
    return (s - k) // st + 1


def init_params(key, image_shape, num_channels, num_actions, n_head=3):
    H, W = image_shape
    o1h, o1w = _conv_out(H, 8, 4), _conv_out(W, 8, 4)
    o2h, o2w = _conv_out(o1h, 4, 2), _conv_out(o1w, 4, 2)
    o3h, o3w = _conv_out(o2h, 3, 1), _conv_out(o2w, 3, 1)
    conv3_size = 64 * o3h * o3w

    def uni(k, shape, fan_in):
        bound = 1.0 / float(fan_in) ** 0.5
        return jax.random.uniform(k, shape, jnp.float32, -bound, bound)

    heads = []
    for hk in jax.random.split(key, n_head):
        ks = jax.random.split(hk, 10)
        heads.append(dict(
            conv1_w=uni(ks[0], (32, num_channels, 8, 8), num_channels * 64).astype(jnp.bfloat16),
            conv1_b=uni(ks[1], (32,), num_channels * 64),
            conv2_w=uni(ks[2], (64, 32, 4, 4), 32 * 16).astype(jnp.bfloat16),
            conv2_b=uni(ks[3], (64,), 32 * 16),
            conv3_w=uni(ks[4], (64, 64, 3, 3), 64 * 9).astype(jnp.bfloat16),
            conv3_b=uni(ks[5], (64,), 64 * 9),
            fc1_w=uni(ks[6], (512, conv3_size), conv3_size).astype(jnp.bfloat16),
            fc1_b=uni(ks[7], (512,), conv3_size),
            fc2_w=uni(ks[8], (num_actions, 512), 512).astype(jnp.bfloat16),
            fc2_b=uni(ks[9], (num_actions,), 512),
        ))

    packed = dict(
        w1=_pack_conv_concat([h["conv1_w"] for h in heads]),          # (8*8*C, 3*32) bf16
        b1=jnp.concatenate([h["conv1_b"] for h in heads]),            # (96,) f32
        w2=_pack_conv_blockdiag([h["conv2_w"] for h in heads]),       # (4*4*96, 192)
        b2=jnp.concatenate([h["conv2_b"] for h in heads]),
        w3=_pack_conv_blockdiag([h["conv3_w"] for h in heads]),       # (3*3*192, 192)
        b3=jnp.concatenate([h["conv3_b"] for h in heads]),
        fc1=_pack_fc_blockdiag([h["fc1_w"] for h in heads]),          # (3*c3, 1536)
        fc1_b=jnp.concatenate([h["fc1_b"] for h in heads]),
        fc2_T=jnp.stack([jnp.transpose(h["fc2_w"]) for h in heads]),  # (3, 512, A) bf16
        fc2_b=jnp.stack([h["fc2_b"] for h in heads]),                 # (3, A) f32
    )
    return heads, packed, conv3_size


# ----------------------------------------------------------------------------
# Forward pass (matches Mnih2015_mh.forward) — jit this
# ----------------------------------------------------------------------------
def mnih2015_mh_forward(packed, x_nchw, z):
    # x_nchw: (B, C, H, W) f32 ; z: (n_head,) per-head scalar weights.
    n_head = z.shape[0]
    x = jnp.transpose(x_nchw, (0, 2, 3, 1)).astype(jnp.bfloat16)      # -> NHWC, bf16
    B = x.shape[0]

    def conv(y, w, b, k, stride):
        patches, oh, ow = _im2col(y, k, k, stride)
        out = matmul_bias_act(patches.reshape(B * oh * ow, -1), w, b, relu=True)
        return out.reshape(B, oh, ow, -1)

    y = conv(x, packed["w1"], packed["b1"], 8, 4)     # all heads, channels = 3*32
    y = conv(y, packed["w2"], packed["b2"], 4, 2)     # block-diag, channels = 3*64
    y = conv(y, packed["w3"], packed["b3"], 3, 1)     # block-diag, channels = 3*64

    # PyTorch flattens each head's activations in NCHW order; heads stay concatenated.
    _, oh, ow, ctot = y.shape
    ch = ctot // n_head
    y = y.reshape(B, oh, ow, n_head, ch)
    y = jnp.transpose(y, (0, 3, 4, 1, 2)).reshape(B, n_head * ch * oh * ow)

    # Fold the z-weighted head sum into fc2's weight/bias, then one fused fc kernel.
    zf = z.astype(jnp.float32)
    w2z = zf[:, None, None] * packed["fc2_T"].astype(jnp.float32)     # (n, 512, A)
    w2z = w2z.reshape(-1, w2z.shape[-1]).astype(jnp.bfloat16)         # (n*512, A)
    b2z = jnp.sum(zf[:, None] * packed["fc2_b"], axis=0)              # (A,)
    return fc1_fc2_fused(y, packed["fc1"], packed["fc1_b"], w2z, b2z)


# ----------------------------------------------------------------------------
# Pure-JAX reference (same bf16-quantized weights, f32 activations)
# ----------------------------------------------------------------------------
def reference_forward(heads, x, z):
    def conv(y, w, b, stride):
        y = jax.lax.conv_general_dilated(
            y, w.astype(jnp.float32), (stride, stride), "VALID",
            dimension_numbers=("NCHW", "OIHW", "NCHW"))
        return jax.nn.relu(y + b[None, :, None, None])

    y_out = 0.0
    for i, p in enumerate(heads):
        y = conv(x, p["conv1_w"], p["conv1_b"], 4)
        y = conv(y, p["conv2_w"], p["conv2_b"], 2)
        y = conv(y, p["conv3_w"], p["conv3_b"], 1)
        y = y.reshape(x.shape[0], -1)
        y = jax.nn.relu(y @ p["fc1_w"].astype(jnp.float32).T + p["fc1_b"])
        y = y @ p["fc2_w"].astype(jnp.float32).T + p["fc2_b"]
        y_out = y_out + y * z[i]
    return y_out


if __name__ == "__main__":
    image_shape = (36, 36)     # smallest size supporting the 8/4/3 stride-4/2/1 chain
    num_channels = 4
    num_actions = 6
    n_head = 3
    batch = 2

    key = jax.random.PRNGKey(0)
    k_params, k_x, k_z = jax.random.split(key, 3)
    heads, packed, conv3_size = init_params(k_params, image_shape, num_channels,
                                            num_actions, n_head)
    x = jax.random.normal(k_x, (batch, num_channels, *image_shape), jnp.float32)
    z = jax.random.normal(k_z, (n_head,), jnp.float32)

    fwd = jax.jit(mnih2015_mh_forward)
    out = jax.block_until_ready(fwd(packed, x, z))
    assert out.shape == (batch, num_actions), out.shape

    ref = jax.block_until_ready(jax.jit(reference_forward)(heads, x, z))
    assert jnp.allclose(out, ref, rtol=2e-2, atol=2e-2), (out, ref)

    print("KERNEL_OK")
</pallas_src>

<mosaic_0001>
module attributes {stable_mosaic.version = 11 : i64} {
  func.func @_gemm_bias_act_kernel(%arg0: i32, %arg1: i32, %arg2: memref<128x256xbf16, #tpu.memory_space<vmem>>, %arg3: memref<256x128xbf16, #tpu.memory_space<vmem>>, %arg4: memref<1x128xf32, #tpu.memory_space<vmem>>, %arg5: memref<128x128xbf16, #tpu.memory_space<vmem>>) attributes {dimension_semantics = [#tpu.dimension_semantics<parallel>, #tpu.dimension_semantics<parallel>], iteration_bounds = array<i64: 1, 1>, scalar_prefetch = 0 : i64, scratch_operands = 0 : i64, tpu.core_type = #tpu.core_type<tc>, window_params = [{transform_indices = @transform_0, window_bounds = array<i64: 128, 256>}, {transform_indices = @transform_1, window_bounds = array<i64: 256, 128>}, {transform_indices = @transform_2, window_bounds = array<i64: 1, 128>}, {transform_indices = @transform_3, window_bounds = array<i64: 128, 128>}]} {
    %c0 = arith.constant 0 : index
    %c0_0 = arith.constant 0 : index
    %0 = vector.load %arg2[%c0, %c0_0] : memref<128x256xbf16, #tpu.memory_space<vmem>>, vector<128x256xbf16>
    %c0_1 = arith.constant 0 : index
    %c0_2 = arith.constant 0 : index
    %1 = vector.load %arg3[%c0_1, %c0_2] : memref<256x128xbf16, #tpu.memory_space<vmem>>, vector<256x128xbf16>
    %cst = arith.constant dense<0.000000e+00> : vector<128x128xf32>
    %2 = tpu.matmul %0, %1, %cst {dimension_numbers = #tpu.dot_dimension_numbers<[1], [0], [0], [1], [0, 0, 1, 1], [], []>} : vector<128x256xbf16>, vector<256x128xbf16>, vector<128x128xf32> -> vector<128x128xf32>
    %c0_3 = arith.constant 0 : index
    %c0_4 = arith.constant 0 : index
    %3 = vector.load %arg4[%c0_3, %c0_4] : memref<1x128xf32, #tpu.memory_space<vmem>>, vector<1x128xf32>
    %4 = vector.broadcast %3 : vector<1x128xf32> to vector<128x128xf32>
    %5 = arith.addf %2, %4 : vector<128x128xf32>
    %cst_5 = arith.constant 0.000000e+00 : f32
    %6 = vector.broadcast %cst_5 : f32 to vector<128x128xf32>
    %7 = arith.maximumf %5, %6 : vector<128x128xf32>
    %8 = arith.truncf %7 : vector<128x128xf32> to vector<128x128xbf16>
    %c0_6 = arith.constant 0 : index
    %c0_7 = arith.constant 0 : index
    %9 = vector.load %arg5[%c0_6, %c0_7] : memref<128x128xbf16, #tpu.memory_space<vmem>>, vector<128x128xbf16>
    tpu.vector_store %arg5[%c0_6, %c0_7], %8 {strides = array<i32>} : memref<128x128xbf16, #tpu.memory_space<vmem>>, vector<128x128xbf16>,
    return
  }
  func.func @transform_0(%arg0: i32, %arg1: i32) -> (i32, i32) {
    %c0_i32 = arith.constant 0 : i32
    %c0_i32_0 = arith.constant 0 : i32
    return %arg0, %c0_i32 : i32, i32
  }
  func.func @transform_1(%arg0: i32, %arg1: i32) -> (i32, i32) {
    %c0_i32 = arith.constant 0 : i32
    %c0_i32_0 = arith.constant 0 : i32
    return %c0_i32, %arg1 : i32, i32
  }
  func.func @transform_2(%arg0: i32, %arg1: i32) -> (i32, i32) {
    %c0_i32 = arith.constant 0 : i32
    %c0_i32_0 = arith.constant 0 : i32
    return %c0_i32, %arg1 : i32, i32
  }
  func.func @transform_3(%arg0: i32, %arg1: i32) -> (i32, i32) {
    %c0_i32 = arith.constant 0 : i32
    return %arg0, %arg1 : i32, i32
  }
}

module attributes {stable_mosaic.version = 11 : i64} {
  func.func @_gemm_bias_act_kernel(%arg0: i32, %arg1: i32, %arg2: memref<32x1536xbf16, #tpu.memory_space<vmem>>, %arg3: memref<1536x256xbf16, #tpu.memory_space<vmem>>, %arg4: memref<1x256xf32, #tpu.memory_space<vmem>>, %arg5: memref<32x256xbf16, #tpu.memory_space<vmem>>) attributes {dimension_semantics = [#tpu.dimension_semantics<parallel>, #tpu.dimension_semantics<parallel>], iteration_bounds = array<i64: 1, 1>, scalar_prefetch = 0 : i64, scratch_operands = 0 : i64, tpu.core_type = #tpu.core_type<tc>, window_params = [{transform_indices = @transform_0, window_bounds = array<i64: 32, 1536>}, {transform_indices = @transform_1, window_bounds = array<i64: 1536, 256>}, {transform_indices = @transform_2, window_bounds = array<i64: 1, 256>}, {transform_indices = @transform_3, window_bounds = array<i64: 32, 256>}]} {
    %c0 = arith.constant 0 : index
    %c0_0 = arith.constant 0 : index
    %0 = vector.load %arg2[%c0, %c0_0] : memref<32x1536xbf16, #tpu.memory_space<vmem>>, vector<32x1536xbf16>
    %c0_1 = arith.constant 0 : index
    %c0_2 = arith.constant 0 : index
    %1 = vector.load %arg3[%c0_1, %c0_2] : memref<1536x256xbf16, #tpu.memory_space<vmem>>, vector<1536x256xbf16>
    %cst = arith.constant dense<0.000000e+00> : vector<32x256xf32>
    %2 = tpu.matmul %0, %1, %cst {dimension_numbers = #tpu.dot_dimension_numbers<[1], [0], [0], [1], [0, 0, 1, 1], [], []>} : vector<32x1536xbf16>, vector<1536x256xbf16>, vector<32x256xf32> -> vector<32x256xf32>
    %c0_3 = arith.constant 0 : index
    %c0_4 = arith.constant 0 : index
    %3 = vector.load %arg4[%c0_3, %c0_4] : memref<1x256xf32, #tpu.memory_space<vmem>>, vector<1x256xf32>
    %4 = vector.broadcast %3 : vector<1x256xf32> to vector<32x256xf32>
    %5 = arith.addf %2, %4 : vector<32x256xf32>
    %cst_5 = arith.constant 0.000000e+00 : f32
    %6 = vector.broadcast %cst_5 : f32 to vector<32x256xf32>
    %7 = arith.maximumf %5, %6 : vector<32x256xf32>
    %8 = arith.truncf %7 : vector<32x256xf32> to vector<32x256xbf16>
    %c0_6 = arith.constant 0 : index
    %c0_7 = arith.constant 0 : index
    %9 = vector.load %arg5[%c0_6, %c0_7] : memref<32x256xbf16, #tpu.memory_space<vmem>>, vector<32x256xbf16>
    tpu.vector_store %arg5[%c0_6, %c0_7], %8 {strides = array<i32>} : memref<32x256xbf16, #tpu.memory_space<vmem>>, vector<32x256xbf16>,
    return
  }
  func.func @transform_0(%arg0: i32, %arg1: i32) -> (i32, i32) {
    %c0_i32 = arith.constant 0 : i32
    %c0_i32_0 = arith.constant 0 : i32
    return %arg0, %c0_i32 : i32, i32
  }
  func.func @transform_1(%arg0: i32, %arg1: i32) -> (i32, i32) {
    %c0_i32 = arith.constant 0 : i32
    %c0_i32_0 = arith.constant 0 : i32
    return %c0_i32, %arg1 : i32, i32
  }
  func.func @transform_2(%arg0: i32, %arg1: i32) -> (i32, i32) {
    %c0_i32 = arith.constant 0 : i32
    %c0_i32_0 = arith.constant 0 : i32
    return %c0_i32, %arg1 : i32, i32
  }
  func.func @transform_3(%arg0: i32, %arg1: i32) -> (i32, i32) {
    %c0_i32 = arith.constant 0 : i32
    return %arg0, %arg1 : i32, i32
  }
}

module attributes {stable_mosaic.version = 11 : i64} {
  func.func @_gemm_bias_act_kernel(%arg0: i32, %arg1: i32, %arg2: memref<16x1728xbf16, #tpu.memory_space<vmem>>, %arg3: memref<1728x256xbf16, #tpu.memory_space<vmem>>, %arg4: memref<1x256xf32, #tpu.memory_space<vmem>>, %arg5: memref<16x256xbf16, #tpu.memory_space<vmem>>) attributes {dimension_semantics = [#tpu.dimension_semantics<parallel>, #tpu.dimension_semantics<parallel>], iteration_bounds = array<i64: 1, 1>, scalar_prefetch = 0 : i64, scratch_operands = 0 : i64, tpu.core_type = #tpu.core_type<tc>, window_params = [{transform_indices = @transform_0, window_bounds = array<i64: 16, 1728>}, {transform_indices = @transform_1, window_bounds = array<i64: 1728, 256>}, {transform_indices = @transform_2, window_bounds = array<i64: 1, 256>}, {transform_indices = @transform_3, window_bounds = array<i64: 16, 256>}]} {
    %c0 = arith.constant 0 : index
    %c0_0 = arith.constant 0 : index
    %0 = vector.load %arg2[%c0, %c0_0] : memref<16x1728xbf16, #tpu.memory_space<vmem>>, vector<16x1728xbf16>
    %c0_1 = arith.constant 0 : index
    %c0_2 = arith.constant 0 : index
    %1 = vector.load %arg3[%c0_1, %c0_2] : memref<1728x256xbf16, #tpu.memory_space<vmem>>, vector<1728x256xbf16>
    %cst = arith.constant dense<0.000000e+00> : vector<16x256xf32>
    %2 = tpu.matmul %0, %1, %cst {dimension_numbers = #tpu.dot_dimension_numbers<[1], [0], [0], [1], [0, 0, 1, 1], [], []>} : vector<16x1728xbf16>, vector<1728x256xbf16>, vector<16x256xf32> -> vector<16x256xf32>
    %c0_3 = arith.constant 0 : index
    %c0_4 = arith.constant 0 : index
    %3 = vector.load %arg4[%c0_3, %c0_4] : memref<1x256xf32, #tpu.memory_space<vmem>>, vector<1x256xf32>
    %4 = vector.broadcast %3 : vector<1x256xf32> to vector<16x256xf32>
    %5 = arith.addf %2, %4 : vector<16x256xf32>
    %cst_5 = arith.constant 0.000000e+00 : f32
    %6 = vector.broadcast %cst_5 : f32 to vector<16x256xf32>
    %7 = arith.maximumf %5, %6 : vector<16x256xf32>
    %8 = arith.truncf %7 : vector<16x256xf32> to vector<16x256xbf16>
    %c0_6 = arith.constant 0 : index
    %c0_7 = arith.constant 0 : index
    %9 = vector.load %arg5[%c0_6, %c0_7] : memref<16x256xbf16, #tpu.memory_space<vmem>>, vector<16x256xbf16>
    tpu.vector_store %arg5[%c0_6, %c0_7], %8 {strides = array<i32>} : memref<16x256xbf16, #tpu.memory_space<vmem>>, vector<16x256xbf16>,
    return
  }
  func.func @transform_0(%arg0: i32, %arg1: i32) -> (i32, i32) {
    %c0_i32 = arith.constant 0 : i32
    %c0_i32_0 = arith.constant 0 : i32
    return %arg0, %c0_i32 : i32, i32
  }
  func.func @transform_1(%arg0: i32, %arg1: i32) -> (i32, i32) {
    %c0_i32 = arith.constant 0 : i32
    %c0_i32_0 = arith.constant 0 : i32
    return %c0_i32, %arg1 : i32, i32
  }
  func.func @transform_2(%arg0: i32, %arg1: i32) -> (i32, i32) {
    %c0_i32 = arith.constant 0 : i32
    %c0_i32_0 = arith.constant 0 : i32
    return %c0_i32, %arg1 : i32, i32
  }
  func.func @transform_3(%arg0: i32, %arg1: i32) -> (i32, i32) {
    %c0_i32 = arith.constant 0 : i32
    return %arg0, %arg1 : i32, i32
  }
}

module attributes {stable_mosaic.version = 11 : i64} {
  func.func @_fc_fused_kernel(%arg0: i32, %arg1: memref<16x192xbf16, #tpu.memory_space<vmem>>, %arg2: memref<192x512xbf16, #tpu.memory_space<vmem>>, %arg3: memref<1x512xf32, #tpu.memory_space<vmem>>, %arg4: memref<512x128xbf16, #tpu.memory_space<vmem>>, %arg5: memref<1x128xf32, #tpu.memory_space<vmem>>, %arg6: memref<16x128xf32, #tpu.memory_space<vmem>>) attributes {dimension_semantics = [#tpu.dimension_semantics<arbitrary>], iteration_bounds = array<i64: 3>, scalar_prefetch = 0 : i64, scratch_operands = 0 : i64, tpu.core_type = #tpu.core_type<tc>, window_params = [{pipeline_mode = #tpu.pipeline_mode<synchronous>, transform_indices = @transform_0, window_bounds = array<i64: 16, 192>}, {transform_indices = @transform_1, window_bounds = array<i64: 192, 512>}, {transform_indices = @transform_2, window_bounds = array<i64: 1, 512>}, {transform_indices = @transform_3, window_bounds = array<i64: 512, 128>}, {pipeline_mode = #tpu.pipeline_mode<synchronous>, transform_indices = @transform_4, window_bounds = array<i64: 1, 128>}, {pipeline_mode = #tpu.pipeline_mode<synchronous>, transform_indices = @transform_5, window_bounds = array<i64: 16, 128>}]} {
    %c0_i32 = arith.constant 0 : i32
    %0 = arith.cmpi eq, %arg0, %c0_i32 : i32
    %1 = arith.extui %0 : i1 to i32
    %c0_i32_0 = arith.constant 0 : i32
    %2 = arith.cmpi ne, %1, %c0_i32_0 : i32
    scf.if %2 {
      %cst_14 = arith.constant 0.000000e+00 : f32
      %17 = vector.broadcast %cst_14 : f32 to vector<16x128xf32>
      %c0_15 = arith.constant 0 : index
      %c0_16 = arith.constant 0 : index
      %18 = vector.load %arg5[%c0_15, %c0_16] : memref<1x128xf32, #tpu.memory_space<vmem>>, vector<1x128xf32>
      %19 = vector.broadcast %18 : vector<1x128xf32> to vector<16x128xf32>
      %20 = arith.addf %17, %19 : vector<16x128xf32>
      %c0_17 = arith.constant 0 : index
      %c0_18 = arith.constant 0 : index
      %21 = vector.load %arg6[%c0_17, %c0_18] : memref<16x128xf32, #tpu.memory_space<vmem>>, vector<16x128xf32>
      tpu.vector_store %arg6[%c0_17, %c0_18], %20 {strides = array<i32>} : memref<16x128xf32, #tpu.memory_space<vmem>>, vector<16x128xf32>,
    } else {
    }
    %c0 = arith.constant 0 : index
    %c0_1 = arith.constant 0 : index
    %3 = vector.load %arg1[%c0, %c0_1] : memref<16x192xbf16, #tpu.memory_space<vmem>>, vector<16x192xbf16>
    %c0_2 = arith.constant 0 : index
    %c0_3 = arith.constant 0 : index
    %4 = vector.load %arg2[%c0_2, %c0_3] : memref<192x512xbf16, #tpu.memory_space<vmem>>, vector<192x512xbf16>
    %cst = arith.constant dense<0.000000e+00> : vector<16x512xf32>
    %5 = tpu.matmul %3, %4, %cst {dimension_numbers = #tpu.dot_dimension_numbers<[1], [0], [0], [1], [0, 0, 1, 1], [], []>} : vector<16x192xbf16>, vector<192x512xbf16>, vector<16x512xf32> -> vector<16x512xf32>
    %c0_4 = arith.constant 0 : index
    %c0_5 = arith.constant 0 : index
    %6 = vector.load %arg3[%c0_4, %c0_5] : memref<1x512xf32, #tpu.memory_space<vmem>>, vector<1x512xf32>
    %7 = vector.broadcast %6 : vector<1x512xf32> to vector<16x512xf32>
    %8 = arith.addf %5, %7 : vector<16x512xf32>
    %cst_6 = arith.constant 0.000000e+00 : f32
    %9 = vector.broadcast %cst_6 : f32 to vector<16x512xf32>
    %10 = arith.maximumf %8, %9 : vector<16x512xf32>
    %c0_7 = arith.constant 0 : index
    %c0_8 = arith.constant 0 : index
    %11 = vector.load %arg6[%c0_7, %c0_8] : memref<16x128xf32, #tpu.memory_space<vmem>>, vector<16x128xf32>
    %12 = arith.truncf %10 : vector<16x512xf32> to vector<16x512xbf16>
    %c0_9 = arith.constant 0 : index
    %c0_10 = arith.constant 0 : index
    %13 = vector.load %arg4[%c0_9, %c0_10] : memref<512x128xbf16, #tpu.memory_space<vmem>>, vector<512x128xbf16>
    %cst_11 = arith.constant dense<0.000000e+00> : vector<16x128xf32>
    %14 = tpu.matmul %12, %13, %cst_11 {dimension_numbers = #tpu.dot_dimension_numbers<[1], [0], [0], [1], [0, 0, 1, 1], [], []>} : vector<16x512xbf16>, vector<512x128xbf16>, vector<16x128xf32> -> vector<16x128xf32>
    %15 = arith.addf %11, %14 : vector<16x128xf32>
    %c0_12 = arith.constant 0 : index
    %c0_13 = arith.constant 0 : index
    %16 = vector.load %arg6[%c0_12, %c0_13] : memref<16x128xf32, #tpu.memory_space<vmem>>, vector<16x128xf32>
    tpu.vector_store %arg6[%c0_12, %c0_13], %15 {strides = array<i32>} : memref<16x128xf32, #tpu.memory_space<vmem>>, vector<16x128xf32>,
    return
  }
  func.func @transform_0(%arg0: i32) -> (i32, i32) {
    %c0_i32 = arith.constant 0 : i32
    %c0_i32_0 = arith.constant 0 : i32
    %c0_i32_1 = arith.constant 0 : i32
    return %c0_i32, %c0_i32_0 : i32, i32
  }
  func.func @transform_1(%arg0: i32) -> (i32, i32) {
    %c0_i32 = arith.constant 0 : i32
    %c0_i32_0 = arith.constant 0 : i32
    return %c0_i32, %arg0 : i32, i32
  }
  func.func @transform_2(%arg0: i32) -> (i32, i32) {
    %c0_i32 = arith.constant 0 : i32
    %c0_i32_0 = arith.constant 0 : i32
    return %c0_i32, %arg0 : i32, i32
  }
  func.func @transform_3(%arg0: i32) -> (i32, i32) {
    %c0_i32 = arith.constant 0 : i32
    %c0_i32_0 = arith.constant 0 : i32
    return %arg0, %c0_i32 : i32, i32
  }
  func.func @transform_4(%arg0: i32) -> (i32, i32) {
    %c0_i32 = arith.constant 0 : i32
    %c0_i32_0 = arith.constant 0 : i32
    %c0_i32_1 = arith.constant 0 : i32
    return %c0_i32, %c0_i32_0 : i32, i32
  }
  func.func @transform_5(%arg0: i32) -> (i32, i32) {
    %c0_i32 = arith.constant 0 : i32
    %c0_i32_0 = arith.constant 0 : i32
    %c0_i32_1 = arith.constant 0 : i32
    return %c0_i32, %c0_i32_0 : i32, i32
  }
}

</mosaic_0001>

<llo_original>
// kernel: mnih2015_mh_forward.4
$region0: #{mnih2015_mh_forward.4}
  #allocation0 [shape = 'u32[]', space=smem, size = 0x4, offset = 0x4, fixed_abs, tag = 'smem constant byte address 0x4 - core index']
  #allocation1 [shape = 'u32[144,128]{1,0:T(1,128)}', space=vmem, size = 0x12000, scoped, tag = 'internal scratch']
  %s0 = inlined_call_operand.vmem [shape: bf16[128,256], index: 0, kind: input, shape index: {}]
  %s1 = inlined_call_operand.vmem [shape: bf16[256,128], index: 1, kind: input, shape index: {}]
  %s2 = inlined_call_operand.vmem [shape: f32[1,128], index: 2, kind: input, shape index: {}]
  %s3 = inlined_call_operand.vmem [shape: bf16[128,128], index: 3, kind: output, shape index: {}]
  %s4 = sld [smem:[#allocation0]]
  $region22: #{mnih2015_mh_forward.4} parent=0
    _
  %s6 = ssub.s32 1, %s4
  %s7 = scalar_select 0, %s6, %s4
  // Predicated region
  $region2: #{mnih2015_mh_forward.4} parent=0 // pred_check
    _
  $region3: #{mnih2015_mh_forward.4} parent=0 // pred_check_branch
    %9 = sbr.rel (0) target = $region5
  $region4: #{mnih2015_mh_forward.4} parent=0 // pred_region
    _
  $region5: #{mnih2015_mh_forward.4} parent=0 // pred_fallthru
    _
  // Predicated region
  $region6: #{mnih2015_mh_forward.4} parent=0 // pred_check
    _
  $region7: #{mnih2015_mh_forward.4} parent=0 // pred_check_branch
    %11 = sbr.rel (0) target = $region9
  $region8: #{mnih2015_mh_forward.4} parent=0 // pred_region
    _
  $region9: #{mnih2015_mh_forward.4} parent=0 // pred_fallthru
    _
  // Predicated region
  $region10: #{mnih2015_mh_forward.4} parent=0 // pred_check
    _
  $region11: #{mnih2015_mh_forward.4} parent=0 // pred_check_branch
    %13 = sbr.rel (0) target = $region13
  $region12: #{mnih2015_mh_forward.4} parent=0 // pred_region
    _
  $region13: #{mnih2015_mh_forward.4} parent=0 // pred_fallthru
    _
  %v15 = vld [vmem:[%s0] sm:$0xff]
  %v16 = vld [vmem:[%s0 + $0x8] sm:$0xff]
  %v17 = vld [vmem:[%s0 + $0x10] sm:$0xff]
  %v18 = vld [vmem:[%s0 + $0x18] sm:$0xff]
  %v19 = vld [vmem:[%s0 + $0x20] sm:$0xff]
  %v20 = vld [vmem:[%s0 + $0x28] sm:$0xff]
  %v21 = vld [vmem:[%s0 + $0x30] sm:$0xff]
  %v22 = vld [vmem:[%s0 + $0x38] sm:$0xff]
  %v23 = vld [vmem:[%s0 + $0x40] sm:$0xff]
  %v24 = vld [vmem:[%s0 + $0x48] sm:$0xff]
  %v25 = vld [vmem:[%s0 + $0x50] sm:$0xff]
  %v26 = vld [vmem:[%s0 + $0x58] sm:$0xff]
  %v27 = vld [vmem:[%s0 + $0x60] sm:$0xff]
  %v28 = vld [vmem:[%s0 + $0x68] sm:$0xff]
  %v29 = vld [vmem:[%s0 + $0x70] sm:$0xff]
  %v30 = vld [vmem:[%s0 + $0x78] sm:$0xff]
  %v31 = vld [vmem:[%s1] sm:$0xf]
  %v32 = vld [vmem:[%s1 + $0x4] sm:$0xf]
  %v33 = vld [vmem:[%s1 + $0x8] sm:$0xf]
  %v34 = vld [vmem:[%s1 + $0xc] sm:$0xf]
  %v35 = vld [vmem:[%s1 + $0x10] sm:$0xf]
  %v36 = vld [vmem:[%s1 + $0x14] sm:$0xf]
  %v37 = vld [vmem:[%s1 + $0x18] sm:$0xf]
  %v38 = vld [vmem:[%s1 + $0x1c] sm:$0xf]
  %v39 = vld [vmem:[%s1 + $0x20] sm:$0xf]
  %v40 = vld [vmem:[%s1 + $0x24] sm:$0xf]
  %v41 = vld [vmem:[%s1 + $0x28] sm:$0xf]
  %v42 = vld [vmem:[%s1 + $0x2c] sm:$0xf]
  %v43 = vld [vmem:[%s1 + $0x30] sm:$0xf]
  %v44 = vld [vmem:[%s1 + $0x34] sm:$0xf]
  %v45 = vld [vmem:[%s1 + $0x38] sm:$0xf]
  %v46 = vld [vmem:[%s1 + $0x3c] sm:$0xf]
  %v47 = vld [vmem:[%s1 + $0x40] sm:$0xf]
  %v48 = vld [vmem:[%s1 + $0x44] sm:$0xf]
  %v49 = vld [vmem:[%s1 + $0x48] sm:$0xf]
  %v50 = vld [vmem:[%s1 + $0x4c] sm:$0xf]
  %v51 = vld [vmem:[%s1 + $0x50] sm:$0xf]
  %v52 = vld [vmem:[%s1 + $0x54] sm:$0xf]
  %v53 = vld [vmem:[%s1 + $0x58] sm:$0xf]
  %v54 = vld [vmem:[%s1 + $0x5c] sm:$0xf]
  %v55 = vld [vmem:[%s1 + $0x60] sm:$0xf]
  %v56 = vld [vmem:[%s1 + $0x64] sm:$0xf]
  %v57 = vld [vmem:[%s1 + $0x68] sm:$0xf]
  %v58 = vld [vmem:[%s1 + $0x6c] sm:$0xf]
  %v59 = vld [vmem:[%s1 + $0x70] sm:$0xf]
  %v60 = vld [vmem:[%s1 + $0x74] sm:$0xf]
  %v61 = vld [vmem:[%s1 + $0x78] sm:$0xf]
  %v62 = vld [vmem:[%s1 + $0x7c] sm:$0xf]
  %v63 = vld [vmem:[%s2] sm:$0x1]
  %v65 = vlaneseq
  %v66 = vshrl.u32 %v65, 7
  %v67 = vsub.s32 0, %v66
  %v68 = vrot.slane %v63, %v67
  %v86 = vunpack.c.l.b16 %v15
  %v87 = vunpack.c.h.b16 %v15
  %v88 = vunpack.c.l.b16 %v16
  %v89 = vunpack.c.h.b16 %v16
  %v90 = vunpack.c.l.b16 %v17
  %v91 = vunpack.c.h.b16 %v17
  %v92 = vunpack.c.l.b16 %v18
  %v93 = vunpack.c.h.b16 %v18
  %v94 = vunpack.c.l.b16 %v19
  %v95 = vunpack.c.h.b16 %v19
  %v96 = vunpack.c.l.b16 %v20
  %v97 = vunpack.c.h.b16 %v20
  %v98 = vunpack.c.l.b16 %v21
  %v99 = vunpack.c.h.b16 %v21
  %v100 = vunpack.c.l.b16 %v22
  %v101 = vunpack.c.h.b16 %v22
  %v102 = vunpack.c.l.b16 %v23
  %v103 = vunpack.c.h.b16 %v23
  %v104 = vunpack.c.l.b16 %v24
  %v105 = vunpack.c.h.b16 %v24
  %v106 = vunpack.c.l.b16 %v25
  %v107 = vunpack.c.h.b16 %v25
  %v108 = vunpack.c.l.b16 %v26
  %v109 = vunpack.c.h.b16 %v26
  %v110 = vunpack.c.l.b16 %v27
  %v111 = vunpack.c.h.b16 %v27
  %v112 = vunpack.c.l.b16 %v28
  %v113 = vunpack.c.h.b16 %v28
  %v114 = vunpack.c.l.b16 %v29
  %v115 = vunpack.c.h.b16 %v29
  %v116 = vunpack.c.l.b16 %v30
  %v117 = vunpack.c.h.b16 %v30
  %v118 = vpack.c.b16 %v88, %v86
  %v119 = vpack.c.b16 %v89, %v87
  %v120 = vpack.c.b16 %v92, %v90
  %v121 = vpack.c.b16 %v93, %v91
  %v122 = vpack.c.b16 %v96, %v94
  %v123 = vpack.c.b16 %v97, %v95
  %v124 = vpack.c.b16 %v100, %v98
  %v125 = vpack.c.b16 %v101, %v99
  %v126 = vpack.c.b16 %v104, %v102
  %v127 = vpack.c.b16 %v105, %v103
  %v128 = vpack.c.b16 %v108, %v106
  %v129 = vpack.c.b16 %v109, %v107
  %v130 = vpack.c.b16 %v112, %v110
  %v131 = vpack.c.b16 %v113, %v111
  %v132 = vpack.c.b16 %v116, %v114
  %v133 = vpack.c.b16 %v117, %v115
  %v182 = vunpack.c.l.b16 %v31
  %v183 = vunpack.c.l.b16 %v32
  %v184 = vunpack.c.l.b16 %v33
  %v185 = vunpack.c.l.b16 %v34
  %v186 = vunpack.c.l.b16 %v35
  %v187 = vunpack.c.l.b16 %v36
  %v188 = vunpack.c.l.b16 %v37
  %v189 = vunpack.c.l.b16 %v38
  %v190 = vunpack.c.l.b16 %v39
  %v191 = vunpack.c.l.b16 %v40
  %v192 = vunpack.c.l.b16 %v41
  %v193 = vunpack.c.l.b16 %v42
  %v194 = vunpack.c.l.b16 %v43
  %v195 = vunpack.c.l.b16 %v44
  %v196 = vunpack.c.l.b16 %v45
  %v197 = vunpack.c.l.b16 %v46
  %v198 = vunpack.c.l.b16 %v47
  %v199 = vunpack.c.l.b16 %v48
  %v200 = vunpack.c.l.b16 %v49
  %v201 = vunpack.c.l.b16 %v50
  %v202 = vunpack.c.l.b16 %v51
  %v203 = vunpack.c.l.b16 %v52
  %v204 = vunpack.c.l.b16 %v53
  %v205 = vunpack.c.l.b16 %v54
  %v206 = vunpack.c.l.b16 %v55
  %v207 = vunpack.c.l.b16 %v56
  %v208 = vunpack.c.l.b16 %v57
  %v209 = vunpack.c.l.b16 %v58
  %v210 = vunpack.c.l.b16 %v59
  %v211 = vunpack.c.l.b16 %v60
  %v212 = vunpack.c.l.b16 %v61
  %v213 = vunpack.c.l.b16 %v62
  %v214 = vpack.c.b16 %v183, %v182
  %v215 = vpack.c.b16 %v185, %v184
  %v216 = vpack.c.b16 %v187, %v186
  %v217 = vpack.c.b16 %v189, %v188
  %v218 = vpack.c.b16 %v191, %v190
  %v219 = vpack.c.b16 %v193, %v192
  %v220 = vpack.c.b16 %v195, %v194
  %v221 = vpack.c.b16 %v197, %v196
  %v222 = vpack.c.b16 %v199, %v198
  %v223 = vpack.c.b16 %v201, %v200
  %v224 = vpack.c.b16 %v203, %v202
  %v225 = vpack.c.b16 %v205, %v204
  %v226 = vpack.c.b16 %v207, %v206
  %v227 = vpack.c.b16 %v209, %v208
  %v228 = vpack.c.b16 %v211, %v210
  %v229 = vpack.c.b16 %v213, %v212
  %246 = vmatprep.subr.bf16.mxu0 0
  %247 = vmatpush1.bf16.msra.mxu0 %v214
  %248 = vmatprep.subr.bf16.mxu0 0
  %249 = vmatpush1.bf16.msra.mxu0 %v215
  %250 = vmatprep.subr.bf16.mxu0 0
  %251 = vmatpush1.bf16.msra.mxu0 %v216
  %252 = vmatprep.subr.bf16.mxu0 0
  %253 = vmatpush1.bf16.msra.mxu0 %v217
  %254 = vmatprep.subr.bf16.mxu0 0
  %255 = vmatpush1.bf16.msra.mxu0 %v218
  %256 = vmatprep.subr.bf16.mxu0 0
  %257 = vmatpush1.bf16.msra.mxu0 %v219
  %258 = vmatprep.subr.bf16.mxu0 0
  %259 = vmatpush1.bf16.msra.mxu0 %v220
  %260 = vmatprep.subr.bf16.mxu0 0
  %261 = vmatpush1.bf16.msra.mxu0 %v221
  %262 = vmatprep.subr.bf16.mxu0 0
  %263 = vmatpush1.bf16.msra.mxu0 %v222
  %264 = vmatprep.subr.bf16.mxu0 0
  %265 = vmatpush1.bf16.msra.mxu0 %v223
  %266 = vmatprep.subr.bf16.mxu0 0
  %267 = vmatpush1.bf16.msra.mxu0 %v224
  %268 = vmatprep.subr.bf16.mxu0 0
  %269 = vmatpush1.bf16.msra.mxu0 %v225
  %270 = vmatprep.subr.bf16.mxu0 0
  %271 = vmatpush1.bf16.msra.mxu0 %v226
  %272 = vmatprep.subr.bf16.mxu0 0
  %273 = vmatpush1.bf16.msra.mxu0 %v227
  %274 = vmatprep.subr.bf16.mxu0 0
  %275 = vmatpush1.bf16.msra.mxu0 %v228
  %276 = vmatprep.subr.bf16.mxu0 0
  %277 = vmatpush1.bf16.msra.mxu0 %v229
  %278 = vmatprep.mubr.bf16.mxu0 %v119
  %279 = vmatmul.mubr.bf16.gmra.mrb[0].mxu0 %v118
  %v280 = vpop.f32.mrb[0].mxu0
  %v281 = vadd.f32 %v68, %v280
  %v282 = vpop.f32.mrb[0].mxu0
  %v283 = vpop.f32.mrb[0].mxu0
  %v284 = vadd.f32 %v68, %v283
  %v285 = vpop.f32.mrb[0].mxu0
  %286 = vmatprep.mubr.bf16.mxu0 %v121
  %287 = vmatmul.mubr.bf16.gmra.mrb[0].mxu0 %v120
  %v288 = vpop.f32.mrb[0].mxu0
  %v289 = vadd.f32 %v68, %v288
  %v290 = vpop.f32.mrb[0].mxu0
  %v291 = vpop.f32.mrb[0].mxu0
  %v292 = vadd.f32 %v68, %v291
  %v293 = vpop.f32.mrb[0].mxu0
  %294 = vmatprep.mubr.bf16.mxu0 %v123
  %295 = vmatmul.mubr.bf16.gmra.mrb[0].mxu0 %v122
  %v296 = vpop.f32.mrb[0].mxu0
  %v297 = vadd.f32 %v68, %v296
  %v298 = vpop.f32.mrb[0].mxu0
  %v299 = vpop.f32.mrb[0].mxu0
  %v300 = vadd.f32 %v68, %v299
  %v301 = vpop.f32.mrb[0].mxu0
  %302 = vmatprep.mubr.bf16.mxu0 %v125
  %303 = vmatmul.mubr.bf16.gmra.mrb[0].mxu0 %v124
  %v304 = vpop.f32.mrb[0].mxu0
  %v305 = vadd.f32 %v68, %v304
  %v306 = vpop.f32.mrb[0].mxu0
  %v307 = vpop.f32.mrb[0].mxu0
  %v308 = vadd.f32 %v68, %v307
  %v309 = vpop.f32.mrb[0].mxu0
  %310 = vmatprep.mubr.bf16.mxu0 %v127
  %311 = vmatmul.mubr.bf16.gmra.mrb[0].mxu0 %v126
  %v312 = vpop.f32.mrb[0].mxu0
  %v313 = vadd.f32 %v68, %v312
  %v314 = vpop.f32.mrb[0].mxu0
  %v315 = vpop.f32.mrb[0].mxu0
  %v316 = vadd.f32 %v68, %v315
  %v317 = vpop.f32.mrb[0].mxu0
  %318 = vmatprep.mubr.bf16.mxu0 %v129
  %319 = vmatmul.mubr.bf16.gmra.mrb[0].mxu0 %v128
  %v320 = vpop.f32.mrb[0].mxu0
  %v321 = vadd.f32 %v68, %v320
  %v322 = vpop.f32.mrb[0].mxu0
  %v323 = vpop.f32.mrb[0].mxu0
  %v324 = vadd.f32 %v68, %v323
  %v325 = vpop.f32.mrb[0].mxu0
  %326 = vmatprep.mubr.bf16.mxu0 %v131
  %327 = vmatmul.mubr.bf16.gmra.mrb[0].mxu0 %v130
  %v328 = vpop.f32.mrb[0].mxu0
  %v329 = vadd.f32 %v68, %v328
  %v330 = vpop.f32.mrb[0].mxu0
  %v331 = vpop.f32.mrb[0].mxu0
  %v332 = vadd.f32 %v68, %v331
  %v333 = vpop.f32.mrb[0].mxu0
  %334 = vmatprep.mubr.bf16.mxu0 %v133
  %335 = vmatmul.mubr.bf16.gmra.mrb[0].mxu0 %v132
  %v336 = vpop.f32.mrb[0].mxu0
  %v337 = vadd.f32 %v68, %v336
  %v338 = vpop.f32.mrb[0].mxu0
  %v339 = vpop.f32.mrb[0].mxu0
  %v340 = vadd.f32 %v68, %v339
  %v341 = vpop.f32.mrb[0].mxu0
  %342 = vdwg.mxu0
  %v343 = vmax.f32 %v281, 0.0
  %v344 = vmax.f32 %v284, 0.0
  %v345 = vmax.f32 %v289, 0.0
  %v346 = vmax.f32 %v292, 0.0
  %v347 = vmax.f32 %v297, 0.0
  %v348 = vmax.f32 %v300, 0.0
  %v349 = vmax.f32 %v305, 0.0
  %v350 = vmax.f32 %v308, 0.0
  %v351 = vmax.f32 %v313, 0.0
  %v352 = vmax.f32 %v316, 0.0
  %v353 = vmax.f32 %v321, 0.0
  %v354 = vmax.f32 %v324, 0.0
  %v355 = vmax.f32 %v329, 0.0
  %v356 = vmax.f32 %v332, 0.0
  %v357 = vmax.f32 %v337, 0.0
  %v358 = vmax.f32 %v340, 0.0
  %v359 = vpack.c.bf16 %v344, %v343
  %v360 = vpack.c.bf16 %v346, %v345
  %v361 = vpack.c.bf16 %v348, %v347
  %v362 = vpack.c.bf16 %v350, %v349
  %v363 = vpack.c.bf16 %v352, %v351
  %v364 = vpack.c.bf16 %v354, %v353
  %v365 = vpack.c.bf16 %v356, %v355
  %v366 = vpack.c.bf16 %v358, %v357
  %v375 = vunpack.c.l.b16 %v359
  %v376 = vunpack.c.h.b16 %v359
  %v377 = vunpack.c.l.b16 %v360
  %v378 = vunpack.c.h.b16 %v360
  %v379 = vunpack.c.l.b16 %v361
  %v380 = vunpack.c.h.b16 %v361
  %v381 = vunpack.c.l.b16 %v362
  %v382 = vunpack.c.h.b16 %v362
  %v383 = vunpack.c.l.b16 %v363
  %v384 = vunpack.c.h.b16 %v363
  %v385 = vunpack.c.l.b16 %v364
  %v386 = vunpack.c.h.b16 %v364
  %v387 = vunpack.c.l.b16 %v365
  %v388 = vunpack.c.h.b16 %v365
  %v389 = vunpack.c.l.b16 %v366
  %v390 = vunpack.c.h.b16 %v366
  %v391 = vpack.c.b16 %v375, %v375
  %v392 = vpack.c.b16 %v376, %v376
  %v393 = vpack.c.b16 %v377, %v377
  %v394 = vpack.c.b16 %v378, %v378
  %v395 = vpack.c.b16 %v379, %v379
  %v396 = vpack.c.b16 %v380, %v380
  %v397 = vpack.c.b16 %v381, %v381
  %v398 = vpack.c.b16 %v382, %v382
  %v399 = vpack.c.b16 %v383, %v383
  %v400 = vpack.c.b16 %v384, %v384
  %v401 = vpack.c.b16 %v385, %v385
  %v402 = vpack.c.b16 %v386, %v386
  %v403 = vpack.c.b16 %v387, %v387
  %v404 = vpack.c.b16 %v388, %v388
  %v405 = vpack.c.b16 %v389, %v389
  %v406 = vpack.c.b16 %v390, %v390
  %423 = vst [vmem:[%s3] sm:$0xf] %v391
  %424 = vst [vmem:[%s3 + $0x4] sm:$0xf] %v392
  %425 = vst [vmem:[%s3 + $0x8] sm:$0xf] %v393
  %426 = vst [vmem:[%s3 + $0xc] sm:$0xf] %v394
  %427 = vst [vmem:[%s3 + $0x10] sm:$0xf] %v395
  %428 = vst [vmem:[%s3 + $0x14] sm:$0xf] %v396
  %429 = vst [vmem:[%s3 + $0x18] sm:$0xf] %v397
  %430 = vst [vmem:[%s3 + $0x1c] sm:$0xf] %v398
  %431 = vst [vmem:[%s3 + $0x20] sm:$0xf] %v399
  %432 = vst [vmem:[%s3 + $0x24] sm:$0xf] %v400
  %433 = vst [vmem:[%s3 + $0x28] sm:$0xf] %v401
  %434 = vst [vmem:[%s3 + $0x2c] sm:$0xf] %v402
  %435 = vst [vmem:[%s3 + $0x30] sm:$0xf] %v403
  %436 = vst [vmem:[%s3 + $0x34] sm:$0xf] %v404
  %437 = vst [vmem:[%s3 + $0x38] sm:$0xf] %v405
  %438 = vst [vmem:[%s3 + $0x3c] sm:$0xf] %v406
  // Predicated region
  $region14: #{mnih2015_mh_forward.4} parent=0 // pred_check
    _
  $region15: #{mnih2015_mh_forward.4} parent=0 // pred_check_branch
    %440 = sbr.rel (0) target = $region17
  $region16: #{mnih2015_mh_forward.4} parent=0 // pred_region
    _
  $region17: #{mnih2015_mh_forward.4} parent=0 // pred_fallthru
    _
  // Predicated region
  $region18: #{mnih2015_mh_forward.4} parent=0 // pred_check
    _
  $region19: #{mnih2015_mh_forward.4} parent=0 // pred_check_branch
    %442 = sbr.rel (0) target = $region21
  $region20: #{mnih2015_mh_forward.4} parent=0 // pred_region
    _
  $region21: #{mnih2015_mh_forward.4} parent=0 // pred_fallthru
    _

// kernel: mnih2015_mh_forward.5
$region0: #{mnih2015_mh_forward.5}
  #allocation0 [shape = 'u32[]', space=smem, size = 0x4, offset = 0x4, fixed_abs, tag = 'smem constant byte address 0x4 - core index']
  #allocation1 [shape = 'u32[144,128]{1,0:T(1,128)}', space=vmem, size = 0x12000, scoped, tag = 'internal scratch']
  %s0 = inlined_call_operand.vmem [shape: bf16[32,1536], index: 0, kind: input, shape index: {}]
  %s1 = inlined_call_operand.vmem [shape: bf16[1536,256], index: 1, kind: input, shape index: {}]
  %s2 = inlined_call_operand.vmem [shape: f32[1,256], index: 2, kind: input, shape index: {}]
  %s3 = inlined_call_operand.vmem [shape: bf16[32,256], index: 3, kind: output, shape index: {}]
  %s4 = sld [smem:[#allocation0]]
  $region22: #{mnih2015_mh_forward.5} parent=0
    _
  %s6 = ssub.s32 1, %s4
  %s7 = scalar_select 0, %s6, %s4
  // Predicated region
  $region2: #{mnih2015_mh_forward.5} parent=0 // pred_check
    _
  $region3: #{mnih2015_mh_forward.5} parent=0 // pred_check_branch
    %9 = sbr.rel (0) target = $region5
  $region4: #{mnih2015_mh_forward.5} parent=0 // pred_region
    _
  $region5: #{mnih2015_mh_forward.5} parent=0 // pred_fallthru
    _
  // Predicated region
  $region6: #{mnih2015_mh_forward.5} parent=0 // pred_check
    _
  $region7: #{mnih2015_mh_forward.5} parent=0 // pred_check_branch
    %11 = sbr.rel (0) target = $region9
  $region8: #{mnih2015_mh_forward.5} parent=0 // pred_region
    _
  $region9: #{mnih2015_mh_forward.5} parent=0 // pred_fallthru
    _
  // Predicated region
  $region10: #{mnih2015_mh_forward.5} parent=0 // pred_check
    _
  $region11: #{mnih2015_mh_forward.5} parent=0 // pred_check_branch
    %13 = sbr.rel (0) target = $region13
  $region12: #{mnih2015_mh_forward.5} parent=0 // pred_region
    _
  $region13: #{mnih2015_mh_forward.5} parent=0 // pred_fallthru
    _
  %v14 = vld [vmem:[%s0] sm:$0xff]
  %v15 = vld [vmem:[%s0 + $0x8] sm:$0xff]
  %v16 = vld [vmem:[%s0 + $0x10] sm:$0xff]
  %v17 = vld [vmem:[%s0 + $0x18] sm:$0xff]
  %v18 = vld [vmem:[%s0 + $0x20] sm:$0xff]
  %v19 = vld [vmem:[%s0 + $0x28] sm:$0xff]
  %v20 = vld [vmem:[%s0 + $0x30] sm:$0xff]
  %v21 = vld [vmem:[%s0 + $0x38] sm:$0xff]
  %v22 = vld [vmem:[%s0 + $0x40] sm:$0xff]
  %v23 = vld [vmem:[%s0 + $0x48] sm:$0xff]
  %v24 = vld [vmem:[%s0 + $0x50] sm:$0xff]
  %v25 = vld [vmem:[%s0 + $0x58] sm:$0xff]
  %v26 = vld [vmem:[%s0 + $0x60] sm:$0xff]
  %v27 = vld [vmem:[%s0 + $0x68] sm:$0xff]
  %v28 = vld [vmem:[%s0 + $0x70] sm:$0xff]
  %v29 = vld [vmem:[%s0 + $0x78] sm:$0xff]
  %v30 = vld [vmem:[%s0 + $0x80] sm:$0xff]
  %v31 = vld [vmem:[%s0 + $0x88] sm:$0xff]
  %v32 = vld [vmem:[%s0 + $0x90] sm:$0xff]
  %v33 = vld [vmem:[%s0 + $0x98] sm:$0xff]
  %v34 = vld [vmem:[%s0 + $0xa0] sm:$0xff]
  %v35 = vld [vmem:[%s0 + $0xa8] sm:$0xff]
  %v36 = vld [vmem:[%s0 + $0xb0] sm:$0xff]
  %v37 = vld [vmem:[%s0 + $0xb8] sm:$0xff]
  %v38 = vld [vmem:[%s1] sm:$0xff]
  %v39 = vld [vmem:[%s1 + $0x8] sm:$0xff]
  %v40 = vld [vmem:[%s1 + $0x10] sm:$0xff]
  %v41 = vld [vmem:[%s1 + $0x18] sm:$0xff]
  %v42 = vld [vmem:[%s1 + $0x20] sm:$0xff]
  %v43 = vld [vmem:[%s1 + $0x28] sm:$0xff]
  %v44 = vld [vmem:[%s1 + $0x30] sm:$0xff]
  %v45 = vld [vmem:[%s1 + $0x38] sm:$0xff]
  %v46 = vld [vmem:[%s1 + $0x40] sm:$0xff]
  %v47 = vld [vmem:[%s1 + $0x48] sm:$0xff]
  %v48 = vld [vmem:[%s1 + $0x50] sm:$0xff]
  %v49 = vld [vmem:[%s1 + $0x58] sm:$0xff]
  %v50 = vld [vmem:[%s1 + $0x60] sm:$0xff]
  %v51 = vld [vmem:[%s1 + $0x68] sm:$0xff]
  %v52 = vld [vmem:[%s1 + $0x70] sm:$0xff]
  %v53 = vld [vmem:[%s1 + $0x78] sm:$0xff]
  %v54 = vld [vmem:[%s1 + $0x80] sm:$0xff]
  %v55 = vld [vmem:[%s1 + $0x88] sm:$0xff]
  %v56 = vld [vmem:[%s1 + $0x90] sm:$0xff]
  %v57 = vld [vmem:[%s1 + $0x98] sm:$0xff]
  %v58 = vld [vmem:[%s1 + $0xa0] sm:$0xff]
  %v59 = vld [vmem:[%s1 + $0xa8] sm:$0xff]
  %v60 = vld [vmem:[%s1 + $0xb0] sm:$0xff]
  %v61 = vld [vmem:[%s1 + $0xb8] sm:$0xff]
  %v62 = vld [vmem:[%s1 + $0xc0] sm:$0xff]
  %v63 = vld [vmem:[%s1 + $0xc8] sm:$0xff]
  %v64 = vld [vmem:[%s1 + $0xd0] sm:$0xff]
  %v65 = vld [vmem:[%s1 + $0xd8] sm:$0xff]
  %v66 = vld [vmem:[%s1 + $0xe0] sm:$0xff]
  %v67 = vld [vmem:[%s1 + $0xe8] sm:$0xff]
  %v68 = vld [vmem:[%s1 + $0xf0] sm:$0xff]
  %v69 = vld [vmem:[%s1 + $0xf8] sm:$0xff]
  %v70 = vld [vmem:[%s1 + $0x100] sm:$0xff]
  %v71 = vld [vmem:[%s1 + $0x108] sm:$0xff]
  %v72 = vld [vmem:[%s1 + $0x110] sm:$0xff]
  %v73 = vld [vmem:[%s1 + $0x118] sm:$0xff]
  %v74 = vld [vmem:[%s1 + $0x120] sm:$0xff]
  %v75 = vld [vmem:[%s1 + $0x128] sm:$0xff]
  %v76 = vld [vmem:[%s1 + $0x130] sm:$0xff]
  %v77 = vld [vmem:[%s1 + $0x138] sm:$0xff]
  %v78 = vld [vmem:[%s1 + $0x140] sm:$0xff]
  %v79 = vld [vmem:[%s1 + $0x148] sm:$0xff]
  %v80 = vld [vmem:[%s1 + $0x150] sm:$0xff]
  %v81 = vld [vmem:[%s1 + $0x158] sm:$0xff]
  %v82 = vld [vmem:[%s1 + $0x160] sm:$0xff]
  %v83 = vld [vmem:[%s1 + $0x168] sm:$0xff]
  %v84 = vld [vmem:[%s1 + $0x170] sm:$0xff]
  %v85 = vld [vmem:[%s1 + $0x178] sm:$0xff]
  %v86 = vld [vmem:[%s1 + $0x180] sm:$0xff]
  %v87 = vld [vmem:[%s1 + $0x188] sm:$0xff]
  %v88 = vld [vmem:[%s1 + $0x190] sm:$0xff]
  %v89 = vld [vmem:[%s1 + $0x198] sm:$0xff]
  %v90 = vld [vmem:[%s1 + $0x1a0] sm:$0xff]
  %v91 = vld [vmem:[%s1 + $0x1a8] sm:$0xff]
  %v92 = vld [vmem:[%s1 + $0x1b0] sm:$0xff]
  %v93 = vld [vmem:[%s1 + $0x1b8] sm:$0xff]
  %v94 = vld [vmem:[%s1 + $0x1c0] sm:$0xff]
  %v95 = vld [vmem:[%s1 + $0x1c8] sm:$0xff]
  %v96 = vld [vmem:[%s1 + $0x1d0] sm:$0xff]
  %v97 = vld [vmem:[%s1 + $0x1d8] sm:$0xff]
  %v98 = vld [vmem:[%s1 + $0x1e0] sm:$0xff]
  %v99 = vld [vmem:[%s1 + $0x1e8] sm:$0xff]
  %v100 = vld [vmem:[%s1 + $0x1f0] sm:$0xff]
  %v101 = vld [vmem:[%s1 + $0x1f8] sm:$0xff]
  %v102 = vld [vmem:[%s1 + $0x200] sm:$0xff]
  %v103 = vld [vmem:[%s1 + $0x208] sm:$0xff]
  %v104 = vld [vmem:[%s1 + $0x210] sm:$0xff]
  %v105 = vld [vmem:[%s1 + $0x218] sm:$0xff]
  %v106 = vld [vmem:[%s1 + $0x220] sm:$0xff]
  %v107 = vld [vmem:[%s1 + $0x228] sm:$0xff]
  %v108 = vld [vmem:[%s1 + $0x230] sm:$0xff]
  %v109 = vld [vmem:[%s1 + $0x238] sm:$0xff]
  %v110 = vld [vmem:[%s1 + $0x240] sm:$0xff]
  %v111 = vld [vmem:[%s1 + $0x248] sm:$0xff]
  %v112 = vld [vmem:[%s1 + $0x250] sm:$0xff]
  %v113 = vld [vmem:[%s1 + $0x258] sm:$0xff]
  %v114 = vld [vmem:[%s1 + $0x260] sm:$0xff]
  %v115 = vld [vmem:[%s1 + $0x268] sm:$0xff]
  %v116 = vld [vmem:[%s1 + $0x270] sm:$0xff]
  %v117 = vld [vmem:[%s1 + $0x278] sm:$0xff]
  %v118 = vld [vmem:[%s1 + $0x280] sm:$0xff]
  %v119 = vld [vmem:[%s1 + $0x288] sm:$0xff]
  %v120 = vld [vmem:[%s1 + $0x290] sm:$0xff]
  %v121 = vld [vmem:[%s1 + $0x298] sm:$0xff]
  %v122 = vld [vmem:[%s1 + $0x2a0] sm:$0xff]
  %v123 = vld [vmem:[%s1 + $0x2a8] sm:$0xff]
  %v124 = vld [vmem:[%s1 + $0x2b0] sm:$0xff]
  %v125 = vld [vmem:[%s1 + $0x2b8] sm:$0xff]
  %v126 = vld [vmem:[%s1 + $0x2c0] sm:$0xff]
  %v127 = vld [vmem:[%s1 + $0x2c8] sm:$0xff]
  %v128 = vld [vmem:[%s1 + $0x2d0] sm:$0xff]
  %v129 = vld [vmem:[%s1 + $0x2d8] sm:$0xff]
  %v130 = vld [vmem:[%s1 + $0x2e0] sm:$0xff]
  %v131 = vld [vmem:[%s1 + $0x2e8] sm:$0xff]
  %v132 = vld [vmem:[%s1 + $0x2f0] sm:$0xff]
  %v133 = vld [vmem:[%s1 + $0x2f8] sm:$0xff]
  %v134 = vld [vmem:[%s1 + $0x300] sm:$0xff]
  %v135 = vld [vmem:[%s1 + $0x308] sm:$0xff]
  %v136 = vld [vmem:[%s1 + $0x310] sm:$0xff]
  %v137 = vld [vmem:[%s1 + $0x318] sm:$0xff]
  %v138 = vld [vmem:[%s1 + $0x320] sm:$0xff]
  %v139 = vld [vmem:[%s1 + $0x328] sm:$0xff]
  %v140 = vld [vmem:[%s1 + $0x330] sm:$0xff]
  %v141 = vld [vmem:[%s1 + $0x338] sm:$0xff]
  %v142 = vld [vmem:[%s1 + $0x340] sm:$0xff]
  %v143 = vld [vmem:[%s1 + $0x348] sm:$0xff]
  %v144 = vld [vmem:[%s1 + $0x350] sm:$0xff]
  %v145 = vld [vmem:[%s1 + $0x358] sm:$0xff]
  %v146 = vld [vmem:[%s1 + $0x360] sm:$0xff]
  %v147 = vld [vmem:[%s1 + $0x368] sm:$0xff]
  %v148 = vld [vmem:[%s1 + $0x370] sm:$0xff]
  %v149 = vld [vmem:[%s1 + $0x378] sm:$0xff]
  %v150 = vld [vmem:[%s1 + $0x380] sm:$0xff]
  %v151 = vld [vmem:[%s1 + $0x388] sm:$0xff]
  %v152 = vld [vmem:[%s1 + $0x390] sm:$0xff]
  %v153 = vld [vmem:[%s1 + $0x398] sm:$0xff]
  %v154 = vld [vmem:[%s1 + $0x3a0] sm:$0xff]
  %v155 = vld [vmem:[%s1 + $0x3a8] sm:$0xff]
  %v156 = vld [vmem:[%s1 + $0x3b0] sm:$0xff]
  %v157 = vld [vmem:[%s1 + $0x3b8] sm:$0xff]
  %v158 = vld [vmem:[%s1 + $0x3c0] sm:$0xff]
  %v159 = vld [vmem:[%s1 + $0x3c8] sm:$0xff]
  %v160 = vld [vmem:[%s1 + $0x3d0] sm:$0xff]
  %v161 = vld [vmem:[%s1 + $0x3d8] sm:$0xff]
  %v162 = vld [vmem:[%s1 + $0x3e0] sm:$0xff]
  %v163 = vld [vmem:[%s1 + $0x3e8] sm:$0xff]
  %v164 = vld [vmem:[%s1 + $0x3f0] sm:$0xff]
  %v165 = vld [vmem:[%s1 + $0x3f8] sm:$0xff]
  %v166 = vld [vmem:[%s1 + $0x400] sm:$0xff]
  %v167 = vld [vmem:[%s1 + $0x408] sm:$0xff]
  %v168 = vld [vmem:[%s1 + $0x410] sm:$0xff]
  %v169 = vld [vmem:[%s1 + $0x418] sm:$0xff]
  %v170 = vld [vmem:[%s1 + $0x420] sm:$0xff]
  %v171 = vld [vmem:[%s1 + $0x428] sm:$0xff]
  %v172 = vld [vmem:[%s1 + $0x430] sm:$0xff]
  %v173 = vld [vmem:[%s1 + $0x438] sm:$0xff]
  %v174 = vld [vmem:[%s1 + $0x440] sm:$0xff]
  %v175 = vld [vmem:[%s1 + $0x448] sm:$0xff]
  %v176 = vld [vmem:[%s1 + $0x450] sm:$0xff]
  %v177 = vld [vmem:[%s1 + $0x458] sm:$0xff]
  %v178 = vld [vmem:[%s1 + $0x460] sm:$0xff]
  %v179 = vld [vmem:[%s1 + $0x468] sm:$0xff]
  %v180 = vld [vmem:[%s1 + $0x470] sm:$0xff]
  %v181 = vld [vmem:[%s1 + $0x478] sm:$0xff]
  %v182 = vld [vmem:[%s1 + $0x480] sm:$0xff]
  %v183 = vld [vmem:[%s1 + $0x488] sm:$0xff]
  %v184 = vld [vmem:[%s1 + $0x490] sm:$0xff]
  %v185 = vld [vmem:[%s1 + $0x498] sm:$0xff]
  %v186 = vld [vmem:[%s1 + $0x4a0] sm:$0xff]
  %v187 = vld [vmem:[%s1 + $0x4a8] sm:$0xff]
  %v188 = vld [vmem:[%s1 + $0x4b0] sm:$0xff]
  %v189 = vld [vmem:[%s1 + $0x4b8] sm:$0xff]
  %v190 = vld [vmem:[%s1 + $0x4c0] sm:$0xff]
  %v191 = vld [vmem:[%s1 + $0x4c8] sm:$0xff]
  %v192 = vld [vmem:[%s1 + $0x4d0] sm:$0xff]
  %v193 = vld [vmem:[%s1 + $0x4d8] sm:$0xff]
  %v194 = vld [vmem:[%s1 + $0x4e0] sm:$0xff]
  %v195 = vld [vmem:[%s1 + $0x4e8] sm:$0xff]
  %v196 = vld [vmem:[%s1 + $0x4f0] sm:$0xff]
  %v197 = vld [vmem:[%s1 + $0x4f8] sm:$0xff]
  %v198 = vld [vmem:[%s1 + $0x500] sm:$0xff]
  %v199 = vld [vmem:[%s1 + $0x508] sm:$0xff]
  %v200 = vld [vmem:[%s1 + $0x510] sm:$0xff]
  %v201 = vld [vmem:[%s1 + $0x518] sm:$0xff]
  %v202 = vld [vmem:[%s1 + $0x520] sm:$0xff]
  %v203 = vld [vmem:[%s1 + $0x528] sm:$0xff]
  %v204 = vld [vmem:[%s1 + $0x530] sm:$0xff]
  %v205 = vld [vmem:[%s1 + $0x538] sm:$0xff]
  %v206 = vld [vmem:[%s1 + $0x540] sm:$0xff]
  %v207 = vld [vmem:[%s1 + $0x548] sm:$0xff]
  %v208 = vld [vmem:[%s1 + $0x550] sm:$0xff]
  %v209 = vld [vmem:[%s1 + $0x558] sm:$0xff]
  %v210 = vld [vmem:[%s1 + $0x560] sm:$0xff]
  %v211 = vld [vmem:[%s1 + $0x568] sm:$0xff]
  %v212 = vld [vmem:[%s1 + $0x570] sm:$0xff]
  %v213 = vld [vmem:[%s1 + $0x578] sm:$0xff]
  %v214 = vld [vmem:[%s1 + $0x580] sm:$0xff]
  %v215 = vld [vmem:[%s1 + $0x588] sm:$0xff]
  %v216 = vld [vmem:[%s1 + $0x590] sm:$0xff]
  %v217 = vld [vmem:[%s1 + $0x598] sm:$0xff]
  %v218 = vld [vmem:[%s1 + $0x5a0] sm:$0xff]
  %v219 = vld [vmem:[%s1 + $0x5a8] sm:$0xff]
  %v220 = vld [vmem:[%s1 + $0x5b0] sm:$0xff]
  %v221 = vld [vmem:[%s1 + $0x5b8] sm:$0xff]
  %v222 = vld [vmem:[%s1 + $0x5c0] sm:$0xff]
  %v223 = vld [vmem:[%s1 + $0x5c8] sm:$0xff]
  %v224 = vld [vmem:[%s1 + $0x5d0] sm:$0xff]
  %v225 = vld [vmem:[%s1 + $0x5d8] sm:$0xff]
  %v226 = vld [vmem:[%s1 + $0x5e0] sm:$0xff]
  %v227 = vld [vmem:[%s1 + $0x5e8] sm:$0xff]
  %v228 = vld [vmem:[%s1 + $0x5f0] sm:$0xff]
  %v229 = vld [vmem:[%s1 + $0x5f8] sm:$0xff]
  %v230 = vld [vmem:[%s2] sm:$0x3]
  %v232 = vlaneseq
  %v233 = vshrl.u32 %v232, 7
  %v234 = vsub.s32 0, %v233
  %v235 = vrot.slane %v230, %v234
  %v236 = vlaneseq
  %v237 = vshrl.u32 %v236, 7
  %v238 = vsub.s32 1, %v237
  %v239 = vrot.slane %v230, %v238
  %v266 = vunpack.c.l.b16 %v14
  %v267 = vunpack.c.h.b16 %v14
  %v268 = vunpack.c.l.b16 %v15
  %v269 = vunpack.c.h.b16 %v15
  %v270 = vunpack.c.l.b16 %v16
  %v271 = vunpack.c.h.b16 %v16
  %v272 = vunpack.c.l.b16 %v17
  %v273 = vunpack.c.h.b16 %v17
  %v274 = vunpack.c.l.b16 %v18
  %v275 = vunpack.c.h.b16 %v18
  %v276 = vunpack.c.l.b16 %v19
  %v277 = vunpack.c.h.b16 %v19
  %v278 = vunpack.c.l.b16 %v20
  %v279 = vunpack.c.h.b16 %v20
  %v280 = vunpack.c.l.b16 %v21
  %v281 = vunpack.c.h.b16 %v21
  %v282 = vunpack.c.l.b16 %v22
  %v283 = vunpack.c.h.b16 %v22
  %v284 = vunpack.c.l.b16 %v23
  %v285 = vunpack.c.h.b16 %v23
  %v286 = vunpack.c.l.b16 %v24
  %v287 = vunpack.c.h.b16 %v24
  %v288 = vunpack.c.l.b16 %v25
  %v289 = vunpack.c.h.b16 %v25
  %v290 = vunpack.c.l.b16 %v26
  %v291 = vunpack.c.h.b16 %v26
  %v292 = vunpack.c.l.b16 %v27
  %v293 = vunpack.c.h.b16 %v27
  %v294 = vunpack.c.l.b16 %v28
  %v295 = vunpack.c.h.b16 %v28
  %v296 = vunpack.c.l.b16 %v29
  %v297 = vunpack.c.h.b16 %v29
  %v298 = vunpack.c.l.b16 %v30
  %v299 = vunpack.c.h.b16 %v30
  %v300 = vunpack.c.l.b16 %v31
  %v301 = vunpack.c.h.b16 %v31
  %v302 = vunpack.c.l.b16 %v32
  %v303 = vunpack.c.h.b16 %v32
  %v304 = vunpack.c.l.b16 %v33
  %v305 = vunpack.c.h.b16 %v33
  %v306 = vunpack.c.l.b16 %v34
  %v307 = vunpack.c.h.b16 %v34
  %v308 = vunpack.c.l.b16 %v35
  %v309 = vunpack.c.h.b16 %v35
  %v310 = vunpack.c.l.b16 %v36
  %v311 = vunpack.c.h.b16 %v36
  %v312 = vunpack.c.l.b16 %v37
  %v313 = vunpack.c.h.b16 %v37
  %v314 = vpack.c.b16 %v278, %v266
  %v315 = vpack.c.b16 %v279, %v267
  %v316 = vpack.c.b16 %v280, %v268
  %v317 = vpack.c.b16 %v281, %v269
  %v318 = vpack.c.b16 %v282, %v270
  %v319 = vpack.c.b16 %v283, %v271
  %v320 = vpack.c.b16 %v284, %v272
  %v321 = vpack.c.b16 %v285, %v273
  %v322 = vpack.c.b16 %v286, %v274
  %v323 = vpack.c.b16 %v287, %v275
  %v324 = vpack.c.b16 %v288, %v276
  %v325 = vpack.c.b16 %v289, %v277
  %v326 = vpack.c.b16 %v302, %v290
  %v327 = vpack.c.b16 %v303, %v291
  %v328 = vpack.c.b16 %v304, %v292
  %v329 = vpack.c.b16 %v305, %v293
  %v330 = vpack.c.b16 %v306, %v294
  %v331 = vpack.c.b16 %v307, %v295
  %v332 = vpack.c.b16 %v308, %v296
  %v333 = vpack.c.b16 %v309, %v297
  %v334 = vpack.c.b16 %v310, %v298
  %v335 = vpack.c.b16 %v311, %v299
  %v336 = vpack.c.b16 %v312, %v300
  %v337 = vpack.c.b16 %v313, %v301
  %v554 = vunpack.c.l.b16 %v38
  %v555 = vunpack.c.h.b16 %v38
  %v556 = vunpack.c.l.b16 %v39
  %v557 = vunpack.c.h.b16 %v39
  %v558 = vunpack.c.l.b16 %v40
  %v559 = vunpack.c.h.b16 %v40
  %v560 = vunpack.c.l.b16 %v41
  %v561 = vunpack.c.h.b16 %v41
  %v562 = vunpack.c.l.b16 %v42
  %v563 = vunpack.c.h.b16 %v42
  %v564 = vunpack.c.l.b16 %v43
  %v565 = vunpack.c.h.b16 %v43
  %v566 = vunpack.c.l.b16 %v44
  %v567 = vunpack.c.h.b16 %v44
  %v568 = vunpack.c.l.b16 %v45
  %v569 = vunpack.c.h.b16 %v45
  %v570 = vunpack.c.l.b16 %v46
  %v571 = vunpack.c.h.b16 %v46
  %v572 = vunpack.c.l.b16 %v47
  %v573 = vunpack.c.h.b16 %v47
  %v574 = vunpack.c.l.b16 %v48
  %v575 = vunpack.c.h.b16 %v48
  %v576 = vunpack.c.l.b16 %v49
  %v577 = vunpack.c.h.b16 %v49
  %v578 = vunpack.c.l.b16 %v50
  %v579 = vunpack.c.h.b16 %v50
  %v580 = vunpack.c.l.b16 %v51
  %v581 = vunpack.c.h.b16 %v51
  %v582 = vunpack.c.l.b16 %v52
  %v583 = vunpack.c.h.b16 %v52
  %v584 = vunpack.c.l.b16 %v53
  %v585 = vunpack.c.h.b16 %v53
  %v586 = vunpack.c.l.b16 %v54
  %v587 = vunpack.c.h.b16 %v54
  %v588 = vunpack.c.l.b16 %v55
  %v589 = vunpack.c.h.b16 %v55
  %v590 = vunpack.c.l.b16 %v56
  %v591 = vunpack.c.h.b16 %v56
  %v592 = vunpack.c.l.b16 %v57
  %v593 = vunpack.c.h.b16 %v57
  %v594 = vunpack.c.l.b16 %v58
  %v595 = vunpack.c.h.b16 %v58
  %v596 = vunpack.c.l.b16 %v59
  %v597 = vunpack.c.h.b16 %v59
  %v598 = vunpack.c.l.b16 %v60
  %v599 = vunpack.c.h.b16 %v60
  %v600 = vunpack.c.l.b16 %v61
  %v601 = vunpack.c.h.b16 %v61
  %v602 = vunpack.c.l.b16 %v62
  %v603 = vunpack.c.h.b16 %v62
  %v604 = vunpack.c.l.b16 %v63
  %v605 = vunpack.c.h.b16 %v63
  %v606 = vunpack.c.l.b16 %v64
  %v607 = vunpack.c.h.b16 %v64
  %v608 = vunpack.c.l.b16 %v65
  %v609 = vunpack.c.h.b16 %v65
  %v610 = vunpack.c.l.b16 %v66
  %v611 = vunpack.c.h.b16 %v66
  %v612 = vunpack.c.l.b16 %v67
  %v613 = vunpack.c.h.b16 %v67
  %v614 = vunpack.c.l.b16 %v68
  %v615 = vunpack.c.h.b16 %v68
  %v616 = vunpack.c.l.b16 %v69
  %v617 = vunpack.c.h.b16 %v69
  %v618 = vunpack.c.l.b16 %v70
  %v619 = vunpack.c.h.b16 %v70
  %v620 = vunpack.c.l.b16 %v71
  %v621 = vunpack.c.h.b16 %v71
  %v622 = vunpack.c.l.b16 %v72
  %v623 = vunpack.c.h.b16 %v72
  %v624 = vunpack.c.l.b16 %v73
  %v625 = vunpack.c.h.b16 %v73
  %v626 = vunpack.c.l.b16 %v74
  %v627 = vunpack.c.h.b16 %v74
  %v628 = vunpack.c.l.b16 %v75
  %v629 = vunpack.c.h.b16 %v75
  %v630 = vunpack.c.l.b16 %v76
  %v631 = vunpack.c.h.b16 %v76
  %v632 = vunpack.c.l.b16 %v77
  %v633 = vunpack.c.h.b16 %v77
  %v634 = vunpack.c.l.b16 %v78
  %v635 = vunpack.c.h.b16 %v78
  %v636 = vunpack.c.l.b16 %v79
  %v637 = vunpack.c.h.b16 %v79
  %v638 = vunpack.c.l.b16 %v80
  %v639 = vunpack.c.h.b16 %v80
  %v640 = vunpack.c.l.b16 %v81
  %v641 = vunpack.c.h.b16 %v81
  %v642 = vunpack.c.l.b16 %v82
  %v643 = vunpack.c.h.b16 %v82
  %v644 = vunpack.c.l.b16 %v83
  %v645 = vunpack.c.h.b16 %v83
  %v646 = vunpack.c.l.b16 %v84
  %v647 = vunpack.c.h.b16 %v84
  %v648 = vunpack.c.l.b16 %v85
  %v649 = vunpack.c.h.b16 %v85
  %v650 = vunpack.c.l.b16 %v86
  %v651 = vunpack.c.h.b16 %v86
  %v652 = vunpack.c.l.b16 %v87
  %v653 = vunpack.c.h.b16 %v87
  %v654 = vunpack.c.l.b16 %v88
  %v655 = vunpack.c.h.b16 %v88
  %v656 = vunpack.c.l.b16 %v89
  %v657 = vunpack.c.h.b16 %v89
  %v658 = vunpack.c.l.b16 %v90
  %v659 = vunpack.c.h.b16 %v90
  %v660 = vunpack.c.l.b16 %v91
  %v661 = vunpack.c.h.b16 %v91
  %v662 = vunpack.c.l.b16 %v92
  %v663 = vunpack.c.h.b16 %v92
  %v664 = vunpack.c.l.b16 %v93
  %v665 = vunpack.c.h.b16 %v93
  %v666 = vunpack.c.l.b16 %v94
  %v667 = vunpack.c.h.b16 %v94
  %v668 = vunpack.c.l.b16 %v95
  %v669 = vunpack.c.h.b16 %v95
  %v670 = vunpack.c.l.b16 %v96
  %v671 = vunpack.c.h.b16 %v96
  %v672 = vunpack.c.l.b16 %v97
  %v673 = vunpack.c.h.b16 %v97
  %v674 = vunpack.c.l.b16 %v98
  %v675 = vunpack.c.h.b16 %v98
  %v676 = vunpack.c.l.b16 %v99
  %v677 = vunpack.c.h.b16 %v99
  %v678 = vunpack.c.l.b16 %v100
  %v679 = vunpack.c.h.b16 %v100
  %v680 = vunpack.c.l.b16 %v101
  %v681 = vunpack.c.h.b16 %v101
  %v682 = vunpack.c.l.b16 %v102
  %v683 = vunpack.c.h.b16 %v102
  %v684 = vunpack.c.l.b16 %v103
  %v685 = vunpack.c.h.b16 %v103
  %v686 = vunpack.c.l.b16 %v104
  %v687 = vunpack.c.h.b16 %v104
  %v688 = vunpack.c.l.b16 %v105
  %v689 = vunpack.c.h.b16 %v105
  %v690 = vunpack.c.l.b16 %v106
  %v691 = vunpack.c.h.b16 %v106
  %v692 = vunpack.c.l.b16 %v107
  %v693 = vunpack.c.h.b16 %v107
  %v694 = vunpack.c.l.b16 %v108
  %v695 = vunpack.c.h.b16 %v108
  %v696 = vunpack.c.l.b16 %v109
  %v697 = vunpack.c.h.b16 %v109
  %v698 = vunpack.c.l.b16 %v110
  %v699 = vunpack.c.h.b16 %v110
  %v700 = vunpack.c.l.b16 %v111
  %v701 = vunpack.c.h.b16 %v111
  %v702 = vunpack.c.l.b16 %v112
  %v703 = vunpack.c.h.b16 %v112
  %v704 = vunpack.c.l.b16 %v113
  %v705 = vunpack.c.h.b16 %v113
  %v706 = vunpack.c.l.b16 %v114
  %v707 = vunpack.c.h.b16 %v114
  %v708 = vunpack.c.l.b16 %v115
  %v709 = vunpack.c.h.b16 %v115
  %v710 = vunpack.c.l.b16 %v116
  %v711 = vunpack.c.h.b16 %v116
  %v712 = vunpack.c.l.b16 %v117
  %v713 = vunpack.c.h.b16 %v117
  %v714 = vunpack.c.l.b16 %v118
  %v715 = vunpack.c.h.b16 %v118
  %v716 = vunpack.c.l.b16 %v119
  %v717 = vunpack.c.h.b16 %v119
  %v718 = vunpack.c.l.b16 %v120
  %v719 = vunpack.c.h.b16 %v120
  %v720 = vunpack.c.l.b16 %v121
  %v721 = vunpack.c.h.b16 %v121
  %v722 = vunpack.c.l.b16 %v122
  %v723 = vunpack.c.h.b16 %v122
  %v724 = vunpack.c.l.b16 %v123
  %v725 = vunpack.c.h.b16 %v123
  %v726 = vunpack.c.l.b16 %v124
  %v727 = vunpack.c.h.b16 %v124
  %v728 = vunpack.c.l.b16 %v125
  %v729 = vunpack.c.h.b16 %v125
  %v730 = vunpack.c.l.b16 %v126
  %v731 = vunpack.c.h.b16 %v126
  %v732 = vunpack.c.l.b16 %v127
  %v733 = vunpack.c.h.b16 %v127
  %v734 = vunpack.c.l.b16 %v128
  %v735 = vunpack.c.h.b16 %v128
  %v736 = vunpack.c.l.b16 %v129
  %v737 = vunpack.c.h.b16 %v129
  %v738 = vunpack.c.l.b16 %v130
  %v739 = vunpack.c.h.b16 %v130
  %v740 = vunpack.c.l.b16 %v131
  %v741 = vunpack.c.h.b16 %v131
  %v742 = vunpack.c.l.b16 %v132
  %v743 = vunpack.c.h.b16 %v132
  %v744 = vunpack.c.l.b16 %v133
  %v745 = vunpack.c.h.b16 %v133
  %v746 = vunpack.c.l.b16 %v134
  %v747 = vunpack.c.h.b16 %v134
  %v748 = vunpack.c.l.b16 %v135
  %v749 = vunpack.c.h.b16 %v135
  %v750 = vunpack.c.l.b16 %v136
  %v751 = vunpack.c.h.b16 %v136
  %v752 = vunpack.c.l.b16 %v137
  %v753 = vunpack.c.h.b16 %v137
  %v754 = vunpack.c.l.b16 %v138
  %v755 = vunpack.c.h.b16 %v138
  %v756 = vunpack.c.l.b16 %v139
  %v757 = vunpack.c.h.b16 %v139
  %v758 = vunpack.c.l.b16 %v140
  %v759 = vunpack.c.h.b16 %v140
  %v760 = vunpack.c.l.b16 %v141
  %v761 = vunpack.c.h.b16 %v141
  %v762 = vunpack.c.l.b16 %v142
  %v763 = vunpack.c.h.b16 %v142
  %v764 = vunpack.c.l.b16 %v143
  %v765 = vunpack.c.h.b16 %v143
  %v766 = vunpack.c.l.b16 %v144
  %v767 = vunpack.c.h.b16 %v144
  %v768 = vunpack.c.l.b16 %v145
  %v769 = vunpack.c.h.b16 %v145
  %v770 = vunpack.c.l.b16 %v146
  %v771 = vunpack.c.h.b16 %v146
  %v772 = vunpack.c.l.b16 %v147
  %v773 = vunpack.c.h.b16 %v147
  %v774 = vunpack.c.l.b16 %v148
  %v775 = vunpack.c.h.b16 %v148
  %v776 = vunpack.c.l.b16 %v149
  %v777 = vunpack.c.h.b16 %v149
  %v778 = vunpack.c.l.b16 %v150
  %v779 = vunpack.c.h.b16 %v150
  %v780 = vunpack.c.l.b16 %v151
  %v781 = vunpack.c.h.b16 %v151
  %v782 = vunpack.c.l.b16 %v152
  %v783 = vunpack.c.h.b16 %v152
  %v784 = vunpack.c.l.b16 %v153
  %v785 = vunpack.c.h.b16 %v153
  %v786 = vunpack.c.l.b16 %v154
  %v787 = vunpack.c.h.b16 %v154
  %v788 = vunpack.c.l.b16 %v155
  %v789 = vunpack.c.h.b16 %v155
  %v790 = vunpack.c.l.b16 %v156
  %v791 = vunpack.c.h.b16 %v156
  %v792 = vunpack.c.l.b16 %v157
  %v793 = vunpack.c.h.b16 %v157
  %v794 = vunpack.c.l.b16 %v158
  %v795 = vunpack.c.h.b16 %v158
  %v796 = vunpack.c.l.b16 %v159
  %v797 = vunpack.c.h.b16 %v159
  %v798 = vunpack.c.l.b16 %v160
  %v799 = vunpack.c.h.b16 %v160
  %v800 = vunpack.c.l.b16 %v161
  %v801 = vunpack.c.h.b16 %v161
  %v802 = vunpack.c.l.b16 %v162
  %v803 = vunpack.c.h.b16 %v162
  %v804 = vunpack.c.l.b16 %v163
  %v805 = vunpack.c.h.b16 %v163
  %v806 = vunpack.c.l.b16 %v164
  %v807 = vunpack.c.h.b16 %v164
  %v808 = vunpack.c.l.b16 %v165
  %v809 = vunpack.c.h.b16 %v165
  %v810 = vunpack.c.l.b16 %v166
  %v811 = vunpack.c.h.b16 %v166
  %v812 = vunpack.c.l.b16 %v167
  %v813 = vunpack.c.h.b16 %v167
  %v814 = vunpack.c.l.b16 %v168
  %v815 = vunpack.c.h.b16 %v168
  %v816 = vunpack.c.l.b16 %v169
  %v817 = vunpack.c.h.b16 %v169
  %v818 = vunpack.c.l.b16 %v170
  %v819 = vunpack.c.h.b16 %v170
  %v820 = vunpack.c.l.b16 %v171
  %v821 = vunpack.c.h.b16 %v171
  %v822 = vunpack.c.l.b16 %v172
  %v823 = vunpack.c.h.b16 %v172
  %v824 = vunpack.c.l.b16 %v173
  %v825 = vunpack.c.h.b16 %v173
  %v826 = vunpack.c.l.b16 %v174
  %v827 = vunpack.c.h.b16 %v174
  %v828 = vunpack.c.l.b16 %v175
  %v829 = vunpack.c.h.b16 %v175
  %v830 = vunpack.c.l.b16 %v176
  %v831 = vunpack.c.h.b16 %v176
  %v832 = vunpack.c.l.b16 %v177
  %v833 = vunpack.c.h.b16 %v177
  %v834 = vunpack.c.l.b16 %v178
  %v835 = vunpack.c.h.b16 %v178
  %v836 = vunpack.c.l.b16 %v179
  %v837 = vunpack.c.h.b16 %v179
  %v838 = vunpack.c.l.b16 %v180
  %v839 = vunpack.c.h.b16 %v180
  %v840 = vunpack.c.l.b16 %v181
  %v841 = vunpack.c.h.b16 %v181
  %v842 = vunpack.c.l.b16 %v182
  %v843 = vunpack.c.h.b16 %v182
  %v844 = vunpack.c.l.b16 %v183
  %v845 = vunpack.c.h.b16 %v183
  %v846 = vunpack.c.l.b16 %v184
  %v847 = vunpack.c.h.b16 %v184
  %v848 = vunpack.c.l.b16 %v185
  %v849 = vunpack.c.h.b16 %v185
  %v850 = vunpack.c.l.b16 %v186
  %v851 = vunpack.c.h.b16 %v186
  %v852 = vunpack.c.l.b16 %v187
  %v853 = vunpack.c.h.b16 %v187
  %v854 = vunpack.c.l.b16 %v188
  %v855 = vunpack.c.h.b16 %v188
  %v856 = vunpack.c.l.b16 %v189
  %v857 = vunpack.c.h.b16 %v189
  %v858 = vunpack.c.l.b16 %v190
  %v859 = vunpack.c.h.b16 %v190
  %v860 = vunpack.c.l.b16 %v191
  %v861 = vunpack.c.h.b16 %v191
  %v862 = vunpack.c.l.b16 %v192
  %v863 = vunpack.c.h.b16 %v192
  %v864 = vunpack.c.l.b16 %v193
  %v865 = vunpack.c.h.b16 %v193
  %v866 = vunpack.c.l.b16 %v194
  %v867 = vunpack.c.h.b16 %v194
  %v868 = vunpack.c.l.b16 %v195
  %v869 = vunpack.c.h.b16 %v195
  %v870 = vunpack.c.l.b16 %v196
  %v871 = vunpack.c.h.b16 %v196
  %v872 = vunpack.c.l.b16 %v197
  %v873 = vunpack.c.h.b16 %v197
  %v874 = vunpack.c.l.b16 %v198
  %v875 = vunpack.c.h.b16 %v198
  %v876 = vunpack.c.l.b16 %v199
  %v877 = vunpack.c.h.b16 %v199
  %v878 = vunpack.c.l.b16 %v200
  %v879 = vunpack.c.h.b16 %v200
  %v880 = vunpack.c.l.b16 %v201
  %v881 = vunpack.c.h.b16 %v201
  %v882 = vunpack.c.l.b16 %v202
  %v883 = vunpack.c.h.b16 %v202
  %v884 = vunpack.c.l.b16 %v203
  %v885 = vunpack.c.h.b16 %v203
  %v886 = vunpack.c.l.b16 %v204
  %v887 = vunpack.c.h.b16 %v204
  %v888 = vunpack.c.l.b16 %v205
  %v889 = vunpack.c.h.b16 %v205
  %v890 = vunpack.c.l.b16 %v206
  %v891 = vunpack.c.h.b16 %v206
  %v892 = vunpack.c.l.b16 %v207
  %v893 = vunpack.c.h.b16 %v207
  %v894 = vunpack.c.l.b16 %v208
  %v895 = vunpack.c.h.b16 %v208
  %v896 = vunpack.c.l.b16 %v209
  %v897 = vunpack.c.h.b16 %v209
  %v898 = vunpack.c.l.b16 %v210
  %v899 = vunpack.c.h.b16 %v210
  %v900 = vunpack.c.l.b16 %v211
  %v901 = vunpack.c.h.b16 %v211
  %v902 = vunpack.c.l.b16 %v212
  %v903 = vunpack.c.h.b16 %v212
  %v904 = vunpack.c.l.b16 %v213
  %v905 = vunpack.c.h.b16 %v213
  %v906 = vunpack.c.l.b16 %v214
  %v907 = vunpack.c.h.b16 %v214
  %v908 = vunpack.c.l.b16 %v215
  %v909 = vunpack.c.h.b16 %v215
  %v910 = vunpack.c.l.b16 %v216
  %v911 = vunpack.c.h.b16 %v216
  %v912 = vunpack.c.l.b16 %v217
  %v913 = vunpack.c.h.b16 %v217
  %v914 = vunpack.c.l.b16 %v218
  %v915 = vunpack.c.h.b16 %v218
  %v916 = vunpack.c.l.b16 %v219
  %v917 = vunpack.c.h.b16 %v219
  %v918 = vunpack.c.l.b16 %v220
  %v919 = vunpack.c.h.b16 %v220
  %v920 = vunpack.c.l.b16 %v221
  %v921 = vunpack.c.h.b16 %v221
  %v922 = vunpack.c.l.b16 %v222
  %v923 = vunpack.c.h.b16 %v222
  %v924 = vunpack.c.l.b16 %v223
  %v925 = vunpack.c.h.b16 %v223
  %v926 = vunpack.c.l.b16 %v224
  %v927 = vunpack.c.h.b16 %v224
  %v928 = vunpack.c.l.b16 %v225
  %v929 = vunpack.c.h.b16 %v225
  %v930 = vunpack.c.l.b16 %v226
  %v931 = vunpack.c.h.b16 %v226
  %v932 = vunpack.c.l.b16 %v227
  %v933 = vunpack.c.h.b16 %v227
  %v934 = vunpack.c.l.b16 %v228
  %v935 = vunpack.c.h.b16 %v228
  %v936 = vunpack.c.l.b16 %v229
  %v937 = vunpack.c.h.b16 %v229
  %v938 = vpack.c.b16 %v556, %v554
  %v939 = vpack.c.b16 %v557, %v555
  %v940 = vpack.c.b16 %v560, %v558
  %v941 = vpack.c.b16 %v561, %v559
  %v942 = vpack.c.b16 %v564, %v562
  %v943 = vpack.c.b16 %v565, %v563
  %v944 = vpack.c.b16 %v568, %v566
  %v945 = vpack.c.b16 %v569, %v567
  %v946 = vpack.c.b16 %v572, %v570
  %v947 = vpack.c.b16 %v573, %v571
  %v948 = vpack.c.b16 %v576, %v574
  %v949 = vpack.c.b16 %v577, %v575
  %v950 = vpack.c.b16 %v580, %v578
  %v951 = vpack.c.b16 %v581, %v579
  %v952 = vpack.c.b16 %v584, %v582
  %v953 = vpack.c.b16 %v585, %v583
  %v954 = vpack.c.b16 %v588, %v586
  %v955 = vpack.c.b16 %v589, %v587
  %v956 = vpack.c.b16 %v592, %v590
  %v957 = vpack.c.b16 %v593, %v591
  %v958 = vpack.c.b16 %v596, %v594
  %v959 = vpack.c.b16 %v597, %v595
  %v960 = vpack.c.b16 %v600, %v598
  %v961 = vpack.c.b16 %v601, %v599
  %v962 = vpack.c.b16 %v604, %v602
  %v963 = vpack.c.b16 %v605, %v603
  %v964 = vpack.c.b16 %v608, %v606
  %v965 = vpack.c.b16 %v609, %v607
  %v966 = vpack.c.b16 %v612, %v610
  %v967 = vpack.c.b16 %v613, %v611
  %v968 = vpack.c.b16 %v616, %v614
  %v969 = vpack.c.b16 %v617, %v615
  %v970 = vpack.c.b16 %v620, %v618
  %v971 = vpack.c.b16 %v621, %v619
  %v972 = vpack.c.b16 %v624, %v622
  %v973 = vpack.c.b16 %v625, %v623
  %v974 = vpack.c.b16 %v628, %v626
  %v975 = vpack.c.b16 %v629, %v627
  %v976 = vpack.c.b16 %v632, %v630
  %v977 = vpack.c.b16 %v633, %v631
  %v978 = vpack.c.b16 %v636, %v634
  %v979 = vpack.c.b16 %v637, %v635
  %v980 = vpack.c.b16 %v640, %v638
  %v981 = vpack.c.b16 %v641, %v639
  %v982 = vpack.c.b16 %v644, %v642
  %v983 = vpack.c.b16 %v645, %v643
  %v984 = vpack.c.b16 %v648, %v646
  %v985 = vpack.c.b16 %v649, %v647
  %v986 = vpack.c.b16 %v652, %v650
  %v987 = vpack.c.b16 %v653, %v651
  %v988 = vpack.c.b16 %v656, %v654
  %v989 = vpack.c.b16 %v657, %v655
  %v990 = vpack.c.b16 %v660, %v658
  %v991 = vpack.c.b16 %v661, %v659
  %v992 = vpack.c.b16 %v664, %v662
  %v993 = vpack.c.b16 %v665, %v663
  %v994 = vpack.c.b16 %v668, %v666
  %v995 = vpack.c.b16 %v669, %v667
  %v996 = vpack.c.b16 %v672, %v670
  %v997 = vpack.c.b16 %v673, %v671
  %v998 = vpack.c.b16 %v676, %v674
  %v999 = vpack.c.b16 %v677, %v675
  %v1000 = vpack.c.b16 %v680, %v678
  %v1001 = vpack.c.b16 %v681, %v679
  %v1002 = vpack.c.b16 %v684, %v682
  %v1003 = vpack.c.b16 %v685, %v683
  %v1004 = vpack.c.b16 %v688, %v686
  %v1005 = vpack.c.b16 %v689, %v687
  %v1006 = vpack.c.b16 %v692, %v690
  %v1007 = vpack.c.b16 %v693, %v691
  %v1008 = vpack.c.b16 %v696, %v694
  %v1009 = vpack.c.b16 %v697, %v695
  %v1010 = vpack.c.b16 %v700, %v698
  %v1011 = vpack.c.b16 %v701, %v699
  %v1012 = vpack.c.b16 %v704, %v702
  %v1013 = vpack.c.b16 %v705, %v703
  %v1014 = vpack.c.b16 %v708, %v706
  %v1015 = vpack.c.b16 %v709, %v707
  %v1016 = vpack.c.b16 %v712, %v710
  %v1017 = vpack.c.b16 %v713, %v711
  %v1018 = vpack.c.b16 %v716, %v714
  %v1019 = vpack.c.b16 %v717, %v715
  %v1020 = vpack.c.b16 %v720, %v718
  %v1021 = vpack.c.b16 %v721, %v719
  %v1022 = vpack.c.b16 %v724, %v722
  %v1023 = vpack.c.b16 %v725, %v723
  %v1024 = vpack.c.b16 %v728, %v726
  %v1025 = vpack.c.b16 %v729, %v727
  %v1026 = vpack.c.b16 %v732, %v730
  %v1027 = vpack.c.b16 %v733, %v731
  %v1028 = vpack.c.b16 %v736, %v734
  %v1029 = vpack.c.b16 %v737, %v735
  %v1030 = vpack.c.b16 %v740, %v738
  %v1031 = vpack.c.b16 %v741, %v739
  %v1032 = vpack.c.b16 %v744, %v742
  %v1033 = vpack.c.b16 %v745, %v743
  %v1034 = vpack.c.b16 %v748, %v746
  %v1035 = vpack.c.b16 %v749, %v747
  %v1036 = vpack.c.b16 %v752, %v750
  %v1037 = vpack.c.b16 %v753, %v751
  %v1038 = vpack.c.b16 %v756, %v754
  %v1039 = vpack.c.b16 %v757, %v755
  %v1040 = vpack.c.b16 %v760, %v758
  %v1041 = vpack.c.b16 %v761, %v759
  %v1042 = vpack.c.b16 %v764, %v762
  %v1043 = vpack.c.b16 %v765, %v763
  %v1044 = vpack.c.b16 %v768, %v766
  %v1045 = vpack.c.b16 %v769, %v767
  %v1046 = vpack.c.b16 %v772, %v770
  %v1047 = vpack.c.b16 %v773, %v771
  %v1048 = vpack.c.b16 %v776, %v774
  %v1049 = vpack.c.b16 %v777, %v775
  %v1050 = vpack.c.b16 %v780, %v778
  %v1051 = vpack.c.b16 %v781, %v779
  %v1052 = vpack.c.b16 %v784, %v782
  %v1053 = vpack.c.b16 %v785, %v783
  %v1054 = vpack.c.b16 %v788, %v786
  %v1055 = vpack.c.b16 %v789, %v787
  %v1056 = vpack.c.b16 %v792, %v790
  %v1057 = vpack.c.b16 %v793, %v791
  %v1058 = vpack.c.b16 %v796, %v794
  %v1059 = vpack.c.b16 %v797, %v795
  %v1060 = vpack.c.b16 %v800, %v798
  %v1061 = vpack.c.b16 %v801, %v799
  %v1062 = vpack.c.b16 %v804, %v802
  %v1063 = vpack.c.b16 %v805, %v803
  %v1064 = vpack.c.b16 %v808, %v806
  %v1065 = vpack.c.b16 %v809, %v807
  %v1066 = vpack.c.b16 %v812, %v810
  %v1067 = vpack.c.b16 %v813, %v811
  %v1068 = vpack.c.b16 %v816, %v814
  %v1069 = vpack.c.b16 %v817, %v815
  %v1070 = vpack.c.b16 %v820, %v818
  %v1071 = vpack.c.b16 %v821, %v819
  %v1072 = vpack.c.b16 %v824, %v822
  %v1073 = vpack.c.b16 %v825, %v823
  %v1074 = vpack.c.b16 %v828, %v826
  %v1075 = vpack.c.b16 %v829, %v827
  %v1076 = vpack.c.b16 %v832, %v830
  %v1077 = vpack.c.b16 %v833, %v831
  %v1078 = vpack.c.b16 %v836, %v834
  %v1079 = vpack.c.b16 %v837, %v835
  %v1080 = vpack.c.b16 %v840, %v838
  %v1081 = vpack.c.b16 %v841, %v839
  %v1082 = vpack.c.b16 %v844, %v842
  %v1083 = vpack.c.b16 %v845, %v843
  %v1084 = vpack.c.b16 %v848, %v846
  %v1085 = vpack.c.b16 %v849, %v847
  %v1086 = vpack.c.b16 %v852, %v850
  %v1087 = vpack.c.b16 %v853, %v851
  %v1088 = vpack.c.b16 %v856, %v854
  %v1089 = vpack.c.b16 %v857, %v855
  %v1090 = vpack.c.b16 %v860, %v858
  %v1091 = vpack.c.b16 %v861, %v859
  %v1092 = vpack.c.b16 %v864, %v862
  %v1093 = vpack.c.b16 %v865, %v863
  %v1094 = vpack.c.b16 %v868, %v866
  %v1095 = vpack.c.b16 %v869, %v867
  %v1096 = vpack.c.b16 %v872, %v870
  %v1097 = vpack.c.b16 %v873, %v871
  %v1098 = vpack.c.b16 %v876, %v874
  %v1099 = vpack.c.b16 %v877, %v875
  %v1100 = vpack.c.b16 %v880, %v878
  %v1101 = vpack.c.b16 %v881, %v879
  %v1102 = vpack.c.b16 %v884, %v882
  %v1103 = vpack.c.b16 %v885, %v883
  %v1104 = vpack.c.b16 %v888, %v886
  %v1105 = vpack.c.b16 %v889, %v887
  %v1106 = vpack.c.b16 %v892, %v890
  %v1107 = vpack.c.b16 %v893, %v891
  %v1108 = vpack.c.b16 %v896, %v894
  %v1109 = vpack.c.b16 %v897, %v895
  %v1110 = vpack.c.b16 %v900, %v898
  %v1111 = vpack.c.b16 %v901, %v899
  %v1112 = vpack.c.b16 %v904, %v902
  %v1113 = vpack.c.b16 %v905, %v903
  %v1114 = vpack.c.b16 %v908, %v906
  %v1115 = vpack.c.b16 %v909, %v907
  %v1116 = vpack.c.b16 %v912, %v910
  %v1117 = vpack.c.b16 %v913, %v911
  %v1118 = vpack.c.b16 %v916, %v914
  %v1119 = vpack.c.b16 %v917, %v915
  %v1120 = vpack.c.b16 %v920, %v918
  %v1121 = vpack.c.b16 %v921, %v919
  %v1122 = vpack.c.b16 %v924, %v922
  %v1123 = vpack.c.b16 %v925, %v923
  %v1124 = vpack.c.b16 %v928, %v926
  %v1125 = vpack.c.b16 %v929, %v927
  %v1126 = vpack.c.b16 %v932, %v930
  %v1127 = vpack.c.b16 %v933, %v931
  %v1128 = vpack.c.b16 %v936, %v934
  %v1129 = vpack.c.b16 %v937, %v935
  %1322 = vmatprep.subr.bf16.mxu0 %v939
  %1323 = vmatpush1.bf16.msra.mxu0 %v938
  %1324 = vmatprep.subr.bf16.mxu0 %v941
  %1325 = vmatpush1.bf16.msra.mxu0 %v940
  %1326 = vmatprep.subr.bf16.mxu0 %v943
  %1327 = vmatpush1.bf16.msra.mxu0 %v942
  %1328 = vmatprep.subr.bf16.mxu0 %v945
  %1329 = vmatpush1.bf16.msra.mxu0 %v944
  %1330 = vmatprep.subr.bf16.mxu0 %v947
  %1331 = vmatpush1.bf16.msra.mxu0 %v946
  %1332 = vmatprep.subr.bf16.mxu0 %v949
  %1333 = vmatpush1.bf16.msra.mxu0 %v948
  %1334 = vmatprep.subr.bf16.mxu0 %v951
  %1335 = vmatpush1.bf16.msra.mxu0 %v950
  %1336 = vmatprep.subr.bf16.mxu0 %v953
  %1337 = vmatpush1.bf16.msra.mxu0 %v952
  %1338 = vmatprep.subr.bf16.mxu0 %v955
  %1339 = vmatpush1.bf16.msra.mxu0 %v954
  %1340 = vmatprep.subr.bf16.mxu0 %v957
  %1341 = vmatpush1.bf16.msra.mxu0 %v956
  %1342 = vmatprep.subr.bf16.mxu0 %v959
  %1343 = vmatpush1.bf16.msra.mxu0 %v958
  %1344 = vmatprep.subr.bf16.mxu0 %v961
  %1345 = vmatpush1.bf16.msra.mxu0 %v960
  %1346 = vmatprep.subr.bf16.mxu0 %v963
  %1347 = vmatpush1.bf16.msra.mxu0 %v962
  %1348 = vmatprep.subr.bf16.mxu0 %v965
  %1349 = vmatpush1.bf16.msra.mxu0 %v964
  %1350 = vmatprep.subr.bf16.mxu0 %v967
  %1351 = vmatpush1.bf16.msra.mxu0 %v966
  %1352 = vmatprep.subr.bf16.mxu0 %v969
  %1353 = vmatpush1.bf16.msra.mxu0 %v968
  %1354 = vmatprep.mubr.bf16.mxu0 %v315
  %1355 = vmatmul.mubr.bf16.gmra.mrb[0].mxu0 %v314
  %v1356 = vpop.f32.mrb[0].mxu0
  %v1357 = vadd.f32 %v235, %v1356
  %v1358 = vpop.f32.mrb[0].mxu0
  %v1359 = vadd.f32 %v239, %v1358
  %v1360 = vpop.f32.mrb[0].mxu0
  %v1361 = vadd.f32 %v235, %v1360
  %v1362 = vpop.f32.mrb[0].mxu0
  %v1363 = vadd.f32 %v239, %v1362
  %1364 = vmatprep.mubr.bf16.mxu0 %v327
  %1365 = vmatmul.mubr.bf16.gmra.mrb[0].mxu0 %v326
  %v1366 = vpop.f32.mrb[0].mxu0
  %v1367 = vadd.f32 %v235, %v1366
  %v1368 = vpop.f32.mrb[0].mxu0
  %v1369 = vadd.f32 %v239, %v1368
  %v1370 = vpop.f32.mrb[0].mxu0
  %v1371 = vadd.f32 %v235, %v1370
  %v1372 = vpop.f32.mrb[0].mxu0
  %v1373 = vadd.f32 %v239, %v1372
  %1374 = vdwg.mxu0
  %1375 = vmatprep.subr.bf16.mxu0 %v971
  %1376 = vmatpush1.bf16.msra.mxu0 %v970
  %1377 = vmatprep.subr.bf16.mxu0 %v973
  %1378 = vmatpush1.bf16.msra.mxu0 %v972
  %1379 = vmatprep.subr.bf16.mxu0 %v975
  %1380 = vmatpush1.bf16.msra.mxu0 %v974
  %1381 = vmatprep.subr.bf16.mxu0 %v977
  %1382 = vmatpush1.bf16.msra.mxu0 %v976
  %1383 = vmatprep.subr.bf16.mxu0 %v979
  %1384 = vmatpush1.bf16.msra.mxu0 %v978
  %1385 = vmatprep.subr.bf16.mxu0 %v981
  %1386 = vmatpush1.bf16.msra.mxu0 %v980
  %1387 = vmatprep.subr.bf16.mxu0 %v983
  %1388 = vmatpush1.bf16.msra.mxu0 %v982
  %1389 = vmatprep.subr.bf16.mxu0 %v985
  %1390 = vmatpush1.bf16.msra.mxu0 %v984
  %1391 = vmatprep.subr.bf16.mxu0 %v987
  %1392 = vmatpush1.bf16.msra.mxu0 %v986
  %1393 = vmatprep.subr.bf16.mxu0 %v989
  %1394 = vmatpush1.bf16.msra.mxu0 %v988
  %1395 = vmatprep.subr.bf16.mxu0 %v991
  %1396 = vmatpush1.bf16.msra.mxu0 %v990
  %1397 = vmatprep.subr.bf16.mxu0 %v993
  %1398 = vmatpush1.bf16.msra.mxu0 %v992
  %1399 = vmatprep.subr.bf16.mxu0 %v995
  %1400 = vmatpush1.bf16.msra.mxu0 %v994
  %1401 = vmatprep.subr.bf16.mxu0 %v997
  %1402 = vmatpush1.bf16.msra.mxu0 %v996
  %1403 = vmatprep.subr.bf16.mxu0 %v999
  %1404 = vmatpush1.bf16.msra.mxu0 %v998
  %1405 = vmatprep.subr.bf16.mxu0 %v1001
  %1406 = vmatpush1.bf16.msra.mxu0 %v1000
  %1407 = vmatprep.mubr.bf16.mxu0 %v317
  %1408 = vmatmul.mubr.bf16.gmra.mrb[0].mxu0 %v316
  %v1409 = vpop.f32.mrb[0].mxu0
  %v1410 = vadd.f32 %v1357, %v1409
  %v1411 = vpop.f32.mrb[0].mxu0
  %v1412 = vadd.f32 %v1359, %v1411
  %v1413 = vpop.f32.mrb[0].mxu0
  %v1414 = vadd.f32 %v1361, %v1413
  %v1415 = vpop.f32.mrb[0].mxu0
  %v1416 = vadd.f32 %v1363, %v1415
  %1417 = vmatprep.mubr.bf16.mxu0 %v329
  %1418 = vmatmul.mubr.bf16.gmra.mrb[0].mxu0 %v328
  %v1419 = vpop.f32.mrb[0].mxu0
  %v1420 = vadd.f32 %v1367, %v1419
  %v1421 = vpop.f32.mrb[0].mxu0
  %v1422 = vadd.f32 %v1369, %v1421
  %v1423 = vpop.f32.mrb[0].mxu0
  %v1424 = vadd.f32 %v1371, %v1423
  %v1425 = vpop.f32.mrb[0].mxu0
  %v1426 = vadd.f32 %v1373, %v1425
  %1427 = vdwg.mxu0
  %1428 = vmatprep.subr.bf16.mxu0 %v1003
  %1429 = vmatpush1.bf16.msra.mxu0 %v1002
  %1430 = vmatprep.subr.bf16.mxu0 %v1005
  %1431 = vmatpush1.bf16.msra.mxu0 %v1004
  %1432 = vmatprep.subr.bf16.mxu0 %v1007
  %1433 = vmatpush1.bf16.msra.mxu0 %v1006
  %1434 = vmatprep.subr.bf16.mxu0 %v1009
  %1435 = vmatpush1.bf16.msra.mxu0 %v1008
  %1436 = vmatprep.subr.bf16.mxu0 %v1011
  %1437 = vmatpush1.bf16.msra.mxu0 %v1010
  %1438 = vmatprep.subr.bf16.mxu0 %v1013
  %1439 = vmatpush1.bf16.msra.mxu0 %v1012
  %1440 = vmatprep.subr.bf16.mxu0 %v1015
  %1441 = vmatpush1.bf16.msra.mxu0 %v1014
  %1442 = vmatprep.subr.bf16.mxu0 %v1017
  %1443 = vmatpush1.bf16.msra.mxu0 %v1016
  %1444 = vmatprep.subr.bf16.mxu0 %v1019
  %1445 = vmatpush1.bf16.msra.mxu0 %v1018
  %1446 = vmatprep.subr.bf16.mxu0 %v1021
  %1447 = vmatpush1.bf16.msra.mxu0 %v1020
  %1448 = vmatprep.subr.bf16.mxu0 %v1023
  %1449 = vmatpush1.bf16.msra.mxu0 %v1022
  %1450 = vmatprep.subr.bf16.mxu0 %v1025
  %1451 = vmatpush1.bf16.msra.mxu0 %v1024
  %1452 = vmatprep.subr.bf16.mxu0 %v1027
  %1453 = vmatpush1.bf16.msra.mxu0 %v1026
  %1454 = vmatprep.subr.bf16.mxu0 %v1029
  %1455 = vmatpush1.bf16.msra.mxu0 %v1028
  %1456 = vmatprep.subr.bf16.mxu0 %v1031
  %1457 = vmatpush1.bf16.msra.mxu0 %v1030
  %1458 = vmatprep.subr.bf16.mxu0 %v1033
  %1459 = vmatpush1.bf16.msra.mxu0 %v1032
  %1460 = vmatprep.mubr.bf16.mxu0 %v319
  %1461 = vmatmul.mubr.bf16.gmra.mrb[0].mxu0 %v318
  %v1462 = vpop.f32.mrb[0].mxu0
  %v1463 = vadd.f32 %v1410, %v1462
  %v1464 = vpop.f32.mrb[0].mxu0
  %v1465 = vadd.f32 %v1412, %v1464
  %v1466 = vpop.f32.mrb[0].mxu0
  %v1467 = vadd.f32 %v1414, %v1466
  %v1468 = vpop.f32.mrb[0].mxu0
  %v1469 = vadd.f32 %v1416, %v1468
  %1470 = vmatprep.mubr.bf16.mxu0 %v331
  %1471 = vmatmul.mubr.bf16.gmra.mrb[0].mxu0 %v330
  %v1472 = vpop.f32.mrb[0].mxu0
  %v1473 = vadd.f32 %v1420, %v1472
  %v1474 = vpop.f32.mrb[0].mxu0
  %v1475 = vadd.f32 %v1422, %v1474
  %v1476 = vpop.f32.mrb[0].mxu0
  %v1477 = vadd.f32 %v1424, %v1476
  %v1478 = vpop.f32.mrb[0].mxu0
  %v1479 = vadd.f32 %v1426, %v1478
  %1480 = vdwg.mxu0
  %1481 = vmatprep.subr.bf16.mxu0 %v1035
  %1482 = vmatpush1.bf16.msra.mxu0 %v1034
  %1483 = vmatprep.subr.bf16.mxu0 %v1037
  %1484 = vmatpush1.bf16.msra.mxu0 %v1036
  %1485 = vmatprep.subr.bf16.mxu0 %v1039
  %1486 = vmatpush1.bf16.msra.mxu0 %v1038
  %1487 = vmatprep.subr.bf16.mxu0 %v1041
  %1488 = vmatpush1.bf16.msra.mxu0 %v1040
  %1489 = vmatprep.subr.bf16.mxu0 %v1043
  %1490 = vmatpush1.bf16.msra.mxu0 %v1042
  %1491 = vmatprep.subr.bf16.mxu0 %v1045
  %1492 = vmatpush1.bf16.msra.mxu0 %v1044
  %1493 = vmatprep.subr.bf16.mxu0 %v1047
  %1494 = vmatpush1.bf16.msra.mxu0 %v1046
  %1495 = vmatprep.subr.bf16.mxu0 %v1049
  %1496 = vmatpush1.bf16.msra.mxu0 %v1048
  %1497 = vmatprep.subr.bf16.mxu0 %v1051
  %1498 = vmatpush1.bf16.msra.mxu0 %v1050
  %1499 = vmatprep.subr.bf16.mxu0 %v1053
  %1500 = vmatpush1.bf16.msra.mxu0 %v1052
  %1501 = vmatprep.subr.bf16.mxu0 %v1055
  %1502 = vmatpush1.bf16.msra.mxu0 %v1054
  %1503 = vmatprep.subr.bf16.mxu0 %v1057
  %1504 = vmatpush1.bf16.msra.mxu0 %v1056
  %1505 = vmatprep.subr.bf16.mxu0 %v1059
  %1506 = vmatpush1.bf16.msra.mxu0 %v1058
  %1507 = vmatprep.subr.bf16.mxu0 %v1061
  %1508 = vmatpush1.bf16.msra.mxu0 %v1060
  %1509 = vmatprep.subr.bf16.mxu0 %v1063
  %1510 = vmatpush1.bf16.msra.mxu0 %v1062
  %1511 = vmatprep.subr.bf16.mxu0 %v1065
  %1512 = vmatpush1.bf16.msra.mxu0 %v1064
  %1513 = vmatprep.mubr.bf16.mxu0 %v321
  %1514 = vmatmul.mubr.bf16.gmra.mrb[0].mxu0 %v320
  %v1515 = vpop.f32.mrb[0].mxu0
  %v1516 = vadd.f32 %v1463, %v1515
  %v1517 = vpop.f32.mrb[0].mxu0
  %v1518 = vadd.f32 %v1465, %v1517
  %v1519 = vpop.f32.mrb[0].mxu0
  %v1520 = vadd.f32 %v1467, %v1519
  %v1521 = vpop.f32.mrb[0].mxu0
  %v1522 = vadd.f32 %v1469, %v1521
  %1523 = vmatprep.mubr.bf16.mxu0 %v333
  %1524 = vmatmul.mubr.bf16.gmra.mrb[0].mxu0 %v332
  %v1525 = vpop.f32.mrb[0].mxu0
  %v1526 = vadd.f32 %v1473, %v1525
  %v1527 = vpop.f32.mrb[0].mxu0
  %v1528 = vadd.f32 %v1475, %v1527
  %v1529 = vpop.f32.mrb[0].mxu0
  %v1530 = vadd.f32 %v1477, %v1529
  %v1531 = vpop.f32.mrb[0].mxu0
  %v1532 = vadd.f32 %v1479, %v1531
  %1533 = vdwg.mxu0
  %1534 = vmatprep.subr.bf16.mxu0 %v1067
  %1535 = vmatpush1.bf16.msra.mxu0 %v1066
  %1536 = vmatprep.subr.bf16.mxu0 %v1069
  %1537 = vmatpush1.bf16.msra.mxu0 %v1068
  %1538 = vmatprep.subr.bf16.mxu0 %v1071
  %1539 = vmatpush1.bf16.msra.mxu0 %v1070
  %1540 = vmatprep.subr.bf16.mxu0 %v1073
  %1541 = vmatpush1.bf16.msra.mxu0 %v1072
  %1542 = vmatprep.subr.bf16.mxu0 %v1075
  %1543 = vmatpush1.bf16.msra.mxu0 %v1074
  %1544 = vmatprep.subr.bf16.mxu0 %v1077
  %1545 = vmatpush1.bf16.msra.mxu0 %v1076
  %1546 = vmatprep.subr.bf16.mxu0 %v1079
  %1547 = vmatpush1.bf16.msra.mxu0 %v1078
  %1548 = vmatprep.subr.bf16.mxu0 %v1081
  %1549 = vmatpush1.bf16.msra.mxu0 %v1080
  %1550 = vmatprep.subr.bf16.mxu0 %v1083
  %1551 = vmatpush1.bf16.msra.mxu0 %v1082
  %1552 = vmatprep.subr.bf16.mxu0 %v1085
  %1553 = vmatpush1.bf16.msra.mxu0 %v1084
  %1554 = vmatprep.subr.bf16.mxu0 %v1087
  %1555 = vmatpush1.bf16.msra.mxu0 %v1086
  %1556 = vmatprep.subr.bf16.mxu0 %v1089
  %1557 = vmatpush1.bf16.msra.mxu0 %v1088
  %1558 = vmatprep.subr.bf16.mxu0 %v1091
  %1559 = vmatpush1.bf16.msra.mxu0 %v1090
  %1560 = vmatprep.subr.bf16.mxu0 %v1093
  %1561 = vmatpush1.bf16.msra.mxu0 %v1092
  %1562 = vmatprep.subr.bf16.mxu0 %v1095
  %1563 = vmatpush1.bf16.msra.mxu0 %v1094
  %1564 = vmatprep.subr.bf16.mxu0 %v1097
  %1565 = vmatpush1.bf16.msra.mxu0 %v1096
  %1566 = vmatprep.mubr.bf16.mxu0 %v323
  %1567 = vmatmul.mubr.bf16.gmra.mrb[0].mxu0 %v322
  %v1568 = vpop.f32.mrb[0].mxu0
  %v1569 = vadd.f32 %v1516, %v1568
  %v1570 = vpop.f32.mrb[0].mxu0
  %v1571 = vadd.f32 %v1518, %v1570
  %v1572 = vpop.f32.mrb[0].mxu0
  %v1573 = vadd.f32 %v1520, %v1572
  %v1574 = vpop.f32.mrb[0].mxu0
  %v1575 = vadd.f32 %v1522, %v1574
  %1576 = vmatprep.mubr.bf16.mxu0 %v335
  %1577 = vmatmul.mubr.bf16.gmra.mrb[0].mxu0 %v334
  %v1578 = vpop.f32.mrb[0].mxu0
  %v1579 = vadd.f32 %v1526, %v1578
  %v1580 = vpop.f32.mrb[0].mxu0
  %v1581 = vadd.f32 %v1528, %v1580
  %v1582 = vpop.f32.mrb[0].mxu0
  %v1583 = vadd.f32 %v1530, %v1582
  %v1584 = vpop.f32.mrb[0].mxu0
  %v1585 = vadd.f32 %v1532, %v1584
  %1586 = vdwg.mxu0
  %1587 = vmatprep.subr.bf16.mxu0 %v1099
  %1588 = vmatpush1.bf16.msra.mxu0 %v1098
  %1589 = vmatprep.subr.bf16.mxu0 %v1101
  %1590 = vmatpush1.bf16.msra.mxu0 %v1100
  %1591 = vmatprep.subr.bf16.mxu0 %v1103
  %1592 = vmatpush1.bf16.msra.mxu0 %v1102
  %1593 = vmatprep.subr.bf16.mxu0 %v1105
  %1594 = vmatpush1.bf16.msra.mxu0 %v1104
  %1595 = vmatprep.subr.bf16.mxu0 %v1107
  %1596 = vmatpush1.bf16.msra.mxu0 %v1106
  %1597 = vmatprep.subr.bf16.mxu0 %v1109
  %1598 = vmatpush1.bf16.msra.mxu0 %v1108
  %1599 = vmatprep.subr.bf16.mxu0 %v1111
  %1600 = vmatpush1.bf16.msra.mxu0 %v1110
  %1601 = vmatprep.subr.bf16.mxu0 %v1113
  %1602 = vmatpush1.bf16.msra.mxu0 %v1112
  %1603 = vmatprep.subr.bf16.mxu0 %v1115
  %1604 = vmatpush1.bf16.msra.mxu0 %v1114
  %1605 = vmatprep.subr.bf16.mxu0 %v1117
  %1606 = vmatpush1.bf16.msra.mxu0 %v1116
  %1607 = vmatprep.subr.bf16.mxu0 %v1119
  %1608 = vmatpush1.bf16.msra.mxu0 %v1118
  %1609 = vmatprep.subr.bf16.mxu0 %v1121
  %1610 = vmatpush1.bf16.msra.mxu0 %v1120
  %1611 = vmatprep.subr.bf16.mxu0 %v1123
  %1612 = vmatpush1.bf16.msra.mxu0 %v1122
  %1613 = vmatprep.subr.bf16.mxu0 %v1125
  %1614 = vmatpush1.bf16.msra.mxu0 %v1124
  %1615 = vmatprep.subr.bf16.mxu0 %v1127
  %1616 = vmatpush1.bf16.msra.mxu0 %v1126
  %1617 = vmatprep.subr.bf16.mxu0 %v1129
  %1618 = vmatpush1.bf16.msra.mxu0 %v1128
  %1619 = vmatprep.mubr.bf16.mxu0 %v325
  %1620 = vmatmul.mubr.bf16.gmra.mrb[0].mxu0 %v324
  %v1621 = vpop.f32.mrb[0].mxu0
  %v1622 = vadd.f32 %v1569, %v1621
  %v1623 = vpop.f32.mrb[0].mxu0
  %v1624 = vadd.f32 %v1571, %v1623
  %v1625 = vpop.f32.mrb[0].mxu0
  %v1626 = vadd.f32 %v1573, %v1625
  %v1627 = vpop.f32.mrb[0].mxu0
  %v1628 = vadd.f32 %v1575, %v1627
  %1629 = vmatprep.mubr.bf16.mxu0 %v337
  %1630 = vmatmul.mubr.bf16.gmra.mrb[0].mxu0 %v336
  %v1631 = vpop.f32.mrb[0].mxu0
  %v1632 = vadd.f32 %v1579, %v1631
  %v1633 = vpop.f32.mrb[0].mxu0
  %v1634 = vadd.f32 %v1581, %v1633
  %v1635 = vpop.f32.mrb[0].mxu0
  %v1636 = vadd.f32 %v1583, %v1635
  %v1637 = vpop.f32.mrb[0].mxu0
  %v1638 = vadd.f32 %v1585, %v1637
  %1639 = vdwg.mxu0
  %v1640 = vmax.f32 %v1622, 0.0
  %v1641 = vmax.f32 %v1624, 0.0
  %v1642 = vmax.f32 %v1626, 0.0
  %v1643 = vmax.f32 %v1628, 0.0
  %v1644 = vmax.f32 %v1632, 0.0
  %v1645 = vmax.f32 %v1634, 0.0
  %v1646 = vmax.f32 %v1636, 0.0
  %v1647 = vmax.f32 %v1638, 0.0
  %v1648 = vpack.c.bf16 %v1642, %v1640
  %v1649 = vpack.c.bf16 %v1643, %v1641
  %v1650 = vpack.c.bf16 %v1646, %v1644
  %v1651 = vpack.c.bf16 %v1647, %v1645
  %v1656 = vunpack.c.l.b16 %v1648
  %v1657 = vunpack.c.l.b16 %v1649
  %v1658 = vunpack.c.h.b16 %v1648
  %v1659 = vunpack.c.h.b16 %v1649
  %v1660 = vunpack.c.l.b16 %v1650
  %v1661 = vunpack.c.l.b16 %v1651
  %v1662 = vunpack.c.h.b16 %v1650
  %v1663 = vunpack.c.h.b16 %v1651
  %v1664 = vpack.c.b16 %v1657, %v1656
  %v1665 = vpack.c.b16 %v1659, %v1658
  %v1666 = vpack.c.b16 %v1661, %v1660
  %v1667 = vpack.c.b16 %v1663, %v1662
  %1672 = vst [vmem:[%s3] sm:$0xff] %v1664
  %1673 = vst [vmem:[%s3 + $0x8] sm:$0xff] %v1665
  %1674 = vst [vmem:[%s3 + $0x10] sm:$0xff] %v1666
  %1675 = vst [vmem:[%s3 + $0x18] sm:$0xff] %v1667
  // Predicated region
  $region14: #{mnih2015_mh_forward.5} parent=0 // pred_check
    _
  $region15: #{mnih2015_mh_forward.5} parent=0 // pred_check_branch
    %1677 = sbr.rel (0) target = $region17
  $region16: #{mnih2015_mh_forward.5} parent=0 // pred_region
    _
  $region17: #{mnih2015_mh_forward.5} parent=0 // pred_fallthru
    _
  // Predicated region
  $region18: #{mnih2015_mh_forward.5} parent=0 // pred_check
    _
  $region19: #{mnih2015_mh_forward.5} parent=0 // pred_check_branch
    %1679 = sbr.rel (0) target = $region21
  $region20: #{mnih2015_mh_forward.5} parent=0 // pred_region
    _
  $region21: #{mnih2015_mh_forward.5} parent=0 // pred_fallthru
    _

// kernel: mnih2015_mh_forward.6
$region0: #{mnih2015_mh_forward.6}
  #allocation0 [shape = 'u32[]', space=smem, size = 0x4, offset = 0x4, fixed_abs, tag = 'smem constant byte address 0x4 - core index']
  #allocation1 [shape = 'u32[144,128]{1,0:T(1,128)}', space=vmem, size = 0x12000, scoped, tag = 'internal scratch']
  %s0 = inlined_call_operand.vmem [shape: bf16[16,1728], index: 0, kind: input, shape index: {}]
  %s1 = inlined_call_operand.vmem [shape: bf16[1728,256], index: 1, kind: input, shape index: {}]
  %s2 = inlined_call_operand.vmem [shape: f32[1,256], index: 2, kind: input, shape index: {}]
  %s3 = inlined_call_operand.vmem [shape: bf16[16,256], index: 3, kind: output, shape index: {}]
  %s4 = sld [smem:[#allocation0]]
  $region22: #{mnih2015_mh_forward.6} parent=0
    _
  %s6 = ssub.s32 1, %s4
  %s7 = scalar_select 0, %s6, %s4
  // Predicated region
  $region2: #{mnih2015_mh_forward.6} parent=0 // pred_check
    _
  $region3: #{mnih2015_mh_forward.6} parent=0 // pred_check_branch
    %9 = sbr.rel (0) target = $region5
  $region4: #{mnih2015_mh_forward.6} parent=0 // pred_region
    _
  $region5: #{mnih2015_mh_forward.6} parent=0 // pred_fallthru
    _
  // Predicated region
  $region6: #{mnih2015_mh_forward.6} parent=0 // pred_check
    _
  $region7: #{mnih2015_mh_forward.6} parent=0 // pred_check_branch
    %11 = sbr.rel (0) target = $region9
  $region8: #{mnih2015_mh_forward.6} parent=0 // pred_region
    _
  $region9: #{mnih2015_mh_forward.6} parent=0 // pred_fallthru
    _
  // Predicated region
  $region10: #{mnih2015_mh_forward.6} parent=0 // pred_check
    _
  $region11: #{mnih2015_mh_forward.6} parent=0 // pred_check_branch
    %13 = sbr.rel (0) target = $region13
  $region12: #{mnih2015_mh_forward.6} parent=0 // pred_region
    _
  $region13: #{mnih2015_mh_forward.6} parent=0 // pred_fallthru
    _
  %v15 = vld [vmem:[%s0] sm:$0xff]
  %v16 = vld [vmem:[%s0 + $0x8] sm:$0xff]
  %v17 = vld [vmem:[%s0 + $0x10] sm:$0xff]
  %v18 = vld [vmem:[%s0 + $0x18] sm:$0xff]
  %v19 = vld [vmem:[%s0 + $0x20] sm:$0xff]
  %v20 = vld [vmem:[%s0 + $0x28] sm:$0xff]
  %v21 = vld [vmem:[%s0 + $0x30] sm:$0xff]
  %v22 = vld [vmem:[%s0 + $0x38] sm:$0xff]
  %v23 = vld [vmem:[%s0 + $0x40] sm:$0xff]
  %v24 = vld [vmem:[%s0 + $0x48] sm:$0xff]
  %v25 = vld [vmem:[%s0 + $0x50] sm:$0xff]
  %v26 = vld [vmem:[%s0 + $0x58] sm:$0xff]
  %v27 = vld [vmem:[%s0 + $0x60] sm:$0xff]
  %v28 = vld [vmem:[%s0 + $0x68] sm:$0xff]
  %v29 = vld [vmem:[%s1] sm:$0xff]
  %v30 = vld [vmem:[%s1 + $0x8] sm:$0xff]
  %v31 = vld [vmem:[%s1 + $0x10] sm:$0xff]
  %v32 = vld [vmem:[%s1 + $0x18] sm:$0xff]
  %v33 = vld [vmem:[%s1 + $0x20] sm:$0xff]
  %v34 = vld [vmem:[%s1 + $0x28] sm:$0xff]
  %v35 = vld [vmem:[%s1 + $0x30] sm:$0xff]
  %v36 = vld [vmem:[%s1 + $0x38] sm:$0xff]
  %v37 = vld [vmem:[%s1 + $0x40] sm:$0xff]
  %v38 = vld [vmem:[%s1 + $0x48] sm:$0xff]
  %v39 = vld [vmem:[%s1 + $0x50] sm:$0xff]
  %v40 = vld [vmem:[%s1 + $0x58] sm:$0xff]
  %v41 = vld [vmem:[%s1 + $0x60] sm:$0xff]
  %v42 = vld [vmem:[%s1 + $0x68] sm:$0xff]
  %v43 = vld [vmem:[%s1 + $0x70] sm:$0xff]
  %v44 = vld [vmem:[%s1 + $0x78] sm:$0xff]
  %v45 = vld [vmem:[%s1 + $0x80] sm:$0xff]
  %v46 = vld [vmem:[%s1 + $0x88] sm:$0xff]
  %v47 = vld [vmem:[%s1 + $0x90] sm:$0xff]
  %v48 = vld [vmem:[%s1 + $0x98] sm:$0xff]
  %v49 = vld [vmem:[%s1 + $0xa0] sm:$0xff]
  %v50 = vld [vmem:[%s1 + $0xa8] sm:$0xff]
  %v51 = vld [vmem:[%s1 + $0xb0] sm:$0xff]
  %v52 = vld [vmem:[%s1 + $0xb8] sm:$0xff]
  %v53 = vld [vmem:[%s1 + $0xc0] sm:$0xff]
  %v54 = vld [vmem:[%s1 + $0xc8] sm:$0xff]
  %v55 = vld [vmem:[%s1 + $0xd0] sm:$0xff]
  %v56 = vld [vmem:[%s1 + $0xd8] sm:$0xff]
  %v57 = vld [vmem:[%s1 + $0xe0] sm:$0xff]
  %v58 = vld [vmem:[%s1 + $0xe8] sm:$0xff]
  %v59 = vld [vmem:[%s1 + $0xf0] sm:$0xff]
  %v60 = vld [vmem:[%s1 + $0xf8] sm:$0xff]
  %v61 = vld [vmem:[%s1 + $0x100] sm:$0xff]
  %v62 = vld [vmem:[%s1 + $0x108] sm:$0xff]
  %v63 = vld [vmem:[%s1 + $0x110] sm:$0xff]
  %v64 = vld [vmem:[%s1 + $0x118] sm:$0xff]
  %v65 = vld [vmem:[%s1 + $0x120] sm:$0xff]
  %v66 = vld [vmem:[%s1 + $0x128] sm:$0xff]
  %v67 = vld [vmem:[%s1 + $0x130] sm:$0xff]
  %v68 = vld [vmem:[%s1 + $0x138] sm:$0xff]
  %v69 = vld [vmem:[%s1 + $0x140] sm:$0xff]
  %v70 = vld [vmem:[%s1 + $0x148] sm:$0xff]
  %v71 = vld [vmem:[%s1 + $0x150] sm:$0xff]
  %v72 = vld [vmem:[%s1 + $0x158] sm:$0xff]
  %v73 = vld [vmem:[%s1 + $0x160] sm:$0xff]
  %v74 = vld [vmem:[%s1 + $0x168] sm:$0xff]
  %v75 = vld [vmem:[%s1 + $0x170] sm:$0xff]
  %v76 = vld [vmem:[%s1 + $0x178] sm:$0xff]
  %v77 = vld [vmem:[%s1 + $0x180] sm:$0xff]
  %v78 = vld [vmem:[%s1 + $0x188] sm:$0xff]
  %v79 = vld [vmem:[%s1 + $0x190] sm:$0xff]
  %v80 = vld [vmem:[%s1 + $0x198] sm:$0xff]
  %v81 = vld [vmem:[%s1 + $0x1a0] sm:$0xff]
  %v82 = vld [vmem:[%s1 + $0x1a8] sm:$0xff]
  %v83 = vld [vmem:[%s1 + $0x1b0] sm:$0xff]
  %v84 = vld [vmem:[%s1 + $0x1b8] sm:$0xff]
  %v85 = vld [vmem:[%s1 + $0x1c0] sm:$0xff]
  %v86 = vld [vmem:[%s1 + $0x1c8] sm:$0xff]
  %v87 = vld [vmem:[%s1 + $0x1d0] sm:$0xff]
  %v88 = vld [vmem:[%s1 + $0x1d8] sm:$0xff]
  %v89 = vld [vmem:[%s1 + $0x1e0] sm:$0xff]
  %v90 = vld [vmem:[%s1 + $0x1e8] sm:$0xff]
  %v91 = vld [vmem:[%s1 + $0x1f0] sm:$0xff]
  %v92 = vld [vmem:[%s1 + $0x1f8] sm:$0xff]
  %v93 = vld [vmem:[%s1 + $0x200] sm:$0xff]
  %v94 = vld [vmem:[%s1 + $0x208] sm:$0xff]
  %v95 = vld [vmem:[%s1 + $0x210] sm:$0xff]
  %v96 = vld [vmem:[%s1 + $0x218] sm:$0xff]
  %v97 = vld [vmem:[%s1 + $0x220] sm:$0xff]
  %v98 = vld [vmem:[%s1 + $0x228] sm:$0xff]
  %v99 = vld [vmem:[%s1 + $0x230] sm:$0xff]
  %v100 = vld [vmem:[%s1 + $0x238] sm:$0xff]
  %v101 = vld [vmem:[%s1 + $0x240] sm:$0xff]
  %v102 = vld [vmem:[%s1 + $0x248] sm:$0xff]
  %v103 = vld [vmem:[%s1 + $0x250] sm:$0xff]
  %v104 = vld [vmem:[%s1 + $0x258] sm:$0xff]
  %v105 = vld [vmem:[%s1 + $0x260] sm:$0xff]
  %v106 = vld [vmem:[%s1 + $0x268] sm:$0xff]
  %v107 = vld [vmem:[%s1 + $0x270] sm:$0xff]
  %v108 = vld [vmem:[%s1 + $0x278] sm:$0xff]
  %v109 = vld [vmem:[%s1 + $0x280] sm:$0xff]
  %v110 = vld [vmem:[%s1 + $0x288] sm:$0xff]
  %v111 = vld [vmem:[%s1 + $0x290] sm:$0xff]
  %v112 = vld [vmem:[%s1 + $0x298] sm:$0xff]
  %v113 = vld [vmem:[%s1 + $0x2a0] sm:$0xff]
  %v114 = vld [vmem:[%s1 + $0x2a8] sm:$0xff]
  %v115 = vld [vmem:[%s1 + $0x2b0] sm:$0xff]
  %v116 = vld [vmem:[%s1 + $0x2b8] sm:$0xff]
  %v117 = vld [vmem:[%s1 + $0x2c0] sm:$0xff]
  %v118 = vld [vmem:[%s1 + $0x2c8] sm:$0xff]
  %v119 = vld [vmem:[%s1 + $0x2d0] sm:$0xff]
  %v120 = vld [vmem:[%s1 + $0x2d8] sm:$0xff]
  %v121 = vld [vmem:[%s1 + $0x2e0] sm:$0xff]
  %v122 = vld [vmem:[%s1 + $0x2e8] sm:$0xff]
  %v123 = vld [vmem:[%s1 + $0x2f0] sm:$0xff]
  %v124 = vld [vmem:[%s1 + $0x2f8] sm:$0xff]
  %v125 = vld [vmem:[%s1 + $0x300] sm:$0xff]
  %v126 = vld [vmem:[%s1 + $0x308] sm:$0xff]
  %v127 = vld [vmem:[%s1 + $0x310] sm:$0xff]
  %v128 = vld [vmem:[%s1 + $0x318] sm:$0xff]
  %v129 = vld [vmem:[%s1 + $0x320] sm:$0xff]
  %v130 = vld [vmem:[%s1 + $0x328] sm:$0xff]
  %v131 = vld [vmem:[%s1 + $0x330] sm:$0xff]
  %v132 = vld [vmem:[%s1 + $0x338] sm:$0xff]
  %v133 = vld [vmem:[%s1 + $0x340] sm:$0xff]
  %v134 = vld [vmem:[%s1 + $0x348] sm:$0xff]
  %v135 = vld [vmem:[%s1 + $0x350] sm:$0xff]
  %v136 = vld [vmem:[%s1 + $0x358] sm:$0xff]
  %v137 = vld [vmem:[%s1 + $0x360] sm:$0xff]
  %v138 = vld [vmem:[%s1 + $0x368] sm:$0xff]
  %v139 = vld [vmem:[%s1 + $0x370] sm:$0xff]
  %v140 = vld [vmem:[%s1 + $0x378] sm:$0xff]
  %v141 = vld [vmem:[%s1 + $0x380] sm:$0xff]
  %v142 = vld [vmem:[%s1 + $0x388] sm:$0xff]
  %v143 = vld [vmem:[%s1 + $0x390] sm:$0xff]
  %v144 = vld [vmem:[%s1 + $0x398] sm:$0xff]
  %v145 = vld [vmem:[%s1 + $0x3a0] sm:$0xff]
  %v146 = vld [vmem:[%s1 + $0x3a8] sm:$0xff]
  %v147 = vld [vmem:[%s1 + $0x3b0] sm:$0xff]
  %v148 = vld [vmem:[%s1 + $0x3b8] sm:$0xff]
  %v149 = vld [vmem:[%s1 + $0x3c0] sm:$0xff]
  %v150 = vld [vmem:[%s1 + $0x3c8] sm:$0xff]
  %v151 = vld [vmem:[%s1 + $0x3d0] sm:$0xff]
  %v152 = vld [vmem:[%s1 + $0x3d8] sm:$0xff]
  %v153 = vld [vmem:[%s1 + $0x3e0] sm:$0xff]
  %v154 = vld [vmem:[%s1 + $0x3e8] sm:$0xff]
  %v155 = vld [vmem:[%s1 + $0x3f0] sm:$0xff]
  %v156 = vld [vmem:[%s1 + $0x3f8] sm:$0xff]
  %v157 = vld [vmem:[%s1 + $0x400] sm:$0xff]
  %v158 = vld [vmem:[%s1 + $0x408] sm:$0xff]
  %v159 = vld [vmem:[%s1 + $0x410] sm:$0xff]
  %v160 = vld [vmem:[%s1 + $0x418] sm:$0xff]
  %v161 = vld [vmem:[%s1 + $0x420] sm:$0xff]
  %v162 = vld [vmem:[%s1 + $0x428] sm:$0xff]
  %v163 = vld [vmem:[%s1 + $0x430] sm:$0xff]
  %v164 = vld [vmem:[%s1 + $0x438] sm:$0xff]
  %v165 = vld [vmem:[%s1 + $0x440] sm:$0xff]
  %v166 = vld [vmem:[%s1 + $0x448] sm:$0xff]
  %v167 = vld [vmem:[%s1 + $0x450] sm:$0xff]
  %v168 = vld [vmem:[%s1 + $0x458] sm:$0xff]
  %v169 = vld [vmem:[%s1 + $0x460] sm:$0xff]
  %v170 = vld [vmem:[%s1 + $0x468] sm:$0xff]
  %v171 = vld [vmem:[%s1 + $0x470] sm:$0xff]
  %v172 = vld [vmem:[%s1 + $0x478] sm:$0xff]
  %v173 = vld [vmem:[%s1 + $0x480] sm:$0xff]
  %v174 = vld [vmem:[%s1 + $0x488] sm:$0xff]
  %v175 = vld [vmem:[%s1 + $0x490] sm:$0xff]
  %v176 = vld [vmem:[%s1 + $0x498] sm:$0xff]
  %v177 = vld [vmem:[%s1 + $0x4a0] sm:$0xff]
  %v178 = vld [vmem:[%s1 + $0x4a8] sm:$0xff]
  %v179 = vld [vmem:[%s1 + $0x4b0] sm:$0xff]
  %v180 = vld [vmem:[%s1 + $0x4b8] sm:$0xff]
  %v181 = vld [vmem:[%s1 + $0x4c0] sm:$0xff]
  %v182 = vld [vmem:[%s1 + $0x4c8] sm:$0xff]
  %v183 = vld [vmem:[%s1 + $0x4d0] sm:$0xff]
  %v184 = vld [vmem:[%s1 + $0x4d8] sm:$0xff]
  %v185 = vld [vmem:[%s1 + $0x4e0] sm:$0xff]
  %v186 = vld [vmem:[%s1 + $0x4e8] sm:$0xff]
  %v187 = vld [vmem:[%s1 + $0x4f0] sm:$0xff]
  %v188 = vld [vmem:[%s1 + $0x4f8] sm:$0xff]
  %v189 = vld [vmem:[%s1 + $0x500] sm:$0xff]
  %v190 = vld [vmem:[%s1 + $0x508] sm:$0xff]
  %v191 = vld [vmem:[%s1 + $0x510] sm:$0xff]
  %v192 = vld [vmem:[%s1 + $0x518] sm:$0xff]
  %v193 = vld [vmem:[%s1 + $0x520] sm:$0xff]
  %v194 = vld [vmem:[%s1 + $0x528] sm:$0xff]
  %v195 = vld [vmem:[%s1 + $0x530] sm:$0xff]
  %v196 = vld [vmem:[%s1 + $0x538] sm:$0xff]
  %v197 = vld [vmem:[%s1 + $0x540] sm:$0xff]
  %v198 = vld [vmem:[%s1 + $0x548] sm:$0xff]
  %v199 = vld [vmem:[%s1 + $0x550] sm:$0xff]
  %v200 = vld [vmem:[%s1 + $0x558] sm:$0xff]
  %v201 = vld [vmem:[%s1 + $0x560] sm:$0xff]
  %v202 = vld [vmem:[%s1 + $0x568] sm:$0xff]
  %v203 = vld [vmem:[%s1 + $0x570] sm:$0xff]
  %v204 = vld [vmem:[%s1 + $0x578] sm:$0xff]
  %v205 = vld [vmem:[%s1 + $0x580] sm:$0xff]
  %v206 = vld [vmem:[%s1 + $0x588] sm:$0xff]
  %v207 = vld [vmem:[%s1 + $0x590] sm:$0xff]
  %v208 = vld [vmem:[%s1 + $0x598] sm:$0xff]
  %v209 = vld [vmem:[%s1 + $0x5a0] sm:$0xff]
  %v210 = vld [vmem:[%s1 + $0x5a8] sm:$0xff]
  %v211 = vld [vmem:[%s1 + $0x5b0] sm:$0xff]
  %v212 = vld [vmem:[%s1 + $0x5b8] sm:$0xff]
  %v213 = vld [vmem:[%s1 + $0x5c0] sm:$0xff]
  %v214 = vld [vmem:[%s1 + $0x5c8] sm:$0xff]
  %v215 = vld [vmem:[%s1 + $0x5d0] sm:$0xff]
  %v216 = vld [vmem:[%s1 + $0x5d8] sm:$0xff]
  %v217 = vld [vmem:[%s1 + $0x5e0] sm:$0xff]
  %v218 = vld [vmem:[%s1 + $0x5e8] sm:$0xff]
  %v219 = vld [vmem:[%s1 + $0x5f0] sm:$0xff]
  %v220 = vld [vmem:[%s1 + $0x5f8] sm:$0xff]
  %v221 = vld [vmem:[%s1 + $0x600] sm:$0xff]
  %v222 = vld [vmem:[%s1 + $0x608] sm:$0xff]
  %v223 = vld [vmem:[%s1 + $0x610] sm:$0xff]
  %v224 = vld [vmem:[%s1 + $0x618] sm:$0xff]
  %v225 = vld [vmem:[%s1 + $0x620] sm:$0xff]
  %v226 = vld [vmem:[%s1 + $0x628] sm:$0xff]
  %v227 = vld [vmem:[%s1 + $0x630] sm:$0xff]
  %v228 = vld [vmem:[%s1 + $0x638] sm:$0xff]
  %v229 = vld [vmem:[%s1 + $0x640] sm:$0xff]
  %v230 = vld [vmem:[%s1 + $0x648] sm:$0xff]
  %v231 = vld [vmem:[%s1 + $0x650] sm:$0xff]
  %v232 = vld [vmem:[%s1 + $0x658] sm:$0xff]
  %v233 = vld [vmem:[%s1 + $0x660] sm:$0xff]
  %v234 = vld [vmem:[%s1 + $0x668] sm:$0xff]
  %v235 = vld [vmem:[%s1 + $0x670] sm:$0xff]
  %v236 = vld [vmem:[%s1 + $0x678] sm:$0xff]
  %v237 = vld [vmem:[%s1 + $0x680] sm:$0xff]
  %v238 = vld [vmem:[%s1 + $0x688] sm:$0xff]
  %v239 = vld [vmem:[%s1 + $0x690] sm:$0xff]
  %v240 = vld [vmem:[%s1 + $0x698] sm:$0xff]
  %v241 = vld [vmem:[%s1 + $0x6a0] sm:$0xff]
  %v242 = vld [vmem:[%s1 + $0x6a8] sm:$0xff]
  %v243 = vld [vmem:[%s1 + $0x6b0] sm:$0xff]
  %v244 = vld [vmem:[%s1 + $0x6b8] sm:$0xff]
  %v245 = vld [vmem:[%s2] sm:$0x3]
  %v247 = vlaneseq
  %v248 = vshrl.u32 %v247, 7
  %v249 = vsub.s32 0, %v248
  %v250 = vrot.slane %v245, %v249
  %v251 = vlaneseq
  %v252 = vshrl.u32 %v251, 7
  %v253 = vsub.s32 1, %v252
  %v254 = vrot.slane %v245, %v253
  %v271 = vunpack.c.l.b16 %v15
  %v272 = vunpack.c.h.b16 %v15
  %v273 = vunpack.c.l.b16 %v16
  %v274 = vunpack.c.h.b16 %v16
  %v275 = vunpack.c.l.b16 %v17
  %v276 = vunpack.c.h.b16 %v17
  %v277 = vunpack.c.l.b16 %v18
  %v278 = vunpack.c.h.b16 %v18
  %v279 = vunpack.c.l.b16 %v19
  %v280 = vunpack.c.h.b16 %v19
  %v281 = vunpack.c.l.b16 %v20
  %v282 = vunpack.c.h.b16 %v20
  %v283 = vunpack.c.l.b16 %v21
  %v284 = vunpack.c.h.b16 %v21
  %v285 = vunpack.c.l.b16 %v22
  %v286 = vunpack.c.h.b16 %v22
  %v287 = vunpack.c.l.b16 %v23
  %v288 = vunpack.c.h.b16 %v23
  %v289 = vunpack.c.l.b16 %v24
  %v290 = vunpack.c.h.b16 %v24
  %v291 = vunpack.c.l.b16 %v25
  %v292 = vunpack.c.h.b16 %v25
  %v293 = vunpack.c.l.b16 %v26
  %v294 = vunpack.c.h.b16 %v26
  %v295 = vunpack.c.l.b16 %v27
  %v296 = vunpack.c.h.b16 %v27
  %v297 = vunpack.c.l.b16 %v28
  %v298 = vunpack.c.h.b16 %v28
  %v299 = vpack.c.b16 %v285, %v271
  %v300 = vpack.c.b16 %v286, %v272
  %v301 = vpack.c.b16 %v287, %v273
  %v302 = vpack.c.b16 %v288, %v274
  %v303 = vpack.c.b16 %v289, %v275
  %v304 = vpack.c.b16 %v290, %v276
  %v305 = vpack.c.b16 %v291, %v277
  %v306 = vpack.c.b16 %v292, %v278
  %v307 = vpack.c.b16 %v293, %v279
  %v308 = vpack.c.b16 %v294, %v280
  %v309 = vpack.c.b16 %v295, %v281
  %v310 = vpack.c.b16 %v296, %v282
  %v311 = vpack.c.b16 %v297, %v283
  %v312 = vpack.c.b16 %v298, %v284
  %v542 = vunpack.c.l.b16 %v29
  %v543 = vunpack.c.h.b16 %v29
  %v544 = vunpack.c.l.b16 %v30
  %v545 = vunpack.c.h.b16 %v30
  %v546 = vunpack.c.l.b16 %v31
  %v547 = vunpack.c.h.b16 %v31
  %v548 = vunpack.c.l.b16 %v32
  %v549 = vunpack.c.h.b16 %v32
  %v550 = vunpack.c.l.b16 %v33
  %v551 = vunpack.c.h.b16 %v33
  %v552 = vunpack.c.l.b16 %v34
  %v553 = vunpack.c.h.b16 %v34
  %v554 = vunpack.c.l.b16 %v35
  %v555 = vunpack.c.h.b16 %v35
  %v556 = vunpack.c.l.b16 %v36
  %v557 = vunpack.c.h.b16 %v36
  %v558 = vunpack.c.l.b16 %v37
  %v559 = vunpack.c.h.b16 %v37
  %v560 = vunpack.c.l.b16 %v38
  %v561 = vunpack.c.h.b16 %v38
  %v562 = vunpack.c.l.b16 %v39
  %v563 = vunpack.c.h.b16 %v39
  %v564 = vunpack.c.l.b16 %v40
  %v565 = vunpack.c.h.b16 %v40
  %v566 = vunpack.c.l.b16 %v41
  %v567 = vunpack.c.h.b16 %v41
  %v568 = vunpack.c.l.b16 %v42
  %v569 = vunpack.c.h.b16 %v42
  %v570 = vunpack.c.l.b16 %v43
  %v571 = vunpack.c.h.b16 %v43
  %v572 = vunpack.c.l.b16 %v44
  %v573 = vunpack.c.h.b16 %v44
  %v574 = vunpack.c.l.b16 %v45
  %v575 = vunpack.c.h.b16 %v45
  %v576 = vunpack.c.l.b16 %v46
  %v577 = vunpack.c.h.b16 %v46
  %v578 = vunpack.c.l.b16 %v47
  %v579 = vunpack.c.h.b16 %v47
  %v580 = vunpack.c.l.b16 %v48
  %v581 = vunpack.c.h.b16 %v48
  %v582 = vunpack.c.l.b16 %v49
  %v583 = vunpack.c.h.b16 %v49
  %v584 = vunpack.c.l.b16 %v50
  %v585 = vunpack.c.h.b16 %v50
  %v586 = vunpack.c.l.b16 %v51
  %v587 = vunpack.c.h.b16 %v51
  %v588 = vunpack.c.l.b16 %v52
  %v589 = vunpack.c.h.b16 %v52
  %v590 = vunpack.c.l.b16 %v53
  %v591 = vunpack.c.h.b16 %v53
  %v592 = vunpack.c.l.b16 %v54
  %v593 = vunpack.c.h.b16 %v54
  %v594 = vunpack.c.l.b16 %v55
  %v595 = vunpack.c.h.b16 %v55
  %v596 = vunpack.c.l.b16 %v56
  %v597 = vunpack.c.h.b16 %v56
  %v598 = vunpack.c.l.b16 %v57
  %v599 = vunpack.c.h.b16 %v57
  %v600 = vunpack.c.l.b16 %v58
  %v601 = vunpack.c.h.b16 %v58
  %v602 = vunpack.c.l.b16 %v59
  %v603 = vunpack.c.h.b16 %v59
  %v604 = vunpack.c.l.b16 %v60
  %v605 = vunpack.c.h.b16 %v60
  %v606 = vunpack.c.l.b16 %v61
  %v607 = vunpack.c.h.b16 %v61
  %v608 = vunpack.c.l.b16 %v62
  %v609 = vunpack.c.h.b16 %v62
  %v610 = vunpack.c.l.b16 %v63
  %v611 = vunpack.c.h.b16 %v63
  %v612 = vunpack.c.l.b16 %v64
  %v613 = vunpack.c.h.b16 %v64
  %v614 = vunpack.c.l.b16 %v65
  %v615 = vunpack.c.h.b16 %v65
  %v616 = vunpack.c.l.b16 %v66
  %v617 = vunpack.c.h.b16 %v66
  %v618 = vunpack.c.l.b16 %v67
  %v619 = vunpack.c.h.b16 %v67
  %v620 = vunpack.c.l.b16 %v68
  %v621 = vunpack.c.h.b16 %v68
  %v622 = vunpack.c.l.b16 %v69
  %v623 = vunpack.c.h.b16 %v69
  %v624 = vunpack.c.l.b16 %v70
  %v625 = vunpack.c.h.b16 %v70
  %v626 = vunpack.c.l.b16 %v71
  %v627 = vunpack.c.h.b16 %v71
  %v628 = vunpack.c.l.b16 %v72
  %v629 = vunpack.c.h.b16 %v72
  %v630 = vunpack.c.l.b16 %v73
  %v631 = vunpack.c.h.b16 %v73
  %v632 = vunpack.c.l.b16 %v74
  %v633 = vunpack.c.h.b16 %v74
  %v634 = vunpack.c.l.b16 %v75
  %v635 = vunpack.c.h.b16 %v75
  %v636 = vunpack.c.l.b16 %v76
  %v637 = vunpack.c.h.b16 %v76
  %v638 = vunpack.c.l.b16 %v77
  %v639 = vunpack.c.h.b16 %v77
  %v640 = vunpack.c.l.b16 %v78
  %v641 = vunpack.c.h.b16 %v78
  %v642 = vunpack.c.l.b16 %v79
  %v643 = vunpack.c.h.b16 %v79
  %v644 = vunpack.c.l.b16 %v80
  %v645 = vunpack.c.h.b16 %v80
  %v646 = vunpack.c.l.b16 %v81
  %v647 = vunpack.c.h.b16 %v81
  %v648 = vunpack.c.l.b16 %v82
  %v649 = vunpack.c.h.b16 %v82
  %v650 = vunpack.c.l.b16 %v83
  %v651 = vunpack.c.h.b16 %v83
  %v652 = vunpack.c.l.b16 %v84
  %v653 = vunpack.c.h.b16 %v84
  %v654 = vunpack.c.l.b16 %v85
  %v655 = vunpack.c.h.b16 %v85
  %v656 = vunpack.c.l.b16 %v86
  %v657 = vunpack.c.h.b16 %v86
  %v658 = vunpack.c.l.b16 %v87
  %v659 = vunpack.c.h.b16 %v87
  %v660 = vunpack.c.l.b16 %v88
  %v661 = vunpack.c.h.b16 %v88
  %v662 = vunpack.c.l.b16 %v89
  %v663 = vunpack.c.h.b16 %v89
  %v664 = vunpack.c.l.b16 %v90
  %v665 = vunpack.c.h.b16 %v90
  %v666 = vunpack.c.l.b16 %v91
  %v667 = vunpack.c.h.b16 %v91
  %v668 = vunpack.c.l.b16 %v92
  %v669 = vunpack.c.h.b16 %v92
  %v670 = vunpack.c.l.b16 %v93
  %v671 = vunpack.c.h.b16 %v93
  %v672 = vunpack.c.l.b16 %v94
  %v673 = vunpack.c.h.b16 %v94
  %v674 = vunpack.c.l.b16 %v95
  %v675 = vunpack.c.h.b16 %v95
  %v676 = vunpack.c.l.b16 %v96
  %v677 = vunpack.c.h.b16 %v96
  %v678 = vunpack.c.l.b16 %v97
  %v679 = vunpack.c.h.b16 %v97
  %v680 = vunpack.c.l.b16 %v98
  %v681 = vunpack.c.h.b16 %v98
  %v682 = vunpack.c.l.b16 %v99
  %v683 = vunpack.c.h.b16 %v99
  %v684 = vunpack.c.l.b16 %v100
  %v685 = vunpack.c.h.b16 %v100
  %v686 = vunpack.c.l.b16 %v101
  %v687 = vunpack.c.h.b16 %v101
  %v688 = vunpack.c.l.b16 %v102
  %v689 = vunpack.c.h.b16 %v102
  %v690 = vunpack.c.l.b16 %v103
  %v691 = vunpack.c.h.b16 %v103
  %v692 = vunpack.c.l.b16 %v104
  %v693 = vunpack.c.h.b16 %v104
  %v694 = vunpack.c.l.b16 %v105
  %v695 = vunpack.c.h.b16 %v105
  %v696 = vunpack.c.l.b16 %v106
  %v697 = vunpack.c.h.b16 %v106
  %v698 = vunpack.c.l.b16 %v107
  %v699 = vunpack.c.h.b16 %v107
  %v700 = vunpack.c.l.b16 %v108
  %v701 = vunpack.c.h.b16 %v108
  %v702 = vunpack.c.l.b16 %v109
  %v703 = vunpack.c.h.b16 %v109
  %v704 = vunpack.c.l.b16 %v110
  %v705 = vunpack.c.h.b16 %v110
  %v706 = vunpack.c.l.b16 %v111
  %v707 = vunpack.c.h.b16 %v111
  %v708 = vunpack.c.l.b16 %v112
  %v709 = vunpack.c.h.b16 %v112
  %v710 = vunpack.c.l.b16 %v113
  %v711 = vunpack.c.h.b16 %v113
  %v712 = vunpack.c.l.b16 %v114
  %v713 = vunpack.c.h.b16 %v114
  %v714 = vunpack.c.l.b16 %v115
  %v715 = vunpack.c.h.b16 %v115
  %v716 = vunpack.c.l.b16 %v116
  %v717 = vunpack.c.h.b16 %v116
  %v718 = vunpack.c.l.b16 %v117
  %v719 = vunpack.c.h.b16 %v117
  %v720 = vunpack.c.l.b16 %v118
  %v721 = vunpack.c.h.b16 %v118
  %v722 = vunpack.c.l.b16 %v119
  %v723 = vunpack.c.h.b16 %v119
  %v724 = vunpack.c.l.b16 %v120
  %v725 = vunpack.c.h.b16 %v120
  %v726 = vunpack.c.l.b16 %v121
  %v727 = vunpack.c.h.b16 %v121
  %v728 = vunpack.c.l.b16 %v122
  %v729 = vunpack.c.h.b16 %v122
  %v730 = vunpack.c.l.b16 %v123
  %v731 = vunpack.c.h.b16 %v123
  %v732 = vunpack.c.l.b16 %v124
  %v733 = vunpack.c.h.b16 %v124
  %v734 = vunpack.c.l.b16 %v125
  %v735 = vunpack.c.h.b16 %v125
  %v736 = vunpack.c.l.b16 %v126
  %v737 = vunpack.c.h.b16 %v126
  %v738 = vunpack.c.l.b16 %v127
  %v739 = vunpack.c.h.b16 %v127
  %v740 = vunpack.c.l.b16 %v128
  %v741 = vunpack.c.h.b16 %v128
  %v742 = vunpack.c.l.b16 %v129
  %v743 = vunpack.c.h.b16 %v129
  %v744 = vunpack.c.l.b16 %v130
  %v745 = vunpack.c.h.b16 %v130
  %v746 = vunpack.c.l.b16 %v131
  %v747 = vunpack.c.h.b16 %v131
  %v748 = vunpack.c.l.b16 %v132
  %v749 = vunpack.c.h.b16 %v132
  %v750 = vunpack.c.l.b16 %v133
  %v751 = vunpack.c.h.b16 %v133
  %v752 = vunpack.c.l.b16 %v134
  %v753 = vunpack.c.h.b16 %v134
  %v754 = vunpack.c.l.b16 %v135
  %v755 = vunpack.c.h.b16 %v135
  %v756 = vunpack.c.l.b16 %v136
  %v757 = vunpack.c.h.b16 %v136
  %v758 = vunpack.c.l.b16 %v137
  %v759 = vunpack.c.h.b16 %v137
  %v760 = vunpack.c.l.b16 %v138
  %v761 = vunpack.c.h.b16 %v138
  %v762 = vunpack.c.l.b16 %v139
  %v763 = vunpack.c.h.b16 %v139
  %v764 = vunpack.c.l.b16 %v140
  %v765 = vunpack.c.h.b16 %v140
  %v766 = vunpack.c.l.b16 %v141
  %v767 = vunpack.c.h.b16 %v141
  %v768 = vunpack.c.l.b16 %v142
  %v769 = vunpack.c.h.b16 %v142
  %v770 = vunpack.c.l.b16 %v143
  %v771 = vunpack.c.h.b16 %v143
  %v772 = vunpack.c.l.b16 %v144
  %v773 = vunpack.c.h.b16 %v144
  %v774 = vunpack.c.l.b16 %v145
  %v775 = vunpack.c.h.b16 %v145
  %v776 = vunpack.c.l.b16 %v146
  %v777 = vunpack.c.h.b16 %v146
  %v778 = vunpack.c.l.b16 %v147
  %v779 = vunpack.c.h.b16 %v147
  %v780 = vunpack.c.l.b16 %v148
  %v781 = vunpack.c.h.b16 %v148
  %v782 = vunpack.c.l.b16 %v149
  %v783 = vunpack.c.h.b16 %v149
  %v784 = vunpack.c.l.b16 %v150
  %v785 = vunpack.c.h.b16 %v150
  %v786 = vunpack.c.l.b16 %v151
  %v787 = vunpack.c.h.b16 %v151
  %v788 = vunpack.c.l.b16 %v152
  %v789 = vunpack.c.h.b16 %v152
  %v790 = vunpack.c.l.b16 %v153
  %v791 = vunpack.c.h.b16 %v153
  %v792 = vunpack.c.l.b16 %v154
  %v793 = vunpack.c.h.b16 %v154
  %v794 = vunpack.c.l.b16 %v155
  %v795 = vunpack.c.h.b16 %v155
  %v796 = vunpack.c.l.b16 %v156
  %v797 = vunpack.c.h.b16 %v156
  %v798 = vunpack.c.l.b16 %v157
  %v799 = vunpack.c.h.b16 %v157
  %v800 = vunpack.c.l.b16 %v158
  %v801 = vunpack.c.h.b16 %v158
  %v802 = vunpack.c.l.b16 %v159
  %v803 = vunpack.c.h.b16 %v159
  %v804 = vunpack.c.l.b16 %v160
  %v805 = vunpack.c.h.b16 %v160
  %v806 = vunpack.c.l.b16 %v161
  %v807 = vunpack.c.h.b16 %v161
  %v808 = vunpack.c.l.b16 %v162
  %v809 = vunpack.c.h.b16 %v162
  %v810 = vunpack.c.l.b16 %v163
  %v811 = vunpack.c.h.b16 %v163
  %v812 = vunpack.c.l.b16 %v164
  %v813 = vunpack.c.h.b16 %v164
  %v814 = vunpack.c.l.b16 %v165
  %v815 = vunpack.c.h.b16 %v165
  %v816 = vunpack.c.l.b16 %v166
  %v817 = vunpack.c.h.b16 %v166
  %v818 = vunpack.c.l.b16 %v167
  %v819 = vunpack.c.h.b16 %v167
  %v820 = vunpack.c.l.b16 %v168
  %v821 = vunpack.c.h.b16 %v168
  %v822 = vunpack.c.l.b16 %v169
  %v823 = vunpack.c.h.b16 %v169
  %v824 = vunpack.c.l.b16 %v170
  %v825 = vunpack.c.h.b16 %v170
  %v826 = vunpack.c.l.b16 %v171
  %v827 = vunpack.c.h.b16 %v171
  %v828 = vunpack.c.l.b16 %v172
  %v829 = vunpack.c.h.b16 %v172
  %v830 = vunpack.c.l.b16 %v173
  %v831 = vunpack.c.h.b16 %v173
  %v832 = vunpack.c.l.b16 %v174
  %v833 = vunpack.c.h.b16 %v174
  %v834 = vunpack.c.l.b16 %v175
  %v835 = vunpack.c.h.b16 %v175
  %v836 = vunpack.c.l.b16 %v176
  %v837 = vunpack.c.h.b16 %v176
  %v838 = vunpack.c.l.b16 %v177
  %v839 = vunpack.c.h.b16 %v177
  %v840 = vunpack.c.l.b16 %v178
  %v841 = vunpack.c.h.b16 %v178
  %v842 = vunpack.c.l.b16 %v179
  %v843 = vunpack.c.h.b16 %v179
  %v844 = vunpack.c.l.b16 %v180
  %v845 = vunpack.c.h.b16 %v180
  %v846 = vunpack.c.l.b16 %v181
  %v847 = vunpack.c.h.b16 %v181
  %v848 = vunpack.c.l.b16 %v182
  %v849 = vunpack.c.h.b16 %v182
  %v850 = vunpack.c.l.b16 %v183
  %v851 = vunpack.c.h.b16 %v183
  %v852 = vunpack.c.l.b16 %v184
  %v853 = vunpack.c.h.b16 %v184
  %v854 = vunpack.c.l.b16 %v185
  %v855 = vunpack.c.h.b16 %v185
  %v856 = vunpack.c.l.b16 %v186
  %v857 = vunpack.c.h.b16 %v186
  %v858 = vunpack.c.l.b16 %v187
  %v859 = vunpack.c.h.b16 %v187
  %v860 = vunpack.c.l.b16 %v188
  %v861 = vunpack.c.h.b16 %v188
  %v862 = vunpack.c.l.b16 %v189
  %v863 = vunpack.c.h.b16 %v189
  %v864 = vunpack.c.l.b16 %v190
  %v865 = vunpack.c.h.b16 %v190
  %v866 = vunpack.c.l.b16 %v191
  %v867 = vunpack.c.h.b16 %v191
  %v868 = vunpack.c.l.b16 %v192
  %v869 = vunpack.c.h.b16 %v192
  %v870 = vunpack.c.l.b16 %v193
  %v871 = vunpack.c.h.b16 %v193
  %v872 = vunpack.c.l.b16 %v194
  %v873 = vunpack.c.h.b16 %v194
  %v874 = vunpack.c.l.b16 %v195
  %v875 = vunpack.c.h.b16 %v195
  %v876 = vunpack.c.l.b16 %v196
  %v877 = vunpack.c.h.b16 %v196
  %v878 = vunpack.c.l.b16 %v197
  %v879 = vunpack.c.h.b16 %v197
  %v880 = vunpack.c.l.b16 %v198
  %v881 = vunpack.c.h.b16 %v198
  %v882 = vunpack.c.l.b16 %v199
  %v883 = vunpack.c.h.b16 %v199
  %v884 = vunpack.c.l.b16 %v200
  %v885 = vunpack.c.h.b16 %v200
  %v886 = vunpack.c.l.b16 %v201
  %v887 = vunpack.c.h.b16 %v201
  %v888 = vunpack.c.l.b16 %v202
  %v889 = vunpack.c.h.b16 %v202
  %v890 = vunpack.c.l.b16 %v203
  %v891 = vunpack.c.h.b16 %v203
  %v892 = vunpack.c.l.b16 %v204
  %v893 = vunpack.c.h.b16 %v204
  %v894 = vunpack.c.l.b16 %v205
  %v895 = vunpack.c.h.b16 %v205
  %v896 = vunpack.c.l.b16 %v206
  %v897 = vunpack.c.h.b16 %v206
  %v898 = vunpack.c.l.b16 %v207
  %v899 = vunpack.c.h.b16 %v207
  %v900 = vunpack.c.l.b16 %v208
  %v901 = vunpack.c.h.b16 %v208
  %v902 = vunpack.c.l.b16 %v209
  %v903 = vunpack.c.h.b16 %v209
  %v904 = vunpack.c.l.b16 %v210
  %v905 = vunpack.c.h.b16 %v210
  %v906 = vunpack.c.l.b16 %v211
  %v907 = vunpack.c.h.b16 %v211
  %v908 = vunpack.c.l.b16 %v212
  %v909 = vunpack.c.h.b16 %v212
  %v910 = vunpack.c.l.b16 %v213
  %v911 = vunpack.c.h.b16 %v213
  %v912 = vunpack.c.l.b16 %v214
  %v913 = vunpack.c.h.b16 %v214
  %v914 = vunpack.c.l.b16 %v215
  %v915 = vunpack.c.h.b16 %v215
  %v916 = vunpack.c.l.b16 %v216
  %v917 = vunpack.c.h.b16 %v216
  %v918 = vunpack.c.l.b16 %v217
  %v919 = vunpack.c.h.b16 %v217
  %v920 = vunpack.c.l.b16 %v218
  %v921 = vunpack.c.h.b16 %v218
  %v922 = vunpack.c.l.b16 %v219
  %v923 = vunpack.c.h.b16 %v219
  %v924 = vunpack.c.l.b16 %v220
  %v925 = vunpack.c.h.b16 %v220
  %v926 = vunpack.c.l.b16 %v221
  %v927 = vunpack.c.h.b16 %v221
  %v928 = vunpack.c.l.b16 %v222
  %v929 = vunpack.c.h.b16 %v222
  %v930 = vunpack.c.l.b16 %v223
  %v931 = vunpack.c.h.b16 %v223
  %v932 = vunpack.c.l.b16 %v224
  %v933 = vunpack.c.h.b16 %v224
  %v934 = vunpack.c.l.b16 %v225
  %v935 = vunpack.c.h.b16 %v225
  %v936 = vunpack.c.l.b16 %v226
  %v937 = vunpack.c.h.b16 %v226
  %v938 = vunpack.c.l.b16 %v227
  %v939 = vunpack.c.h.b16 %v227
  %v940 = vunpack.c.l.b16 %v228
  %v941 = vunpack.c.h.b16 %v228
  %v942 = vunpack.c.l.b16 %v229
  %v943 = vunpack.c.h.b16 %v229
  %v944 = vunpack.c.l.b16 %v230
  %v945 = vunpack.c.h.b16 %v230
  %v946 = vunpack.c.l.b16 %v231
  %v947 = vunpack.c.h.b16 %v231
  %v948 = vunpack.c.l.b16 %v232
  %v949 = vunpack.c.h.b16 %v232
  %v950 = vunpack.c.l.b16 %v233
  %v951 = vunpack.c.h.b16 %v233
  %v952 = vunpack.c.l.b16 %v234
  %v953 = vunpack.c.h.b16 %v234
  %v954 = vunpack.c.l.b16 %v235
  %v955 = vunpack.c.h.b16 %v235
  %v956 = vunpack.c.l.b16 %v236
  %v957 = vunpack.c.h.b16 %v236
  %v958 = vunpack.c.l.b16 %v237
  %v959 = vunpack.c.h.b16 %v237
  %v960 = vunpack.c.l.b16 %v238
  %v961 = vunpack.c.h.b16 %v238
  %v962 = vunpack.c.l.b16 %v239
  %v963 = vunpack.c.h.b16 %v239
  %v964 = vunpack.c.l.b16 %v240
  %v965 = vunpack.c.h.b16 %v240
  %v966 = vunpack.c.l.b16 %v241
  %v967 = vunpack.c.h.b16 %v241
  %v968 = vunpack.c.l.b16 %v242
  %v969 = vunpack.c.h.b16 %v242
  %v970 = vunpack.c.l.b16 %v243
  %v971 = vunpack.c.h.b16 %v243
  %v972 = vunpack.c.l.b16 %v244
  %v973 = vunpack.c.h.b16 %v244
  %v974 = vpack.c.b16 %v544, %v542
  %v975 = vpack.c.b16 %v545, %v543
  %v976 = vpack.c.b16 %v548, %v546
  %v977 = vpack.c.b16 %v549, %v547
  %v978 = vpack.c.b16 %v552, %v550
  %v979 = vpack.c.b16 %v553, %v551
  %v980 = vpack.c.b16 %v556, %v554
  %v981 = vpack.c.b16 %v557, %v555
  %v982 = vpack.c.b16 %v560, %v558
  %v983 = vpack.c.b16 %v561, %v559
  %v984 = vpack.c.b16 %v564, %v562
  %v985 = vpack.c.b16 %v565, %v563
  %v986 = vpack.c.b16 %v568, %v566
  %v987 = vpack.c.b16 %v569, %v567
  %v988 = vpack.c.b16 %v572, %v570
  %v989 = vpack.c.b16 %v573, %v571
  %v990 = vpack.c.b16 %v576, %v574
  %v991 = vpack.c.b16 %v577, %v575
  %v992 = vpack.c.b16 %v580, %v578
  %v993 = vpack.c.b16 %v581, %v579
  %v994 = vpack.c.b16 %v584, %v582
  %v995 = vpack.c.b16 %v585, %v583
  %v996 = vpack.c.b16 %v588, %v586
  %v997 = vpack.c.b16 %v589, %v587
  %v998 = vpack.c.b16 %v592, %v590
  %v999 = vpack.c.b16 %v593, %v591
  %v1000 = vpack.c.b16 %v596, %v594
  %v1001 = vpack.c.b16 %v597, %v595
  %v1002 = vpack.c.b16 %v600, %v598
  %v1003 = vpack.c.b16 %v601, %v599
  %v1004 = vpack.c.b16 %v604, %v602
  %v1005 = vpack.c.b16 %v605, %v603
  %v1006 = vpack.c.b16 %v608, %v606
  %v1007 = vpack.c.b16 %v609, %v607
  %v1008 = vpack.c.b16 %v612, %v610
  %v1009 = vpack.c.b16 %v613, %v611
  %v1010 = vpack.c.b16 %v616, %v614
  %v1011 = vpack.c.b16 %v617, %v615
  %v1012 = vpack.c.b16 %v620, %v618
  %v1013 = vpack.c.b16 %v621, %v619
  %v1014 = vpack.c.b16 %v624, %v622
  %v1015 = vpack.c.b16 %v625, %v623
  %v1016 = vpack.c.b16 %v628, %v626
  %v1017 = vpack.c.b16 %v629, %v627
  %v1018 = vpack.c.b16 %v632, %v630
  %v1019 = vpack.c.b16 %v633, %v631
  %v1020 = vpack.c.b16 %v636, %v634
  %v1021 = vpack.c.b16 %v637, %v635
  %v1022 = vpack.c.b16 %v640, %v638
  %v1023 = vpack.c.b16 %v641, %v639
  %v1024 = vpack.c.b16 %v644, %v642
  %v1025 = vpack.c.b16 %v645, %v643
  %v1026 = vpack.c.b16 %v648, %v646
  %v1027 = vpack.c.b16 %v649, %v647
  %v1028 = vpack.c.b16 %v652, %v650
  %v1029 = vpack.c.b16 %v653, %v651
  %v1030 = vpack.c.b16 %v656, %v654
  %v1031 = vpack.c.b16 %v657, %v655
  %v1032 = vpack.c.b16 %v660, %v658
  %v1033 = vpack.c.b16 %v661, %v659
  %v1034 = vpack.c.b16 %v664, %v662
  %v1035 = vpack.c.b16 %v665, %v663
  %v1036 = vpack.c.b16 %v668, %v666
  %v1037 = vpack.c.b16 %v669, %v667
  %v1038 = vpack.c.b16 %v672, %v670
  %v1039 = vpack.c.b16 %v673, %v671
  %v1040 = vpack.c.b16 %v676, %v674
  %v1041 = vpack.c.b16 %v677, %v675
  %v1042 = vpack.c.b16 %v680, %v678
  %v1043 = vpack.c.b16 %v681, %v679
  %v1044 = vpack.c.b16 %v684, %v682
  %v1045 = vpack.c.b16 %v685, %v683
  %v1046 = vpack.c.b16 %v688, %v686
  %v1047 = vpack.c.b16 %v689, %v687
  %v1048 = vpack.c.b16 %v692, %v690
  %v1049 = vpack.c.b16 %v693, %v691
  %v1050 = vpack.c.b16 %v696, %v694
  %v1051 = vpack.c.b16 %v697, %v695
  %v1052 = vpack.c.b16 %v700, %v698
  %v1053 = vpack.c.b16 %v701, %v699
  %v1054 = vpack.c.b16 %v704, %v702
  %v1055 = vpack.c.b16 %v705, %v703
  %v1056 = vpack.c.b16 %v708, %v706
  %v1057 = vpack.c.b16 %v709, %v707
  %v1058 = vpack.c.b16 %v712, %v710
  %v1059 = vpack.c.b16 %v713, %v711
  %v1060 = vpack.c.b16 %v716, %v714
  %v1061 = vpack.c.b16 %v717, %v715
  %v1062 = vpack.c.b16 %v720, %v718
  %v1063 = vpack.c.b16 %v721, %v719
  %v1064 = vpack.c.b16 %v724, %v722
  %v1065 = vpack.c.b16 %v725, %v723
  %v1066 = vpack.c.b16 %v728, %v726
  %v1067 = vpack.c.b16 %v729, %v727
  %v1068 = vpack.c.b16 %v732, %v730
  %v1069 = vpack.c.b16 %v733, %v731
  %v1070 = vpack.c.b16 %v736, %v734
  %v1071 = vpack.c.b16 %v737, %v735
  %v1072 = vpack.c.b16 %v740, %v738
  %v1073 = vpack.c.b16 %v741, %v739
  %v1074 = vpack.c.b16 %v744, %v742
  %v1075 = vpack.c.b16 %v745, %v743
  %v1076 = vpack.c.b16 %v748, %v746
  %v1077 = vpack.c.b16 %v749, %v747
  %v1078 = vpack.c.b16 %v752, %v750
  %v1079 = vpack.c.b16 %v753, %v751
  %v1080 = vpack.c.b16 %v756, %v754
  %v1081 = vpack.c.b16 %v757, %v755
  %v1082 = vpack.c.b16 %v760, %v758
  %v1083 = vpack.c.b16 %v761, %v759
  %v1084 = vpack.c.b16 %v764, %v762
  %v1085 = vpack.c.b16 %v765, %v763
  %v1086 = vpack.c.b16 %v768, %v766
  %v1087 = vpack.c.b16 %v769, %v767
  %v1088 = vpack.c.b16 %v772, %v770
  %v1089 = vpack.c.b16 %v773, %v771
  %v1090 = vpack.c.b16 %v776, %v774
  %v1091 = vpack.c.b16 %v777, %v775
  %v1092 = vpack.c.b16 %v780, %v778
  %v1093 = vpack.c.b16 %v781, %v779
  %v1094 = vpack.c.b16 %v784, %v782
  %v1095 = vpack.c.b16 %v785, %v783
  %v1096 = vpack.c.b16 %v788, %v786
  %v1097 = vpack.c.b16 %v789, %v787
  %v1098 = vpack.c.b16 %v792, %v790
  %v1099 = vpack.c.b16 %v793, %v791
  %v1100 = vpack.c.b16 %v796, %v794
  %v1101 = vpack.c.b16 %v797, %v795
  %v1102 = vpack.c.b16 %v800, %v798
  %v1103 = vpack.c.b16 %v801, %v799
  %v1104 = vpack.c.b16 %v804, %v802
  %v1105 = vpack.c.b16 %v805, %v803
  %v1106 = vpack.c.b16 %v808, %v806
  %v1107 = vpack.c.b16 %v809, %v807
  %v1108 = vpack.c.b16 %v812, %v810
  %v1109 = vpack.c.b16 %v813, %v811
  %v1110 = vpack.c.b16 %v816, %v814
  %v1111 = vpack.c.b16 %v817, %v815
  %v1112 = vpack.c.b16 %v820, %v818
  %v1113 = vpack.c.b16 %v821, %v819
  %v1114 = vpack.c.b16 %v824, %v822
  %v1115 = vpack.c.b16 %v825, %v823
  %v1116 = vpack.c.b16 %v828, %v826
  %v1117 = vpack.c.b16 %v829, %v827
  %v1118 = vpack.c.b16 %v832, %v830
  %v1119 = vpack.c.b16 %v833, %v831
  %v1120 = vpack.c.b16 %v836, %v834
  %v1121 = vpack.c.b16 %v837, %v835
  %v1122 = vpack.c.b16 %v840, %v838
  %v1123 = vpack.c.b16 %v841, %v839
  %v1124 = vpack.c.b16 %v844, %v842
  %v1125 = vpack.c.b16 %v845, %v843
  %v1126 = vpack.c.b16 %v848, %v846
  %v1127 = vpack.c.b16 %v849, %v847
  %v1128 = vpack.c.b16 %v852, %v850
  %v1129 = vpack.c.b16 %v853, %v851
  %v1130 = vpack.c.b16 %v856, %v854
  %v1131 = vpack.c.b16 %v857, %v855
  %v1132 = vpack.c.b16 %v860, %v858
  %v1133 = vpack.c.b16 %v861, %v859
  %v1134 = vpack.c.b16 %v864, %v862
  %v1135 = vpack.c.b16 %v865, %v863
  %v1136 = vpack.c.b16 %v868, %v866
  %v1137 = vpack.c.b16 %v869, %v867
  %v1138 = vpack.c.b16 %v872, %v870
  %v1139 = vpack.c.b16 %v873, %v871
  %v1140 = vpack.c.b16 %v876, %v874
  %v1141 = vpack.c.b16 %v877, %v875
  %v1142 = vpack.c.b16 %v880, %v878
  %v1143 = vpack.c.b16 %v881, %v879
  %v1144 = vpack.c.b16 %v884, %v882
  %v1145 = vpack.c.b16 %v885, %v883
  %v1146 = vpack.c.b16 %v888, %v886
  %v1147 = vpack.c.b16 %v889, %v887
  %v1148 = vpack.c.b16 %v892, %v890
  %v1149 = vpack.c.b16 %v893, %v891
  %v1150 = vpack.c.b16 %v896, %v894
  %v1151 = vpack.c.b16 %v897, %v895
  %v1152 = vpack.c.b16 %v900, %v898
  %v1153 = vpack.c.b16 %v901, %v899
  %v1154 = vpack.c.b16 %v904, %v902
  %v1155 = vpack.c.b16 %v905, %v903
  %v1156 = vpack.c.b16 %v908, %v906
  %v1157 = vpack.c.b16 %v909, %v907
  %v1158 = vpack.c.b16 %v912, %v910
  %v1159 = vpack.c.b16 %v913, %v911
  %v1160 = vpack.c.b16 %v916, %v914
  %v1161 = vpack.c.b16 %v917, %v915
  %v1162 = vpack.c.b16 %v920, %v918
  %v1163 = vpack.c.b16 %v921, %v919
  %v1164 = vpack.c.b16 %v924, %v922
  %v1165 = vpack.c.b16 %v925, %v923
  %v1166 = vpack.c.b16 %v928, %v926
  %v1167 = vpack.c.b16 %v929, %v927
  %v1168 = vpack.c.b16 %v932, %v930
  %v1169 = vpack.c.b16 %v933, %v931
  %v1170 = vpack.c.b16 %v936, %v934
  %v1171 = vpack.c.b16 %v937, %v935
  %v1172 = vpack.c.b16 %v940, %v938
  %v1173 = vpack.c.b16 %v941, %v939
  %v1174 = vpack.c.b16 %v944, %v942
  %v1175 = vpack.c.b16 %v945, %v943
  %v1176 = vpack.c.b16 %v948, %v946
  %v1177 = vpack.c.b16 %v949, %v947
  %v1178 = vpack.c.b16 %v952, %v950
  %v1179 = vpack.c.b16 %v953, %v951
  %v1180 = vpack.c.b16 %v956, %v954
  %v1181 = vpack.c.b16 %v957, %v955
  %v1182 = vpack.c.b16 %v960, %v958
  %v1183 = vpack.c.b16 %v961, %v959
  %v1184 = vpack.c.b16 %v964, %v962
  %v1185 = vpack.c.b16 %v965, %v963
  %v1186 = vpack.c.b16 %v968, %v966
  %v1187 = vpack.c.b16 %v969, %v967
  %v1188 = vpack.c.b16 %v972, %v970
  %v1189 = vpack.c.b16 %v973, %v971
  %vm1406 = vcmask 523264
  %v1408 = vsel %vm1406, %v312, 0
  %1410 = vmatprep.subr.bf16.mxu0 %v975
  %1411 = vmatpush1.bf16.msra.mxu0 %v974
  %1412 = vmatprep.subr.bf16.mxu0 %v977
  %1413 = vmatpush1.bf16.msra.mxu0 %v976
  %1414 = vmatprep.subr.bf16.mxu0 %v979
  %1415 = vmatpush1.bf16.msra.mxu0 %v978
  %1416 = vmatprep.subr.bf16.mxu0 %v981
  %1417 = vmatpush1.bf16.msra.mxu0 %v980
  %1418 = vmatprep.subr.bf16.mxu0 %v983
  %1419 = vmatpush1.bf16.msra.mxu0 %v982
  %1420 = vmatprep.subr.bf16.mxu0 %v985
  %1421 = vmatpush1.bf16.msra.mxu0 %v984
  %1422 = vmatprep.subr.bf16.mxu0 %v987
  %1423 = vmatpush1.bf16.msra.mxu0 %v986
  %1424 = vmatprep.subr.bf16.mxu0 %v989
  %1425 = vmatpush1.bf16.msra.mxu0 %v988
  %1426 = vmatprep.subr.bf16.mxu0 %v991
  %1427 = vmatpush1.bf16.msra.mxu0 %v990
  %1428 = vmatprep.subr.bf16.mxu0 %v993
  %1429 = vmatpush1.bf16.msra.mxu0 %v992
  %1430 = vmatprep.subr.bf16.mxu0 %v995
  %1431 = vmatpush1.bf16.msra.mxu0 %v994
  %1432 = vmatprep.subr.bf16.mxu0 %v997
  %1433 = vmatpush1.bf16.msra.mxu0 %v996
  %1434 = vmatprep.subr.bf16.mxu0 %v999
  %1435 = vmatpush1.bf16.msra.mxu0 %v998
  %1436 = vmatprep.subr.bf16.mxu0 %v1001
  %1437 = vmatpush1.bf16.msra.mxu0 %v1000
  %1438 = vmatprep.subr.bf16.mxu0 %v1003
  %1439 = vmatpush1.bf16.msra.mxu0 %v1002
  %1440 = vmatprep.subr.bf16.mxu0 %v1005
  %1441 = vmatpush1.bf16.msra.mxu0 %v1004
  %1442 = vmatprep.mubr.bf16.mxu0 %v300
  %1443 = vmatmul.mubr.bf16.gmra.mrb[0].mxu0 %v299
  %v1444 = vpop.f32.mrb[0].mxu0
  %v1445 = vadd.f32 %v250, %v1444
  %v1446 = vpop.f32.mrb[0].mxu0
  %v1447 = vadd.f32 %v254, %v1446
  %v1448 = vpop.f32.mrb[0].mxu0
  %v1449 = vadd.f32 %v250, %v1448
  %v1450 = vpop.f32.mrb[0].mxu0
  %v1451 = vadd.f32 %v254, %v1450
  %1452 = vdwg.mxu0
  %1453 = vmatprep.subr.bf16.mxu0 %v1007
  %1454 = vmatpush1.bf16.msra.mxu0 %v1006
  %1455 = vmatprep.subr.bf16.mxu0 %v1009
  %1456 = vmatpush1.bf16.msra.mxu0 %v1008
  %1457 = vmatprep.subr.bf16.mxu0 %v1011
  %1458 = vmatpush1.bf16.msra.mxu0 %v1010
  %1459 = vmatprep.subr.bf16.mxu0 %v1013
  %1460 = vmatpush1.bf16.msra.mxu0 %v1012
  %1461 = vmatprep.subr.bf16.mxu0 %v1015
  %1462 = vmatpush1.bf16.msra.mxu0 %v1014
  %1463 = vmatprep.subr.bf16.mxu0 %v1017
  %1464 = vmatpush1.bf16.msra.mxu0 %v1016
  %1465 = vmatprep.subr.bf16.mxu0 %v1019
  %1466 = vmatpush1.bf16.msra.mxu0 %v1018
  %1467 = vmatprep.subr.bf16.mxu0 %v1021
  %1468 = vmatpush1.bf16.msra.mxu0 %v1020
  %1469 = vmatprep.subr.bf16.mxu0 %v1023
  %1470 = vmatpush1.bf16.msra.mxu0 %v1022
  %1471 = vmatprep.subr.bf16.mxu0 %v1025
  %1472 = vmatpush1.bf16.msra.mxu0 %v1024
  %1473 = vmatprep.subr.bf16.mxu0 %v1027
  %1474 = vmatpush1.bf16.msra.mxu0 %v1026
  %1475 = vmatprep.subr.bf16.mxu0 %v1029
  %1476 = vmatpush1.bf16.msra.mxu0 %v1028
  %1477 = vmatprep.subr.bf16.mxu0 %v1031
  %1478 = vmatpush1.bf16.msra.mxu0 %v1030
  %1479 = vmatprep.subr.bf16.mxu0 %v1033
  %1480 = vmatpush1.bf16.msra.mxu0 %v1032
  %1481 = vmatprep.subr.bf16.mxu0 %v1035
  %1482 = vmatpush1.bf16.msra.mxu0 %v1034
  %1483 = vmatprep.subr.bf16.mxu0 %v1037
  %1484 = vmatpush1.bf16.msra.mxu0 %v1036
  %1485 = vmatprep.mubr.bf16.mxu0 %v302
  %1486 = vmatmul.mubr.bf16.gmra.mrb[0].mxu0 %v301
  %v1487 = vpop.f32.mrb[0].mxu0
  %v1488 = vadd.f32 %v1445, %v1487
  %v1489 = vpop.f32.mrb[0].mxu0
  %v1490 = vadd.f32 %v1447, %v1489
  %v1491 = vpop.f32.mrb[0].mxu0
  %v1492 = vadd.f32 %v1449, %v1491
  %v1493 = vpop.f32.mrb[0].mxu0
  %v1494 = vadd.f32 %v1451, %v1493
  %1495 = vdwg.mxu0
  %1496 = vmatprep.subr.bf16.mxu0 %v1039
  %1497 = vmatpush1.bf16.msra.mxu0 %v1038
  %1498 = vmatprep.subr.bf16.mxu0 %v1041
  %1499 = vmatpush1.bf16.msra.mxu0 %v1040
  %1500 = vmatprep.subr.bf16.mxu0 %v1043
  %1501 = vmatpush1.bf16.msra.mxu0 %v1042
  %1502 = vmatprep.subr.bf16.mxu0 %v1045
  %1503 = vmatpush1.bf16.msra.mxu0 %v1044
  %1504 = vmatprep.subr.bf16.mxu0 %v1047
  %1505 = vmatpush1.bf16.msra.mxu0 %v1046
  %1506 = vmatprep.subr.bf16.mxu0 %v1049
  %1507 = vmatpush1.bf16.msra.mxu0 %v1048
  %1508 = vmatprep.subr.bf16.mxu0 %v1051
  %1509 = vmatpush1.bf16.msra.mxu0 %v1050
  %1510 = vmatprep.subr.bf16.mxu0 %v1053
  %1511 = vmatpush1.bf16.msra.mxu0 %v1052
  %1512 = vmatprep.subr.bf16.mxu0 %v1055
  %1513 = vmatpush1.bf16.msra.mxu0 %v1054
  %1514 = vmatprep.subr.bf16.mxu0 %v1057
  %1515 = vmatpush1.bf16.msra.mxu0 %v1056
  %1516 = vmatprep.subr.bf16.mxu0 %v1059
  %1517 = vmatpush1.bf16.msra.mxu0 %v1058
  %1518 = vmatprep.subr.bf16.mxu0 %v1061
  %1519 = vmatpush1.bf16.msra.mxu0 %v1060
  %1520 = vmatprep.subr.bf16.mxu0 %v1063
  %1521 = vmatpush1.bf16.msra.mxu0 %v1062
  %1522 = vmatprep.subr.bf16.mxu0 %v1065
  %1523 = vmatpush1.bf16.msra.mxu0 %v1064
  %1524 = vmatprep.subr.bf16.mxu0 %v1067
  %1525 = vmatpush1.bf16.msra.mxu0 %v1066
  %1526 = vmatprep.subr.bf16.mxu0 %v1069
  %1527 = vmatpush1.bf16.msra.mxu0 %v1068
  %1528 = vmatprep.mubr.bf16.mxu0 %v304
  %1529 = vmatmul.mubr.bf16.gmra.mrb[0].mxu0 %v303
  %v1530 = vpop.f32.mrb[0].mxu0
  %v1531 = vadd.f32 %v1488, %v1530
  %v1532 = vpop.f32.mrb[0].mxu0
  %v1533 = vadd.f32 %v1490, %v1532
  %v1534 = vpop.f32.mrb[0].mxu0
  %v1535 = vadd.f32 %v1492, %v1534
  %v1536 = vpop.f32.mrb[0].mxu0
  %v1537 = vadd.f32 %v1494, %v1536
  %1538 = vdwg.mxu0
  %1539 = vmatprep.subr.bf16.mxu0 %v1071
  %1540 = vmatpush1.bf16.msra.mxu0 %v1070
  %1541 = vmatprep.subr.bf16.mxu0 %v1073
  %1542 = vmatpush1.bf16.msra.mxu0 %v1072
  %1543 = vmatprep.subr.bf16.mxu0 %v1075
  %1544 = vmatpush1.bf16.msra.mxu0 %v1074
  %1545 = vmatprep.subr.bf16.mxu0 %v1077
  %1546 = vmatpush1.bf16.msra.mxu0 %v1076
  %1547 = vmatprep.subr.bf16.mxu0 %v1079
  %1548 = vmatpush1.bf16.msra.mxu0 %v1078
  %1549 = vmatprep.subr.bf16.mxu0 %v1081
  %1550 = vmatpush1.bf16.msra.mxu0 %v1080
  %1551 = vmatprep.subr.bf16.mxu0 %v1083
  %1552 = vmatpush1.bf16.msra.mxu0 %v1082
  %1553 = vmatprep.subr.bf16.mxu0 %v1085
  %1554 = vmatpush1.bf16.msra.mxu0 %v1084
  %1555 = vmatprep.subr.bf16.mxu0 %v1087
  %1556 = vmatpush1.bf16.msra.mxu0 %v1086
  %1557 = vmatprep.subr.bf16.mxu0 %v1089
  %1558 = vmatpush1.bf16.msra.mxu0 %v1088
  %1559 = vmatprep.subr.bf16.mxu0 %v1091
  %1560 = vmatpush1.bf16.msra.mxu0 %v1090
  %1561 = vmatprep.subr.bf16.mxu0 %v1093
  %1562 = vmatpush1.bf16.msra.mxu0 %v1092
  %1563 = vmatprep.subr.bf16.mxu0 %v1095
  %1564 = vmatpush1.bf16.msra.mxu0 %v1094
  %1565 = vmatprep.subr.bf16.mxu0 %v1097
  %1566 = vmatpush1.bf16.msra.mxu0 %v1096
  %1567 = vmatprep.subr.bf16.mxu0 %v1099
  %1568 = vmatpush1.bf16.msra.mxu0 %v1098
  %1569 = vmatprep.subr.bf16.mxu0 %v1101
  %1570 = vmatpush1.bf16.msra.mxu0 %v1100
  %1571 = vmatprep.mubr.bf16.mxu0 %v306
  %1572 = vmatmul.mubr.bf16.gmra.mrb[0].mxu0 %v305
  %v1573 = vpop.f32.mrb[0].mxu0
  %v1574 = vadd.f32 %v1531, %v1573
  %v1575 = vpop.f32.mrb[0].mxu0
  %v1576 = vadd.f32 %v1533, %v1575
  %v1577 = vpop.f32.mrb[0].mxu0
  %v1578 = vadd.f32 %v1535, %v1577
  %v1579 = vpop.f32.mrb[0].mxu0
  %v1580 = vadd.f32 %v1537, %v1579
  %1581 = vdwg.mxu0
  %1582 = vmatprep.subr.bf16.mxu0 %v1103
  %1583 = vmatpush1.bf16.msra.mxu0 %v1102
  %1584 = vmatprep.subr.bf16.mxu0 %v1105
  %1585 = vmatpush1.bf16.msra.mxu0 %v1104
  %1586 = vmatprep.subr.bf16.mxu0 %v1107
  %1587 = vmatpush1.bf16.msra.mxu0 %v1106
  %1588 = vmatprep.subr.bf16.mxu0 %v1109
  %1589 = vmatpush1.bf16.msra.mxu0 %v1108
  %1590 = vmatprep.subr.bf16.mxu0 %v1111
  %1591 = vmatpush1.bf16.msra.mxu0 %v1110
  %1592 = vmatprep.subr.bf16.mxu0 %v1113
  %1593 = vmatpush1.bf16.msra.mxu0 %v1112
  %1594 = vmatprep.subr.bf16.mxu0 %v1115
  %1595 = vmatpush1.bf16.msra.mxu0 %v1114
  %1596 = vmatprep.subr.bf16.mxu0 %v1117
  %1597 = vmatpush1.bf16.msra.mxu0 %v1116
  %1598 = vmatprep.subr.bf16.mxu0 %v1119
  %1599 = vmatpush1.bf16.msra.mxu0 %v1118
  %1600 = vmatprep.subr.bf16.mxu0 %v1121
  %1601 = vmatpush1.bf16.msra.mxu0 %v1120
  %1602 = vmatprep.subr.bf16.mxu0 %v1123
  %1603 = vmatpush1.bf16.msra.mxu0 %v1122
  %1604 = vmatprep.subr.bf16.mxu0 %v1125
  %1605 = vmatpush1.bf16.msra.mxu0 %v1124
  %1606 = vmatprep.subr.bf16.mxu0 %v1127
  %1607 = vmatpush1.bf16.msra.mxu0 %v1126
  %1608 = vmatprep.subr.bf16.mxu0 %v1129
  %1609 = vmatpush1.bf16.msra.mxu0 %v1128
  %1610 = vmatprep.subr.bf16.mxu0 %v1131
  %1611 = vmatpush1.bf16.msra.mxu0 %v1130
  %1612 = vmatprep.subr.bf16.mxu0 %v1133
  %1613 = vmatpush1.bf16.msra.mxu0 %v1132
  %1614 = vmatprep.mubr.bf16.mxu0 %v308
  %1615 = vmatmul.mubr.bf16.gmra.mrb[0].mxu0 %v307
  %v1616 = vpop.f32.mrb[0].mxu0
  %v1617 = vadd.f32 %v1574, %v1616
  %v1618 = vpop.f32.mrb[0].mxu0
  %v1619 = vadd.f32 %v1576, %v1618
  %v1620 = vpop.f32.mrb[0].mxu0
  %v1621 = vadd.f32 %v1578, %v1620
  %v1622 = vpop.f32.mrb[0].mxu0
  %v1623 = vadd.f32 %v1580, %v1622
  %1624 = vdwg.mxu0
  %1625 = vmatprep.subr.bf16.mxu0 %v1135
  %1626 = vmatpush1.bf16.msra.mxu0 %v1134
  %1627 = vmatprep.subr.bf16.mxu0 %v1137
  %1628 = vmatpush1.bf16.msra.mxu0 %v1136
  %1629 = vmatprep.subr.bf16.mxu0 %v1139
  %1630 = vmatpush1.bf16.msra.mxu0 %v1138
  %1631 = vmatprep.subr.bf16.mxu0 %v1141
  %1632 = vmatpush1.bf16.msra.mxu0 %v1140
  %1633 = vmatprep.subr.bf16.mxu0 %v1143
  %1634 = vmatpush1.bf16.msra.mxu0 %v1142
  %1635 = vmatprep.subr.bf16.mxu0 %v1145
  %1636 = vmatpush1.bf16.msra.mxu0 %v1144
  %1637 = vmatprep.subr.bf16.mxu0 %v1147
  %1638 = vmatpush1.bf16.msra.mxu0 %v1146
  %1639 = vmatprep.subr.bf16.mxu0 %v1149
  %1640 = vmatpush1.bf16.msra.mxu0 %v1148
  %1641 = vmatprep.subr.bf16.mxu0 %v1151
  %1642 = vmatpush1.bf16.msra.mxu0 %v1150
  %1643 = vmatprep.subr.bf16.mxu0 %v1153
  %1644 = vmatpush1.bf16.msra.mxu0 %v1152
  %1645 = vmatprep.subr.bf16.mxu0 %v1155
  %1646 = vmatpush1.bf16.msra.mxu0 %v1154
  %1647 = vmatprep.subr.bf16.mxu0 %v1157
  %1648 = vmatpush1.bf16.msra.mxu0 %v1156
  %1649 = vmatprep.subr.bf16.mxu0 %v1159
  %1650 = vmatpush1.bf16.msra.mxu0 %v1158
  %1651 = vmatprep.subr.bf16.mxu0 %v1161
  %1652 = vmatpush1.bf16.msra.mxu0 %v1160
  %1653 = vmatprep.subr.bf16.mxu0 %v1163
  %1654 = vmatpush1.bf16.msra.mxu0 %v1162
  %1655 = vmatprep.subr.bf16.mxu0 %v1165
  %1656 = vmatpush1.bf16.msra.mxu0 %v1164
  %1657 = vmatprep.mubr.bf16.mxu0 %v310
  %1658 = vmatmul.mubr.bf16.gmra.mrb[0].mxu0 %v309
  %v1659 = vpop.f32.mrb[0].mxu0
  %v1660 = vadd.f32 %v1617, %v1659
  %v1661 = vpop.f32.mrb[0].mxu0
  %v1662 = vadd.f32 %v1619, %v1661
  %v1663 = vpop.f32.mrb[0].mxu0
  %v1664 = vadd.f32 %v1621, %v1663
  %v1665 = vpop.f32.mrb[0].mxu0
  %v1666 = vadd.f32 %v1623, %v1665
  %1667 = vdwg.mxu0
  %1668 = vmatprep.subr.bf16.mxu0 %v1167
  %1669 = vmatpush1.bf16.msra.mxu0 %v1166
  %1670 = vmatprep.subr.bf16.mxu0 %v1169
  %1671 = vmatpush1.bf16.msra.mxu0 %v1168
  %1672 = vmatprep.subr.bf16.mxu0 %v1171
  %1673 = vmatpush1.bf16.msra.mxu0 %v1170
  %1674 = vmatprep.subr.bf16.mxu0 %v1173
  %1675 = vmatpush1.bf16.msra.mxu0 %v1172
  %1676 = vmatprep.subr.bf16.mxu0 %v1175
  %1677 = vmatpush1.bf16.msra.mxu0 %v1174
  %1678 = vmatprep.subr.bf16.mxu0 %v1177
  %1679 = vmatpush1.bf16.msra.mxu0 %v1176
  %1680 = vmatprep.subr.bf16.mxu0 %v1179
  %1681 = vmatpush1.bf16.msra.mxu0 %v1178
  %1682 = vmatprep.subr.bf16.mxu0 %v1181
  %1683 = vmatpush1.bf16.msra.mxu0 %v1180
  %1684 = vmatprep.subr.bf16.mxu0 %v1183
  %1685 = vmatpush1.bf16.msra.mxu0 %v1182
  %1686 = vmatprep.subr.bf16.mxu0 %v1185
  %1687 = vmatpush1.bf16.msra.mxu0 %v1184
  %1688 = vmatprep.subr.bf16.mxu0 %v1187
  %1689 = vmatpush1.bf16.msra.mxu0 %v1186
  %1690 = vmatprep.subr.bf16.mxu0 %v1189
  %1691 = vmatpush1.bf16.msra.mxu0 %v1188
  %1692 = vmatprep.subr.bf16.mxu0 0
  %1693 = vmatpush1.bf16.msra.mxu0 0
  %1694 = vmatprep.subr.bf16.mxu0 0
  %1695 = vmatpush1.bf16.msra.mxu0 0
  %1696 = vmatprep.subr.bf16.mxu0 0
  %1697 = vmatpush1.bf16.msra.mxu0 0
  %1698 = vmatprep.subr.bf16.mxu0 0
  %1699 = vmatpush1.bf16.msra.mxu0 0
  %1700 = vmatprep.mubr.bf16.mxu0 %v1408
  %1701 = vmatmul.mubr.bf16.gmra.mrb[0].mxu0 %v311
  %v1702 = vpop.f32.mrb[0].mxu0
  %v1703 = vadd.f32 %v1660, %v1702
  %v1704 = vpop.f32.mrb[0].mxu0
  %v1705 = vadd.f32 %v1662, %v1704
  %v1706 = vpop.f32.mrb[0].mxu0
  %v1707 = vadd.f32 %v1664, %v1706
  %v1708 = vpop.f32.mrb[0].mxu0
  %v1709 = vadd.f32 %v1666, %v1708
  %1710 = vdwg.mxu0
  %v1711 = vmax.f32 %v1703, 0.0
  %v1712 = vmax.f32 %v1705, 0.0
  %v1713 = vmax.f32 %v1707, 0.0
  %v1714 = vmax.f32 %v1709, 0.0
  %v1715 = vpack.c.bf16 %v1713, %v1711
  %v1716 = vpack.c.bf16 %v1714, %v1712
  %v1719 = vunpack.c.l.b16 %v1715
  %v1720 = vunpack.c.l.b16 %v1716
  %v1721 = vunpack.c.h.b16 %v1715
  %v1722 = vunpack.c.h.b16 %v1716
  %v1723 = vpack.c.b16 %v1720, %v1719
  %v1724 = vpack.c.b16 %v1722, %v1721
  %1727 = vst [vmem:[%s3] sm:$0xff] %v1723
  %1728 = vst [vmem:[%s3 + $0x8] sm:$0xff] %v1724
  // Predicated region
  $region14: #{mnih2015_mh_forward.6} parent=0 // pred_check
    _
  $region15: #{mnih2015_mh_forward.6} parent=0 // pred_check_branch
    %1730 = sbr.rel (0) target = $region17
  $region16: #{mnih2015_mh_forward.6} parent=0 // pred_region
    _
  $region17: #{mnih2015_mh_forward.6} parent=0 // pred_fallthru
    _
  // Predicated region
  $region18: #{mnih2015_mh_forward.6} parent=0 // pred_check
    _
  $region19: #{mnih2015_mh_forward.6} parent=0 // pred_check_branch
    %1732 = sbr.rel (0) target = $region21
  $region20: #{mnih2015_mh_forward.6} parent=0 // pred_region
    _
  $region21: #{mnih2015_mh_forward.6} parent=0 // pred_fallthru
    _

// kernel: mnih2015_mh_forward.7
$region0: #{mnih2015_mh_forward.7}
  #allocation0 [shape = 'u32[]', space=smem, size = 0x4, offset = 0x4, fixed_abs, tag = 'smem constant byte address 0x4 - core index']
  #allocation1 [shape = 'u32[144,128]{1,0:T(1,128)}', space=vmem, size = 0x12000, scoped, tag = 'internal scratch']
  %s0 = inlined_call_operand.vmem [shape: bf16[16,192], index: 0, kind: input, shape index: {}]
  %s1 = inlined_call_operand.vmem [shape: bf16[192,1536], index: 1, kind: input, shape index: {}]
  %s2 = inlined_call_operand.vmem [shape: f32[1,1536], index: 2, kind: input, shape index: {}]
  %s3 = inlined_call_operand.vmem [shape: bf16[1536,128], index: 3, kind: input, shape index: {}]
  %s4 = inlined_call_operand.vmem [shape: f32[1,128], index: 4, kind: input, shape index: {}]
  %s5 = inlined_call_operand.vmem [shape: f32[16,128], index: 5, kind: output, shape index: {}]
  %s6 = sld [smem:[#allocation0]]
  $region80: #{mnih2015_mh_forward.7} parent=0
    _
  %s8 = ssub.s32 1, %s6
  %s9 = scalar_select 0, %s8, %s6
  $region1: #{mnih2015_mh_forward.7} parent=0
    #allocation2 [shape = 'u8[393216]{0}', space=vmem, size = 0x60000, scoped, tag = 'input window, operand 1']
    loop: start=0, step=1, limit=5
    $region2: #{mnih2015_mh_forward.7} parent=1 // loop_pre_header
      _
    $region3: #{mnih2015_mh_forward.7} parent=1 // loop_header
      %s11 = sphi 0, %s15
      %p12 = scmp.ge.s32.totalorder %s11, 5
      %s19 = sphi 0, %s19
      %s21 = sphi 0, %s19
      %s22 = sphi 0, %s21
      %s36 = sphi 0, %s22
      %s42 = sphi 0, %s44
      %s45 = sphi 0, %s42
      %s46 = sphi 0, %s45
      %s62 = sphi 0, %s46
      %s68 = sphi 0, %s70
      %s71 = sphi 0, %s68
      %s72 = sphi 0, %s71
      %s88 = sphi 0, %s72
      %s94 = sphi 0, %s96
      %s97 = sphi 0, %s94
      %s98 = sphi 0, %s97
      %s114 = sphi 0, %s98
      %s118 = sphi 0, %s118
      %s120 = sphi 0, %s118
      %s121 = sphi 0, %s120
      %s135 = sphi 0, %s121
      %s139 = sphi 0, %s139
      %s141 = sphi 0, %s139
      %s142 = sphi 0, %s141
      %s156 = sphi 0, %s142
    $region4: #{mnih2015_mh_forward.7} parent=1 // loop_header_branch
      %14 = sbr.rel (%p12) target = $region8
    $region5: #{mnih2015_mh_forward.7} parent=1 // loop_body
      %s16 = ssub.s32 %s11, 1
      %s17 = ssub.s32 %s11, 2
      %s18 = sadd.s32 %s11, 1
      %s20 = sadd.s32 %s19, 1
      %p23 = scmp.eq.s32.totalorder %s11, 2
      %p24 = scmp.ne.s32.totalorder %s19, %s21
      %p25 = scmp.eq.s32.totalorder %s11, 0
      %p26 = por %p24, %p25
      %p27 = scmp.ne.s32.totalorder %s19, %s21
      %p28 = scmp.eq.s32.totalorder %s16, 2
      %p29 = por %p27, %p28
      %p30 = scmp.ne.s32.totalorder %s21, %s22
      %p31 = scmp.eq.s32.totalorder %s16, 0
      %p32 = por %p30, %p31
      %p33 = scmp.ne.s32.totalorder %s21, %s22
      %p34 = scmp.eq.s32.totalorder %s17, 2
      %p35 = por %p33, %p34
      %p37 = scmp.ne.s32.totalorder %s22, %s36
      %p38 = scmp.eq.s32.totalorder %s17, 0
      %p39 = por %p37, %p38
      %s40 = ssub.s32 %s11, %s18
      %p41 = scmp.eq.s32.totalorder %s40, 0
      %s43 = sadd.s32 %s42, 1
      %s44 = scalar_select %p41, %s42, %s43
      %p47 = pneg %p41
      %p48 = scmp.eq.s32.totalorder %s11, 2
      %p49 = por %p47, %p48
      %p50 = scmp.ne.s32.totalorder %s42, %s45
      %p51 = scmp.eq.s32.totalorder %s11, 0
      %p52 = por %p50, %p51
      %p53 = scmp.ne.s32.totalorder %s42, %s45
      %p54 = scmp.eq.s32.totalorder %s16, 2
      %p55 = por %p53, %p54
      %p56 = scmp.ne.s32.totalorder %s45, %s46
      %p57 = scmp.eq.s32.totalorder %s16, 0
      %p58 = por %p56, %p57
      %p59 = scmp.ne.s32.totalorder %s45, %s46
      %p60 = scmp.eq.s32.totalorder %s17, 2
      %p61 = por %p59, %p60
      %p63 = scmp.ne.s32.totalorder %s46, %s62
      %p64 = scmp.eq.s32.totalorder %s17, 0
      %p65 = por %p63, %p64
      %s66 = ssub.s32 %s11, %s18
      %p67 = scmp.eq.s32.totalorder %s66, 0
      %s69 = sadd.s32 %s68, 1
      %s70 = scalar_select %p67, %s68, %s69
      %p73 = pneg %p67
      %p74 = scmp.eq.s32.totalorder %s11, 2
      %p75 = por %p73, %p74
      %p76 = scmp.ne.s32.totalorder %s68, %s71
      %p77 = scmp.eq.s32.totalorder %s11, 0
      %p78 = por %p76, %p77
      %p79 = scmp.ne.s32.totalorder %s68, %s71
      %p80 = scmp.eq.s32.totalorder %s16, 2
      %p81 = por %p79, %p80
      %p82 = scmp.ne.s32.totalorder %s71, %s72
      %p83 = scmp.eq.s32.totalorder %s16, 0
      %p84 = por %p82, %p83
      %p85 = scmp.ne.s32.totalorder %s71, %s72
      %p86 = scmp.eq.s32.totalorder %s17, 2
      %p87 = por %p85, %p86
      %p89 = scmp.ne.s32.totalorder %s72, %s88
      %p90 = scmp.eq.s32.totalorder %s17, 0
      %p91 = por %p89, %p90
      %s92 = ssub.s32 %s11, %s18
      %p93 = scmp.eq.s32.totalorder %s92, 0
      %s95 = sadd.s32 %s94, 1
      %s96 = scalar_select %p93, %s94, %s95
      %p99 = pneg %p93
      %p100 = scmp.eq.s32.totalorder %s11, 2
      %p101 = por %p99, %p100
      %p102 = scmp.ne.s32.totalorder %s94, %s97
      %p103 = scmp.eq.s32.totalorder %s11, 0
      %p104 = por %p102, %p103
      %p105 = scmp.ne.s32.totalorder %s94, %s97
      %p106 = scmp.eq.s32.totalorder %s16, 2
      %p107 = por %p105, %p106
      %p108 = scmp.ne.s32.totalorder %s97, %s98
      %p109 = scmp.eq.s32.totalorder %s16, 0
      %p110 = por %p108, %p109
      %p111 = scmp.ne.s32.totalorder %s97, %s98
      %p112 = scmp.eq.s32.totalorder %s17, 2
      %p113 = por %p111, %p112
      %p115 = scmp.ne.s32.totalorder %s98, %s114
      %p116 = scmp.eq.s32.totalorder %s17, 0
      %p117 = por %p115, %p116
      %s119 = sadd.s32 %s118, 1
      %p122 = scmp.eq.s32.totalorder %s11, 2
      %p123 = scmp.ne.s32.totalorder %s118, %s120
      %p124 = scmp.eq.s32.totalorder %s11, 0
      %p125 = por %p123, %p124
      %p126 = scmp.ne.s32.totalorder %s118, %s120
      %p127 = scmp.eq.s32.totalorder %s16, 2
      %p128 = por %p126, %p127
      %p129 = scmp.ne.s32.totalorder %s120, %s121
      %p130 = scmp.eq.s32.totalorder %s16, 0
      %p131 = por %p129, %p130
      %p132 = scmp.ne.s32.totalorder %s120, %s121
      %p133 = scmp.eq.s32.totalorder %s17, 2
      %p134 = por %p132, %p133
      %p136 = scmp.ne.s32.totalorder %s121, %s135
      %p137 = scmp.eq.s32.totalorder %s17, 0
      %p138 = por %p136, %p137
      %s140 = sadd.s32 %s139, 1
      %p143 = scmp.eq.s32.totalorder %s11, 2
      %p144 = scmp.ne.s32.totalorder %s139, %s141
      %p145 = scmp.eq.s32.totalorder %s11, 0
      %p146 = por %p144, %p145
      %p147 = scmp.ne.s32.totalorder %s139, %s141
      %p148 = scmp.eq.s32.totalorder %s16, 2
      %p149 = por %p147, %p148
      %p150 = scmp.ne.s32.totalorder %s141, %s142
      %p151 = scmp.eq.s32.totalorder %s16, 0
      %p152 = por %p150, %p151
      %p153 = scmp.ne.s32.totalorder %s141, %s142
      %p154 = scmp.eq.s32.totalorder %s17, 2
      %p155 = por %p153, %p154
      %p157 = scmp.ne.s32.totalorder %s142, %s156
      %p158 = scmp.eq.s32.totalorder %s17, 0
      %p159 = por %p157, %p158
      %p160 = scmp.le.s32.totalorder 1, %s11
      %p161 = scmp.lt.s32.totalorder %s11, 4
      %p162 = pnand %p160, %p161
      %p163 = pneg %p162
      // Predicated region
      $region9: #{mnih2015_mh_forward.7} parent=5 // pred_check
        _
      $region10: #{mnih2015_mh_forward.7} parent=5 // pred_check_branch
        %165 = sbr.rel (%p162) target = $region12
      $region11: #{mnih2015_mh_forward.7} parent=5 // pred_region
        %s166 = ssub.s32 %s11, 1
        // Predicated region
        $region13: #{mnih2015_mh_forward.7} parent=11 // pred_check
          %p167 = pneg %p32
        $region14: #{mnih2015_mh_forward.7} parent=11 // pred_check_branch
          %169 = sbr.rel (%p167) target = $region16
        $region15: #{mnih2015_mh_forward.7} parent=11 // pred_region
          _
        $region16: #{mnih2015_mh_forward.7} parent=11 // pred_fallthru
          _
        // Predicated region
        $region17: #{mnih2015_mh_forward.7} parent=11 // pred_check
          %p170 = pneg %p131
        $region18: #{mnih2015_mh_forward.7} parent=11 // pred_check_branch
          %172 = sbr.rel (%p170) target = $region20
        $region19: #{mnih2015_mh_forward.7} parent=11 // pred_region
          _
        $region20: #{mnih2015_mh_forward.7} parent=11 // pred_fallthru
          _
      $region12: #{mnih2015_mh_forward.7} parent=5 // pred_fallthru
        _
      %p173 = scmp.lt.s32.totalorder %s11, 3
      // Predicated region
      $region21: #{mnih2015_mh_forward.7} parent=5 // pred_check
        %p174 = pneg %p173
      $region22: #{mnih2015_mh_forward.7} parent=5 // pred_check_branch
        %176 = sbr.rel (%p174) target = $region24
      $region23: #{mnih2015_mh_forward.7} parent=5 // pred_region
        // Predicated region
        $region25: #{mnih2015_mh_forward.7} parent=23 // pred_check
          %p177 = pneg %p52
        $region26: #{mnih2015_mh_forward.7} parent=23 // pred_check_branch
          %179 = sbr.rel (%p177) target = $region28
        $region27: #{mnih2015_mh_forward.7} parent=23 // pred_region
          %s180 = sand.u32 %s42, 1
          %s181 = sand.u32 %s42, 1
          %s182 = smul.addr %s181, 384
          %s183 = scalar_lea.vmem [#allocation2], %s182
          %s184 = smul.u32 4, %s11
          %s185 = smul.addr %s184, 4
          %s186 = scalar_lea.vmem %s1, %s185
          // Predicated region
          $region29: #{mnih2015_mh_forward.7} parent=27 // pred_check
            _
          $region30: #{mnih2015_mh_forward.7} parent=27 // pred_check_branch
            %188 = sbr.rel (0) target = $region32
          $region31: #{mnih2015_mh_forward.7} parent=27 // pred_region
            // Predicated region
            $region33: #{mnih2015_mh_forward.7} parent=31 // pred_check
              _
            $region34: #{mnih2015_mh_forward.7} parent=31 // pred_check_branch
              %190 = sbr.rel (0) target = $region36
            $region35: #{mnih2015_mh_forward.7} parent=31 // pred_region
              loop: start=0, step=1, limit=1
              $region37: #{mnih2015_mh_forward.7} parent=35 // loop_pre_header
                _
              $region38: #{mnih2015_mh_forward.7} parent=35 // loop_header
                %s192 = sphi 0, %s196
                %p193 = scmp.ge.s32.totalorder %s192, 1
                %s197 = sphi %s186, %s186
                %s198 = sphi %s183, %s183
              $region39: #{mnih2015_mh_forward.7} parent=35 // loop_header_branch
                %195 = sbr.rel (%p193) target = $region43
              $region40: #{mnih2015_mh_forward.7} parent=35 // loop_body
                %v199 = vld [vmem:[%s197] sm:$0xff]
                %200 = vst [vmem:[%s198] sm:$0xff] %v199
                %v201 = vld [vmem:[%s197 + $0x8] sm:$0xff]
                %202 = vst [vmem:[%s198 + $0x8] sm:$0xff] %v201
                %v203 = vld [vmem:[%s197 + $0x30] sm:$0xff]
                %204 = vst [vmem:[%s198 + $0x10] sm:$0xff] %v203
                %v205 = vld [vmem:[%s197 + $0x38] sm:$0xff]
                %206 = vst [vmem:[%s198 + $0x18] sm:$0xff] %v205
                %v207 = vld [vmem:[%s197 + $0x60] sm:$0xff]
                %208 = vst [vmem:[%s198 + $0x20] sm:$0xff] %v207
                %v209 = vld [vmem:[%s197 + $0x68] sm:$0xff]
                %210 = vst [vmem:[%s198 + $0x28] sm:$0xff] %v209
                %v211 = vld [vmem:[%s197 + $0x90] sm:$0xff]
                %212 = vst [vmem:[%s198 + $0x30] sm:$0xff] %v211
                %v213 = vld [vmem:[%s197 + $0x98] sm:$0xff]
                %214 = vst [vmem:[%s198 + $0x38] sm:$0xff] %v213
                %v215 = vld [vmem:[%s197 + $0xc0] sm:$0xff]
                %216 = vst [vmem:[%s198 + $0x40] sm:$0xff] %v215
                %v217 = vld [vmem:[%s197 + $0xc8] sm:$0xff]
                %218 = vst [vmem:[%s198 + $0x48] sm:$0xff] %v217
                %v219 = vld [vmem:[%s197 + $0xf0] sm:$0xff]
                %220 = vst [vmem:[%s198 + $0x50] sm:$0xff] %v219
                %v221 = vld [vmem:[%s197 + $0xf8] sm:$0xff]
                %222 = vst [vmem:[%s198 + $0x58] sm:$0xff] %v221
                %v223 = vld [vmem:[%s197 + $0x120] sm:$0xff]
                %224 = vst [vmem:[%s198 + $0x60] sm:$0xff] %v223
                %v225 = vld [vmem:[%s197 + $0x128] sm:$0xff]
                %226 = vst [vmem:[%s198 + $0x68] sm:$0xff] %v225
                %v227 = vld [vmem:[%s197 + $0x150] sm:$0xff]
                %228 = vst [vmem:[%s198 + $0x70] sm:$0xff] %v227
                %v229 = vld [vmem:[%s197 + $0x158] sm:$0xff]
                %230 = vst [vmem:[%s198 + $0x78] sm:$0xff] %v229
                %v231 = vld [vmem:[%s197 + $0x180] sm:$0xff]
                %232 = vst [vmem:[%s198 + $0x80] sm:$0xff] %v231
                %v233 = vld [vmem:[%s197 + $0x188] sm:$0xff]
                %234 = vst [vmem:[%s198 + $0x88] sm:$0xff] %v233
                %v235 = vld [vmem:[%s197 + $0x1b0] sm:$0xff]
                %236 = vst [vmem:[%s198 + $0x90] sm:$0xff] %v235
                %v237 = vld [vmem:[%s197 + $0x1b8] sm:$0xff]
                %238 = vst [vmem:[%s198 + $0x98] sm:$0xff] %v237
                %v239 = vld [vmem:[%s197 + $0x1e0] sm:$0xff]
                %240 = vst [vmem:[%s198 + $0xa0] sm:$0xff] %v239
                %v241 = vld [vmem:[%s197 + $0x1e8] sm:$0xff]
                %242 = vst [vmem:[%s198 + $0xa8] sm:$0xff] %v241
                %v243 = vld [vmem:[%s197 + $0x210] sm:$0xff]
                %244 = vst [vmem:[%s198 + $0xb0] sm:$0xff] %v243
                %v245 = vld [vmem:[%s197 + $0x218] sm:$0xff]
                %246 = vst [vmem:[%s198 + $0xb8] sm:$0xff] %v245
                %v247 = vld [vmem:[%s197 + $0x240] sm:$0xff]
                %248 = vst [vmem:[%s198 + $0xc0] sm:$0xff] %v247
                %v249 = vld [vmem:[%s197 + $0x248] sm:$0xff]
                %250 = vst [vmem:[%s198 + $0xc8] sm:$0xff] %v249
                %v251 = vld [vmem:[%s197 + $0x270] sm:$0xff]
                %252 = vst [vmem:[%s198 + $0xd0] sm:$0xff] %v251
                %v253 = vld [vmem:[%s197 + $0x278] sm:$0xff]
                %254 = vst [vmem:[%s198 + $0xd8] sm:$0xff] %v253
                %v255 = vld [vmem:[%s197 + $0x2a0] sm:$0xff]
                %256 = vst [vmem:[%s198 + $0xe0] sm:$0xff] %v255
                %v257 = vld [vmem:[%s197 + $0x2a8] sm:$0xff]
                %258 = vst [vmem:[%s198 + $0xe8] sm:$0xff] %v257
                %v259 = vld [vmem:[%s197 + $0x2d0] sm:$0xff]
                %260 = vst [vmem:[%s198 + $0xf0] sm:$0xff] %v259
                %v261 = vld [vmem:[%s197 + $0x2d8] sm:$0xff]
                %262 = vst [vmem:[%s198 + $0xf8] sm:$0xff] %v261
                %v263 = vld [vmem:[%s197 + $0x300] sm:$0xff]
                %264 = vst [vmem:[%s198 + $0x100] sm:$0xff] %v263
                %v265 = vld [vmem:[%s197 + $0x308] sm:$0xff]
                %266 = vst [vmem:[%s198 + $0x108] sm:$0xff] %v265
                %v267 = vld [vmem:[%s197 + $0x330] sm:$0xff]
                %268 = vst [vmem:[%s198 + $0x110] sm:$0xff] %v267
                %v269 = vld [vmem:[%s197 + $0x338] sm:$0xff]
                %270 = vst [vmem:[%s198 + $0x118] sm:$0xff] %v269
                %v271 = vld [vmem:[%s197 + $0x360] sm:$0xff]
                %272 = vst [vmem:[%s198 + $0x120] sm:$0xff] %v271
                %v273 = vld [vmem:[%s197 + $0x368] sm:$0xff]
                %274 = vst [vmem:[%s198 + $0x128] sm:$0xff] %v273
                %v275 = vld [vmem:[%s197 + $0x390] sm:$0xff]
                %276 = vst [vmem:[%s198 + $0x130] sm:$0xff] %v275
                %v277 = vld [vmem:[%s197 + $0x398] sm:$0xff]
                %278 = vst [vmem:[%s198 + $0x138] sm:$0xff] %v277
                %v279 = vld [vmem:[%s197 + $0x3c0] sm:$0xff]
                %280 = vst [vmem:[%s198 + $0x140] sm:$0xff] %v279
                %v281 = vld [vmem:[%s197 + $0x3c8] sm:$0xff]
                %282 = vst [vmem:[%s198 + $0x148] sm:$0xff] %v281
                %v283 = vld [vmem:[%s197 + $0x3f0] sm:$0xff]
                %284 = vst [vmem:[%s198 + $0x150] sm:$0xff] %v283
                %v285 = vld [vmem:[%s197 + $0x3f8] sm:$0xff]
                %286 = vst [vmem:[%s198 + $0x158] sm:$0xff] %v285
                %v287 = vld [vmem:[%s197 + $0x420] sm:$0xff]
                %288 = vst [vmem:[%s198 + $0x160] sm:$0xff] %v287
                %v289 = vld [vmem:[%s197 + $0x428] sm:$0xff]
                %290 = vst [vmem:[%s198 + $0x168] sm:$0xff] %v289
                %v291 = vld [vmem:[%s197 + $0x450] sm:$0xff]
                %292 = vst [vmem:[%s198 + $0x170] sm:$0xff] %v291
                %v293 = vld [vmem:[%s197 + $0x458] sm:$0xff]
                %294 = vst [vmem:[%s198 + $0x178] sm:$0xff] %v293
              $region41: #{mnih2015_mh_forward.7} parent=35 // loop_footer
                %s196 = sadd.s32 1, %s192
              $region42: #{mnih2015_mh_forward.7} parent=35 // loop_footer_branch
                %191 = sbr.rel target = $region38
              $region43: #{mnih2015_mh_forward.7} parent=35 // loop_exit
                _
            $region36: #{mnih2015_mh_forward.7} parent=31 // pred_fallthru
              _
            // Predicated region
            $region44: #{mnih2015_mh_forward.7} parent=31 // pred_check
              _
            $region45: #{mnih2015_mh_forward.7} parent=31 // pred_check_branch
              %296 = sbr.rel target = $region47
            $region46: #{mnih2015_mh_forward.7} parent=31 // pred_region
              _
            $region47: #{mnih2015_mh_forward.7} parent=31 // pred_fallthru
              _
          $region32: #{mnih2015_mh_forward.7} parent=27 // pred_fallthru
            _
          %297 = vnop
        $region28: #{mnih2015_mh_forward.7} parent=23 // pred_fallthru
          _
        // Predicated region
        $region48: #{mnih2015_mh_forward.7} parent=23 // pred_check
          %p298 = pneg %p78
        $region49: #{mnih2015_mh_forward.7} parent=23 // pred_check_branch
          %300 = sbr.rel (%p298) target = $region51
        $region50: #{mnih2015_mh_forward.7} parent=23 // pred_region
          %s301 = smul.u32 4, %s11
          %p302 = scmp.lt.s32.totalorder %s301, 11
          %s303 = scalar_select %p302, %s301, 11
          %s304 = scalar_lea.vmem %s2, %s303
          %s305 = smul.u32 4, %s11
        $region51: #{mnih2015_mh_forward.7} parent=23 // pred_fallthru
          _
        // Predicated region
        $region52: #{mnih2015_mh_forward.7} parent=23 // pred_check
          %p306 = pneg %p104
        $region53: #{mnih2015_mh_forward.7} parent=23 // pred_check_branch
          %308 = sbr.rel (%p306) target = $region55
        $region54: #{mnih2015_mh_forward.7} parent=23 // pred_region
          %s309 = smul.u32 64, %s11
          %p310 = scmp.lt.s32.totalorder %s309, 191
          %s311 = scalar_select %p310, %s309, 191
          %s312 = smul.addr %s311, 4
          %s313 = scalar_lea.vmem %s3, %s312
          %s314 = smul.u32 64, %s11
        $region55: #{mnih2015_mh_forward.7} parent=23 // pred_fallthru
          _
      $region24: #{mnih2015_mh_forward.7} parent=5 // pred_fallthru
        _
      %p315 = scmp.le.s32.totalorder 1, %s11
      %p316 = scmp.lt.s32.totalorder %s11, 4
      %p317 = pnand %p315, %p316
      %p318 = pneg %p317
      // Predicated region
      $region56: #{mnih2015_mh_forward.7} parent=5 // pred_check
        _
      $region57: #{mnih2015_mh_forward.7} parent=5 // pred_check_branch
        %320 = sbr.rel (%p317) target = $region59
      $region58: #{mnih2015_mh_forward.7} parent=5 // pred_region
        %s321 = ssub.s32 %s11, 1
        %s322 = sand.u32 %s45, 1
        %s323 = sand.u32 %s45, 1
        %s324 = smul.addr %s323, 384
        %s325 = scalar_lea.vmem [#allocation2], %s324
        // Predicated region
        $region60: #{mnih2015_mh_forward.7} parent=58 // pred_check
          %p326 = pneg %p58
        $region61: #{mnih2015_mh_forward.7} parent=58 // pred_check_branch
          %328 = sbr.rel (%p326) target = $region63
        $region62: #{mnih2015_mh_forward.7} parent=58 // pred_region
          _
        $region63: #{mnih2015_mh_forward.7} parent=58 // pred_fallthru
          _
        %p329 = pneg %p32
        %p330 = pneg %p29
        %s331 = sand.u32 %s45, 1
        %s332 = sand.u32 %s45, 1
        %s333 = smul.addr %s332, 384
        %s334 = scalar_lea.vmem [#allocation2], %s333
        %p335 = pneg %p58
        %p336 = pneg %p55
        %s337 = smul.u32 4, %s16
        %p338 = scmp.lt.s32.totalorder %s337, 11
        %s339 = scalar_select %p338, %s337, 11
        %s340 = scalar_lea.vmem %s2, %s339
        %p341 = pneg %p84
        %p342 = pneg %p81
        %s343 = smul.u32 64, %s16
        %p344 = scmp.lt.s32.totalorder %s343, 191
        %s345 = scalar_select %p344, %s343, 191
        %s346 = smul.addr %s345, 4
        %s347 = scalar_lea.vmem %s3, %s346
        %p348 = pneg %p110
        %p349 = pneg %p107
        %p350 = pneg %p131
        %p351 = pneg %p128
        %p352 = pneg %p152
        %p353 = pneg %p149
        %s354 = smul.u32 4, %s16
        %s355 = smul.u32 4, %s16
        %p356 = scmp.lt.s32.totalorder %s355, 11
        %s357 = scalar_select %p356, %s355, 11
        %s358 = scalar_lea.vmem %s2, %s357
        %s359 = smul.u32 4, %s16
        %s360 = smul.u32 64, %s16
        %p361 = scmp.lt.s32.totalorder %s360, 191
        %s362 = scalar_select %p361, %s360, 191
        %s363 = smul.addr %s362, 4
        %s364 = scalar_lea.vmem %s3, %s363
        %s365 = smul.u32 64, %s16
        %p367 = scmp.eq.s32.totalorder %s16, 0
        // Predicated region
        $region64: #{mnih2015_mh_forward.7} parent=58 // pred_check
          %p368 = pneg %p367
        $region65: #{mnih2015_mh_forward.7} parent=58 // pred_check_branch
          %370 = sbr.rel (%p368) target = $region67
        $region66: #{mnih2015_mh_forward.7} parent=58 // pred_region
          %v371 = vld [vmem:[%s4] sm:$0x1]
          %v373 = vlaneseq
          %v374 = vshrl.u32 %v373, 7
          %v375 = vsub.s32 0, %v374
          %v376 = vrot.slane %v371, %v375
          %v378 = vadd.f32 %v376, 0.0
          %379 = vst [vmem:[%s5] sm:$0xff] %v378
          %380 = vst [vmem:[%s5 + $0x8] sm:$0xff] %v378
        $region67: #{mnih2015_mh_forward.7} parent=58 // pred_fallthru
          _
        %v381 = vld [vmem:[%s0] sm:$0xff]
        %v382 = vld [vmem:[%s0 + $0x8] sm:$0xff]
        %v383 = vld [vmem:[%s325] sm:$0xff]
        %v384 = vld [vmem:[%s325 + $0x8] sm:$0xff]
        %v385 = vld [vmem:[%s325 + $0x10] sm:$0xff]
        %v386 = vld [vmem:[%s325 + $0x18] sm:$0xff]
        %v387 = vld [vmem:[%s325 + $0x20] sm:$0xff]
        %v388 = vld [vmem:[%s325 + $0x28] sm:$0xff]
        %v389 = vld [vmem:[%s325 + $0x30] sm:$0xff]
        %v390 = vld [vmem:[%s325 + $0x38] sm:$0xff]
        %v391 = vld [vmem:[%s325 + $0x40] sm:$0xff]
        %v392 = vld [vmem:[%s325 + $0x48] sm:$0xff]
        %v393 = vld [vmem:[%s325 + $0x50] sm:$0xff]
        %v394 = vld [vmem:[%s325 + $0x58] sm:$0xff]
        %v395 = vld [vmem:[%s325 + $0x60] sm:$0xff]
        %v396 = vld [vmem:[%s325 + $0x68] sm:$0xff]
        %v397 = vld [vmem:[%s325 + $0x70] sm:$0xff]
        %v398 = vld [vmem:[%s325 + $0x78] sm:$0xff]
        %v399 = vld [vmem:[%s325 + $0x80] sm:$0xff]
        %v400 = vld [vmem:[%s325 + $0x88] sm:$0xff]
        %v401 = vld [vmem:[%s325 + $0x90] sm:$0xff]
        %v402 = vld [vmem:[%s325 + $0x98] sm:$0xff]
        %v403 = vld [vmem:[%s325 + $0xa0] sm:$0xff]
        %v404 = vld [vmem:[%s325 + $0xa8] sm:$0xff]
        %v405 = vld [vmem:[%s325 + $0xb0] sm:$0xff]
        %v406 = vld [vmem:[%s325 + $0xb8] sm:$0xff]
        %v407 = vld [vmem:[%s325 + $0xc0] sm:$0xff]
        %v408 = vld [vmem:[%s325 + $0xc8] sm:$0xff]
        %v409 = vld [vmem:[%s325 + $0xd0] sm:$0xff]
        %v410 = vld [vmem:[%s325 + $0xd8] sm:$0xff]
        %v411 = vld [vmem:[%s325 + $0xe0] sm:$0xff]
        %v412 = vld [vmem:[%s325 + $0xe8] sm:$0xff]
        %v413 = vld [vmem:[%s325 + $0xf0] sm:$0xff]
        %v414 = vld [vmem:[%s325 + $0xf8] sm:$0xff]
        %v415 = vld [vmem:[%s325 + $0x100] sm:$0xff]
        %v416 = vld [vmem:[%s325 + $0x108] sm:$0xff]
        %v417 = vld [vmem:[%s325 + $0x110] sm:$0xff]
        %v418 = vld [vmem:[%s325 + $0x118] sm:$0xff]
        %v419 = vld [vmem:[%s325 + $0x120] sm:$0xff]
        %v420 = vld [vmem:[%s325 + $0x128] sm:$0xff]
        %v421 = vld [vmem:[%s325 + $0x130] sm:$0xff]
        %v422 = vld [vmem:[%s325 + $0x138] sm:$0xff]
        %v423 = vld [vmem:[%s325 + $0x140] sm:$0xff]
        %v424 = vld [vmem:[%s325 + $0x148] sm:$0xff]
        %v425 = vld [vmem:[%s325 + $0x150] sm:$0xff]
        %v426 = vld [vmem:[%s325 + $0x158] sm:$0xff]
        %v427 = vld [vmem:[%s325 + $0x160] sm:$0xff]
        %v428 = vld [vmem:[%s325 + $0x168] sm:$0xff]
        %v429 = vld [vmem:[%s325 + $0x170] sm:$0xff]
        %v430 = vld [vmem:[%s325 + $0x178] sm:$0xff]
        %v431 = vld [vmem:[%s358] sm:$0xf]
        %v433 = vlaneseq
        %v434 = vshrl.u32 %v433, 7
        %v435 = vsub.s32 0, %v434
        %v436 = vrot.slane %v431, %v435
        %v437 = vlaneseq
        %v438 = vshrl.u32 %v437, 7
        %v439 = vsub.s32 1, %v438
        %v440 = vrot.slane %v431, %v439
        %v441 = vlaneseq
        %v442 = vshrl.u32 %v441, 7
        %v443 = vsub.s32 2, %v442
        %v444 = vrot.slane %v431, %v443
        %v445 = vlaneseq
        %v446 = vshrl.u32 %v445, 7
        %v447 = vsub.s32 3, %v446
        %v448 = vrot.slane %v431, %v447
        %v455 = vunpack.c.l.b16 %v381
        %v456 = vunpack.c.h.b16 %v381
        %v457 = vunpack.c.l.b16 %v382
        %v458 = vunpack.c.h.b16 %v382
        %v459 = vpack.c.b16 %v457, %v455
        %v460 = vpack.c.b16 %v458, %v456
        %v510 = vunpack.c.l.b16 %v383
        %v511 = vunpack.c.h.b16 %v383
        %v512 = vunpack.c.l.b16 %v384
        %v513 = vunpack.c.h.b16 %v384
        %v514 = vunpack.c.l.b16 %v385
        %v515 = vunpack.c.h.b16 %v385
        %v516 = vunpack.c.l.b16 %v386
        %v517 = vunpack.c.h.b16 %v386
        %v518 = vunpack.c.l.b16 %v387
        %v519 = vunpack.c.h.b16 %v387
        %v520 = vunpack.c.l.b16 %v388
        %v521 = vunpack.c.h.b16 %v388
        %v522 = vunpack.c.l.b16 %v389
        %v523 = vunpack.c.h.b16 %v389
        %v524 = vunpack.c.l.b16 %v390
        %v525 = vunpack.c.h.b16 %v390
        %v526 = vunpack.c.l.b16 %v391
        %v527 = vunpack.c.h.b16 %v391
        %v528 = vunpack.c.l.b16 %v392
        %v529 = vunpack.c.h.b16 %v392
        %v530 = vunpack.c.l.b16 %v393
        %v531 = vunpack.c.h.b16 %v393
        %v532 = vunpack.c.l.b16 %v394
        %v533 = vunpack.c.h.b16 %v394
        %v534 = vunpack.c.l.b16 %v395
        %v535 = vunpack.c.h.b16 %v395
        %v536 = vunpack.c.l.b16 %v396
        %v537 = vunpack.c.h.b16 %v396
        %v538 = vunpack.c.l.b16 %v397
        %v539 = vunpack.c.h.b16 %v397
        %v540 = vunpack.c.l.b16 %v398
        %v541 = vunpack.c.h.b16 %v398
        %v542 = vunpack.c.l.b16 %v399
        %v543 = vunpack.c.h.b16 %v399
        %v544 = vunpack.c.l.b16 %v400
        %v545 = vunpack.c.h.b16 %v400
        %v546 = vunpack.c.l.b16 %v401
        %v547 = vunpack.c.h.b16 %v401
        %v548 = vunpack.c.l.b16 %v402
        %v549 = vunpack.c.h.b16 %v402
        %v550 = vunpack.c.l.b16 %v403
        %v551 = vunpack.c.h.b16 %v403
        %v552 = vunpack.c.l.b16 %v404
        %v553 = vunpack.c.h.b16 %v404
        %v554 = vunpack.c.l.b16 %v405
        %v555 = vunpack.c.h.b16 %v405
        %v556 = vunpack.c.l.b16 %v406
        %v557 = vunpack.c.h.b16 %v406
        %v558 = vunpack.c.l.b16 %v407
        %v559 = vunpack.c.h.b16 %v407
        %v560 = vunpack.c.l.b16 %v408
        %v561 = vunpack.c.h.b16 %v408
        %v562 = vunpack.c.l.b16 %v409
        %v563 = vunpack.c.h.b16 %v409
        %v564 = vunpack.c.l.b16 %v410
        %v565 = vunpack.c.h.b16 %v410
        %v566 = vunpack.c.l.b16 %v411
        %v567 = vunpack.c.h.b16 %v411
        %v568 = vunpack.c.l.b16 %v412
        %v569 = vunpack.c.h.b16 %v412
        %v570 = vunpack.c.l.b16 %v413
        %v571 = vunpack.c.h.b16 %v413
        %v572 = vunpack.c.l.b16 %v414
        %v573 = vunpack.c.h.b16 %v414
        %v574 = vunpack.c.l.b16 %v415
        %v575 = vunpack.c.h.b16 %v415
        %v576 = vunpack.c.l.b16 %v416
        %v577 = vunpack.c.h.b16 %v416
        %v578 = vunpack.c.l.b16 %v417
        %v579 = vunpack.c.h.b16 %v417
        %v580 = vunpack.c.l.b16 %v418
        %v581 = vunpack.c.h.b16 %v418
        %v582 = vunpack.c.l.b16 %v419
        %v583 = vunpack.c.h.b16 %v419
        %v584 = vunpack.c.l.b16 %v420
        %v585 = vunpack.c.h.b16 %v420
        %v586 = vunpack.c.l.b16 %v421
        %v587 = vunpack.c.h.b16 %v421
        %v588 = vunpack.c.l.b16 %v422
        %v589 = vunpack.c.h.b16 %v422
        %v590 = vunpack.c.l.b16 %v423
        %v591 = vunpack.c.h.b16 %v423
        %v592 = vunpack.c.l.b16 %v424
        %v593 = vunpack.c.h.b16 %v424
        %v594 = vunpack.c.l.b16 %v425
        %v595 = vunpack.c.h.b16 %v425
        %v596 = vunpack.c.l.b16 %v426
        %v597 = vunpack.c.h.b16 %v426
        %v598 = vunpack.c.l.b16 %v427
        %v599 = vunpack.c.h.b16 %v427
        %v600 = vunpack.c.l.b16 %v428
        %v601 = vunpack.c.h.b16 %v428
        %v602 = vunpack.c.l.b16 %v429
        %v603 = vunpack.c.h.b16 %v429
        %v604 = vunpack.c.l.b16 %v430
        %v605 = vunpack.c.h.b16 %v430
        %v606 = vpack.c.b16 %v514, %v510
        %v607 = vpack.c.b16 %v515, %v511
        %v608 = vpack.c.b16 %v516, %v512
        %v609 = vpack.c.b16 %v517, %v513
        %v610 = vpack.c.b16 %v522, %v518
        %v611 = vpack.c.b16 %v523, %v519
        %v612 = vpack.c.b16 %v524, %v520
        %v613 = vpack.c.b16 %v525, %v521
        %v614 = vpack.c.b16 %v530, %v526
        %v615 = vpack.c.b16 %v531, %v527
        %v616 = vpack.c.b16 %v532, %v528
        %v617 = vpack.c.b16 %v533, %v529
        %v618 = vpack.c.b16 %v538, %v534
        %v619 = vpack.c.b16 %v539, %v535
        %v620 = vpack.c.b16 %v540, %v536
        %v621 = vpack.c.b16 %v541, %v537
        %v622 = vpack.c.b16 %v546, %v542
        %v623 = vpack.c.b16 %v547, %v543
        %v624 = vpack.c.b16 %v548, %v544
        %v625 = vpack.c.b16 %v549, %v545
        %v626 = vpack.c.b16 %v554, %v550
        %v627 = vpack.c.b16 %v555, %v551
        %v628 = vpack.c.b16 %v556, %v552
        %v629 = vpack.c.b16 %v557, %v553
        %v630 = vpack.c.b16 %v562, %v558
        %v631 = vpack.c.b16 %v563, %v559
        %v632 = vpack.c.b16 %v564, %v560
        %v633 = vpack.c.b16 %v565, %v561
        %v634 = vpack.c.b16 %v570, %v566
        %v635 = vpack.c.b16 %v571, %v567
        %v636 = vpack.c.b16 %v572, %v568
        %v637 = vpack.c.b16 %v573, %v569
        %v638 = vpack.c.b16 %v578, %v574
        %v639 = vpack.c.b16 %v579, %v575
        %v640 = vpack.c.b16 %v580, %v576
        %v641 = vpack.c.b16 %v581, %v577
        %v642 = vpack.c.b16 %v586, %v582
        %v643 = vpack.c.b16 %v587, %v583
        %v644 = vpack.c.b16 %v588, %v584
        %v645 = vpack.c.b16 %v589, %v585
        %v646 = vpack.c.b16 %v594, %v590
        %v647 = vpack.c.b16 %v595, %v591
        %v648 = vpack.c.b16 %v596, %v592
        %v649 = vpack.c.b16 %v597, %v593
        %v650 = vpack.c.b16 %v602, %v598
        %v651 = vpack.c.b16 %v603, %v599
        %v652 = vpack.c.b16 %v604, %v600
        %v653 = vpack.c.b16 %v605, %v601
        %vm702 = vcmask 523264
        %v704 = vsel %vm702, %v460, 0
        %706 = vmatprep.subr.bf16.mxu0 %v607
        %707 = vmatpush1.bf16.msra.mxu0 %v606
        %708 = vmatprep.subr.bf16.mxu0 %v611
        %709 = vmatpush1.bf16.msra.mxu0 %v610
        %710 = vmatprep.subr.bf16.mxu0 %v615
        %711 = vmatpush1.bf16.msra.mxu0 %v614
        %712 = vmatprep.subr.bf16.mxu0 %v619
        %713 = vmatpush1.bf16.msra.mxu0 %v618
        %714 = vmatprep.subr.bf16.mxu0 %v623
        %715 = vmatpush1.bf16.msra.mxu0 %v622
        %716 = vmatprep.subr.bf16.mxu0 %v627
        %717 = vmatpush1.bf16.msra.mxu0 %v626
        %718 = vmatprep.subr.bf16.mxu0 %v631
        %719 = vmatpush1.bf16.msra.mxu0 %v630
        %720 = vmatprep.subr.bf16.mxu0 %v635
        %721 = vmatpush1.bf16.msra.mxu0 %v634
        %722 = vmatprep.subr.bf16.mxu0 %v639
        %723 = vmatpush1.bf16.msra.mxu0 %v638
        %724 = vmatprep.subr.bf16.mxu0 %v643
        %725 = vmatpush1.bf16.msra.mxu0 %v642
        %726 = vmatprep.subr.bf16.mxu0 %v647
        %727 = vmatpush1.bf16.msra.mxu0 %v646
        %728 = vmatprep.subr.bf16.mxu0 %v651
        %729 = vmatpush1.bf16.msra.mxu0 %v650
        %730 = vmatprep.subr.bf16.mxu0 0
        %731 = vmatpush1.bf16.msra.mxu0 0
        %732 = vmatprep.subr.bf16.mxu0 0
        %733 = vmatpush1.bf16.msra.mxu0 0
        %734 = vmatprep.subr.bf16.mxu0 0
        %735 = vmatpush1.bf16.msra.mxu0 0
        %736 = vmatprep.subr.bf16.mxu0 0
        %737 = vmatpush1.bf16.msra.mxu0 0
        %738 = vmatprep.mubr.bf16.mxu0 %v704
        %739 = vmatmul.mubr.bf16.gmra.mrb[0].mxu0 %v459
        %v740 = vpop.f32.mrb[0].mxu0
        %v741 = vadd.f32 %v436, %v740
        %v742 = vpop.f32.mrb[0].mxu0
        %v743 = vadd.f32 %v440, %v742
        %v744 = vpop.f32.mrb[0].mxu0
        %v745 = vadd.f32 %v436, %v744
        %v746 = vpop.f32.mrb[0].mxu0
        %v747 = vadd.f32 %v440, %v746
        %748 = vdwg.mxu0
        %749 = vmatprep.subr.bf16.mxu0 %v609
        %750 = vmatpush1.bf16.msra.mxu0 %v608
        %751 = vmatprep.subr.bf16.mxu0 %v613
        %752 = vmatpush1.bf16.msra.mxu0 %v612
        %753 = vmatprep.subr.bf16.mxu0 %v617
        %754 = vmatpush1.bf16.msra.mxu0 %v616
        %755 = vmatprep.subr.bf16.mxu0 %v621
        %756 = vmatpush1.bf16.msra.mxu0 %v620
        %757 = vmatprep.subr.bf16.mxu0 %v625
        %758 = vmatpush1.bf16.msra.mxu0 %v624
        %759 = vmatprep.subr.bf16.mxu0 %v629
        %760 = vmatpush1.bf16.msra.mxu0 %v628
        %761 = vmatprep.subr.bf16.mxu0 %v633
        %762 = vmatpush1.bf16.msra.mxu0 %v632
        %763 = vmatprep.subr.bf16.mxu0 %v637
        %764 = vmatpush1.bf16.msra.mxu0 %v636
        %765 = vmatprep.subr.bf16.mxu0 %v641
        %766 = vmatpush1.bf16.msra.mxu0 %v640
        %767 = vmatprep.subr.bf16.mxu0 %v645
        %768 = vmatpush1.bf16.msra.mxu0 %v644
        %769 = vmatprep.subr.bf16.mxu0 %v649
        %770 = vmatpush1.bf16.msra.mxu0 %v648
        %771 = vmatprep.subr.bf16.mxu0 %v653
        %772 = vmatpush1.bf16.msra.mxu0 %v652
        %773 = vmatprep.subr.bf16.mxu0 0
        %774 = vmatpush1.bf16.msra.mxu0 0
        %775 = vmatprep.subr.bf16.mxu0 0
        %776 = vmatpush1.bf16.msra.mxu0 0
        %777 = vmatprep.subr.bf16.mxu0 0
        %778 = vmatpush1.bf16.msra.mxu0 0
        %779 = vmatprep.subr.bf16.mxu0 0
        %780 = vmatpush1.bf16.msra.mxu0 0
        %781 = vmatprep.mubr.bf16.mxu0 %v704
        %782 = vmatmul.mubr.bf16.gmra.mrb[0].mxu0 %v459
        %v783 = vpop.f32.mrb[0].mxu0
        %v784 = vadd.f32 %v444, %v783
        %v785 = vpop.f32.mrb[0].mxu0
        %v786 = vadd.f32 %v448, %v785
        %v787 = vpop.f32.mrb[0].mxu0
        %v788 = vadd.f32 %v444, %v787
        %v789 = vpop.f32.mrb[0].mxu0
        %v790 = vadd.f32 %v448, %v789
        %791 = vdwg.mxu0
        %v792 = vmax.f32 %v741, 0.0
        %v793 = vmax.f32 %v743, 0.0
        %v794 = vmax.f32 %v784, 0.0
        %v795 = vmax.f32 %v786, 0.0
        %v796 = vmax.f32 %v745, 0.0
        %v797 = vmax.f32 %v747, 0.0
        %v798 = vmax.f32 %v788, 0.0
        %v799 = vmax.f32 %v790, 0.0
        %v800 = vld [vmem:[%s5] sm:$0xff]
        %v801 = vld [vmem:[%s5 + $0x8] sm:$0xff]
        %v802 = vpack.c.bf16 %v796, %v792
        %v803 = vpack.c.bf16 %v797, %v793
        %v804 = vpack.c.bf16 %v798, %v794
        %v805 = vpack.c.bf16 %v799, %v795
        %v806 = vld [vmem:[%s364] sm:$0xf]
        %v807 = vld [vmem:[%s364 + $0x4] sm:$0xf]
        %v808 = vld [vmem:[%s364 + $0x8] sm:$0xf]
        %v809 = vld [vmem:[%s364 + $0xc] sm:$0xf]
        %v810 = vld [vmem:[%s364 + $0x10] sm:$0xf]
        %v811 = vld [vmem:[%s364 + $0x14] sm:$0xf]
        %v812 = vld [vmem:[%s364 + $0x18] sm:$0xf]
        %v813 = vld [vmem:[%s364 + $0x1c] sm:$0xf]
        %v814 = vld [vmem:[%s364 + $0x20] sm:$0xf]
        %v815 = vld [vmem:[%s364 + $0x24] sm:$0xf]
        %v816 = vld [vmem:[%s364 + $0x28] sm:$0xf]
        %v817 = vld [vmem:[%s364 + $0x2c] sm:$0xf]
        %v818 = vld [vmem:[%s364 + $0x30] sm:$0xf]
        %v819 = vld [vmem:[%s364 + $0x34] sm:$0xf]
        %v820 = vld [vmem:[%s364 + $0x38] sm:$0xf]
        %v821 = vld [vmem:[%s364 + $0x3c] sm:$0xf]
        %v822 = vld [vmem:[%s364 + $0x40] sm:$0xf]
        %v823 = vld [vmem:[%s364 + $0x44] sm:$0xf]
        %v824 = vld [vmem:[%s364 + $0x48] sm:$0xf]
        %v825 = vld [vmem:[%s364 + $0x4c] sm:$0xf]
        %v826 = vld [vmem:[%s364 + $0x50] sm:$0xf]
        %v827 = vld [vmem:[%s364 + $0x54] sm:$0xf]
        %v828 = vld [vmem:[%s364 + $0x58] sm:$0xf]
        %v829 = vld [vmem:[%s364 + $0x5c] sm:$0xf]
        %v830 = vld [vmem:[%s364 + $0x60] sm:$0xf]
        %v831 = vld [vmem:[%s364 + $0x64] sm:$0xf]
        %v832 = vld [vmem:[%s364 + $0x68] sm:$0xf]
        %v833 = vld [vmem:[%s364 + $0x6c] sm:$0xf]
        %v834 = vld [vmem:[%s364 + $0x70] sm:$0xf]
        %v835 = vld [vmem:[%s364 + $0x74] sm:$0xf]
        %v836 = vld [vmem:[%s364 + $0x78] sm:$0xf]
        %v837 = vld [vmem:[%s364 + $0x7c] sm:$0xf]
        %v838 = vld [vmem:[%s364 + $0x80] sm:$0xf]
        %v839 = vld [vmem:[%s364 + $0x84] sm:$0xf]
        %v840 = vld [vmem:[%s364 + $0x88] sm:$0xf]
        %v841 = vld [vmem:[%s364 + $0x8c] sm:$0xf]
        %v842 = vld [vmem:[%s364 + $0x90] sm:$0xf]
        %v843 = vld [vmem:[%s364 + $0x94] sm:$0xf]
        %v844 = vld [vmem:[%s364 + $0x98] sm:$0xf]
        %v845 = vld [vmem:[%s364 + $0x9c] sm:$0xf]
        %v846 = vld [vmem:[%s364 + $0xa0] sm:$0xf]
        %v847 = vld [vmem:[%s364 + $0xa4] sm:$0xf]
        %v848 = vld [vmem:[%s364 + $0xa8] sm:$0xf]
        %v849 = vld [vmem:[%s364 + $0xac] sm:$0xf]
        %v850 = vld [vmem:[%s364 + $0xb0] sm:$0xf]
        %v851 = vld [vmem:[%s364 + $0xb4] sm:$0xf]
        %v852 = vld [vmem:[%s364 + $0xb8] sm:$0xf]
        %v853 = vld [vmem:[%s364 + $0xbc] sm:$0xf]
        %v854 = vld [vmem:[%s364 + $0xc0] sm:$0xf]
        %v855 = vld [vmem:[%s364 + $0xc4] sm:$0xf]
        %v856 = vld [vmem:[%s364 + $0xc8] sm:$0xf]
        %v857 = vld [vmem:[%s364 + $0xcc] sm:$0xf]
        %v858 = vld [vmem:[%s364 + $0xd0] sm:$0xf]
        %v859 = vld [vmem:[%s364 + $0xd4] sm:$0xf]
        %v860 = vld [vmem:[%s364 + $0xd8] sm:$0xf]
        %v861 = vld [vmem:[%s364 + $0xdc] sm:$0xf]
        %v862 = vld [vmem:[%s364 + $0xe0] sm:$0xf]
        %v863 = vld [vmem:[%s364 + $0xe4] sm:$0xf]
        %v864 = vld [vmem:[%s364 + $0xe8] sm:$0xf]
        %v865 = vld [vmem:[%s364 + $0xec] sm:$0xf]
        %v866 = vld [vmem:[%s364 + $0xf0] sm:$0xf]
        %v867 = vld [vmem:[%s364 + $0xf4] sm:$0xf]
        %v868 = vld [vmem:[%s364 + $0xf8] sm:$0xf]
        %v869 = vld [vmem:[%s364 + $0xfc] sm:$0xf]
        %v934 = vunpack.c.l.b16 %v806
        %v935 = vunpack.c.l.b16 %v807
        %v936 = vunpack.c.l.b16 %v808
        %v937 = vunpack.c.l.b16 %v809
        %v938 = vunpack.c.l.b16 %v810
        %v939 = vunpack.c.l.b16 %v811
        %v940 = vunpack.c.l.b16 %v812
        %v941 = vunpack.c.l.b16 %v813
        %v942 = vunpack.c.l.b16 %v814
        %v943 = vunpack.c.l.b16 %v815
        %v944 = vunpack.c.l.b16 %v816
        %v945 = vunpack.c.l.b16 %v817
        %v946 = vunpack.c.l.b16 %v818
        %v947 = vunpack.c.l.b16 %v819
        %v948 = vunpack.c.l.b16 %v820
        %v949 = vunpack.c.l.b16 %v821
        %v950 = vunpack.c.l.b16 %v822
        %v951 = vunpack.c.l.b16 %v823
        %v952 = vunpack.c.l.b16 %v824
        %v953 = vunpack.c.l.b16 %v825
        %v954 = vunpack.c.l.b16 %v826
        %v955 = vunpack.c.l.b16 %v827
        %v956 = vunpack.c.l.b16 %v828
        %v957 = vunpack.c.l.b16 %v829
        %v958 = vunpack.c.l.b16 %v830
        %v959 = vunpack.c.l.b16 %v831
        %v960 = vunpack.c.l.b16 %v832
        %v961 = vunpack.c.l.b16 %v833
        %v962 = vunpack.c.l.b16 %v834
        %v963 = vunpack.c.l.b16 %v835
        %v964 = vunpack.c.l.b16 %v836
        %v965 = vunpack.c.l.b16 %v837
        %v966 = vunpack.c.l.b16 %v838
        %v967 = vunpack.c.l.b16 %v839
        %v968 = vunpack.c.l.b16 %v840
        %v969 = vunpack.c.l.b16 %v841
        %v970 = vunpack.c.l.b16 %v842
        %v971 = vunpack.c.l.b16 %v843
        %v972 = vunpack.c.l.b16 %v844
        %v973 = vunpack.c.l.b16 %v845
        %v974 = vunpack.c.l.b16 %v846
        %v975 = vunpack.c.l.b16 %v847
        %v976 = vunpack.c.l.b16 %v848
        %v977 = vunpack.c.l.b16 %v849
        %v978 = vunpack.c.l.b16 %v850
        %v979 = vunpack.c.l.b16 %v851
        %v980 = vunpack.c.l.b16 %v852
        %v981 = vunpack.c.l.b16 %v853
        %v982 = vunpack.c.l.b16 %v854
        %v983 = vunpack.c.l.b16 %v855
        %v984 = vunpack.c.l.b16 %v856
        %v985 = vunpack.c.l.b16 %v857
        %v986 = vunpack.c.l.b16 %v858
        %v987 = vunpack.c.l.b16 %v859
        %v988 = vunpack.c.l.b16 %v860
        %v989 = vunpack.c.l.b16 %v861
        %v990 = vunpack.c.l.b16 %v862
        %v991 = vunpack.c.l.b16 %v863
        %v992 = vunpack.c.l.b16 %v864
        %v993 = vunpack.c.l.b16 %v865
        %v994 = vunpack.c.l.b16 %v866
        %v995 = vunpack.c.l.b16 %v867
        %v996 = vunpack.c.l.b16 %v868
        %v997 = vunpack.c.l.b16 %v869
        %v998 = vpack.c.b16 %v935, %v934
        %v999 = vpack.c.b16 %v937, %v936
        %v1000 = vpack.c.b16 %v939, %v938
        %v1001 = vpack.c.b16 %v941, %v940
        %v1002 = vpack.c.b16 %v943, %v942
        %v1003 = vpack.c.b16 %v945, %v944
        %v1004 = vpack.c.b16 %v947, %v946
        %v1005 = vpack.c.b16 %v949, %v948
        %v1006 = vpack.c.b16 %v951, %v950
        %v1007 = vpack.c.b16 %v953, %v952
        %v1008 = vpack.c.b16 %v955, %v954
        %v1009 = vpack.c.b16 %v957, %v956
        %v1010 = vpack.c.b16 %v959, %v958
        %v1011 = vpack.c.b16 %v961, %v960
        %v1012 = vpack.c.b16 %v963, %v962
        %v1013 = vpack.c.b16 %v965, %v964
        %v1014 = vpack.c.b16 %v967, %v966
        %v1015 = vpack.c.b16 %v969, %v968
        %v1016 = vpack.c.b16 %v971, %v970
        %v1017 = vpack.c.b16 %v973, %v972
        %v1018 = vpack.c.b16 %v975, %v974
        %v1019 = vpack.c.b16 %v977, %v976
        %v1020 = vpack.c.b16 %v979, %v978
        %v1021 = vpack.c.b16 %v981, %v980
        %v1022 = vpack.c.b16 %v983, %v982
        %v1023 = vpack.c.b16 %v985, %v984
        %v1024 = vpack.c.b16 %v987, %v986
        %v1025 = vpack.c.b16 %v989, %v988
        %v1026 = vpack.c.b16 %v991, %v990
        %v1027 = vpack.c.b16 %v993, %v992
        %v1028 = vpack.c.b16 %v995, %v994
        %v1029 = vpack.c.b16 %v997, %v996
        %1062 = vmatprep.subr.bf16.mxu0 0
        %1063 = vmatpush1.bf16.msra.mxu0 %v998
        %1064 = vmatprep.subr.bf16.mxu0 0
        %1065 = vmatpush1.bf16.msra.mxu0 %v999
        %1066 = vmatprep.subr.bf16.mxu0 0
        %1067 = vmatpush1.bf16.msra.mxu0 %v1000
        %1068 = vmatprep.subr.bf16.mxu0 0
        %1069 = vmatpush1.bf16.msra.mxu0 %v1001
        %1070 = vmatprep.subr.bf16.mxu0 0
        %1071 = vmatpush1.bf16.msra.mxu0 %v1002
        %1072 = vmatprep.subr.bf16.mxu0 0
        %1073 = vmatpush1.bf16.msra.mxu0 %v1003
        %1074 = vmatprep.subr.bf16.mxu0 0
        %1075 = vmatpush1.bf16.msra.mxu0 %v1004
        %1076 = vmatprep.subr.bf16.mxu0 0
        %1077 = vmatpush1.bf16.msra.mxu0 %v1005
        %1078 = vmatprep.subr.bf16.mxu0 0
        %1079 = vmatpush1.bf16.msra.mxu0 %v1006
        %1080 = vmatprep.subr.bf16.mxu0 0
        %1081 = vmatpush1.bf16.msra.mxu0 %v1007
        %1082 = vmatprep.subr.bf16.mxu0 0
        %1083 = vmatpush1.bf16.msra.mxu0 %v1008
        %1084 = vmatprep.subr.bf16.mxu0 0
        %1085 = vmatpush1.bf16.msra.mxu0 %v1009
        %1086 = vmatprep.subr.bf16.mxu0 0
        %1087 = vmatpush1.bf16.msra.mxu0 %v1010
        %1088 = vmatprep.subr.bf16.mxu0 0
        %1089 = vmatpush1.bf16.msra.mxu0 %v1011
        %1090 = vmatprep.subr.bf16.mxu0 0
        %1091 = vmatpush1.bf16.msra.mxu0 %v1012
        %1092 = vmatprep.subr.bf16.mxu0 0
        %1093 = vmatpush1.bf16.msra.mxu0 %v1013
        %1094 = vmatprep.mubr.bf16.mxu0 %v803
        %1095 = vmatmul.mubr.bf16.gmra.mrb[0].mxu0 %v802
        %v1096 = vpop.f32.mrb[0].mxu0
        %v1097 = vadd.f32 0.0, %v1096
        %v1098 = vpop.f32.mrb[0].mxu0
        %v1099 = vpop.f32.mrb[0].mxu0
        %v1100 = vadd.f32 0.0, %v1099
        %v1101 = vpop.f32.mrb[0].mxu0
        %1102 = vdwg.mxu0
        %1103 = vmatprep.subr.bf16.mxu0 0
        %1104 = vmatpush1.bf16.msra.mxu0 %v1014
        %1105 = vmatprep.subr.bf16.mxu0 0
        %1106 = vmatpush1.bf16.msra.mxu0 %v1015
        %1107 = vmatprep.subr.bf16.mxu0 0
        %1108 = vmatpush1.bf16.msra.mxu0 %v1016
        %1109 = vmatprep.subr.bf16.mxu0 0
        %1110 = vmatpush1.bf16.msra.mxu0 %v1017
        %1111 = vmatprep.subr.bf16.mxu0 0
        %1112 = vmatpush1.bf16.msra.mxu0 %v1018
        %1113 = vmatprep.subr.bf16.mxu0 0
        %1114 = vmatpush1.bf16.msra.mxu0 %v1019
        %1115 = vmatprep.subr.bf16.mxu0 0
        %1116 = vmatpush1.bf16.msra.mxu0 %v1020
        %1117 = vmatprep.subr.bf16.mxu0 0
        %1118 = vmatpush1.bf16.msra.mxu0 %v1021
        %1119 = vmatprep.subr.bf16.mxu0 0
        %1120 = vmatpush1.bf16.msra.mxu0 %v1022
        %1121 = vmatprep.subr.bf16.mxu0 0
        %1122 = vmatpush1.bf16.msra.mxu0 %v1023
        %1123 = vmatprep.subr.bf16.mxu0 0
        %1124 = vmatpush1.bf16.msra.mxu0 %v1024
        %1125 = vmatprep.subr.bf16.mxu0 0
        %1126 = vmatpush1.bf16.msra.mxu0 %v1025
        %1127 = vmatprep.subr.bf16.mxu0 0
        %1128 = vmatpush1.bf16.msra.mxu0 %v1026
        %1129 = vmatprep.subr.bf16.mxu0 0
        %1130 = vmatpush1.bf16.msra.mxu0 %v1027
        %1131 = vmatprep.subr.bf16.mxu0 0
        %1132 = vmatpush1.bf16.msra.mxu0 %v1028
        %1133 = vmatprep.subr.bf16.mxu0 0
        %1134 = vmatpush1.bf16.msra.mxu0 %v1029
        %1135 = vmatprep.mubr.bf16.mxu0 %v805
        %1136 = vmatmul.mubr.bf16.gmra.mrb[0].mxu0 %v804
        %v1137 = vpop.f32.mrb[0].mxu0
        %v1138 = vadd.f32 %v1097, %v1137
        %v1139 = vpop.f32.mrb[0].mxu0
        %v1140 = vpop.f32.mrb[0].mxu0
        %v1141 = vadd.f32 %v1100, %v1140
        %v1142 = vpop.f32.mrb[0].mxu0
        %1143 = vdwg.mxu0
        %v1144 = vadd.f32 %v800, %v1138
        %v1145 = vadd.f32 %v801, %v1141
        %1146 = vst [vmem:[%s5] sm:$0xff] %v1144
        %1147 = vst [vmem:[%s5 + $0x8] sm:$0xff] %v1145
        // Predicated region
        $region68: #{mnih2015_mh_forward.7} parent=58 // pred_check
          %p1148 = pneg %p149
        $region69: #{mnih2015_mh_forward.7} parent=58 // pred_check_branch
          %1150 = sbr.rel (%p1148) target = $region71
        $region70: #{mnih2015_mh_forward.7} parent=58 // pred_region
          _
        $region71: #{mnih2015_mh_forward.7} parent=58 // pred_fallthru
          _
        // Predicated region
        $region72: #{mnih2015_mh_forward.7} parent=58 // pred_check
          %p1151 = pneg %p149
        $region73: #{mnih2015_mh_forward.7} parent=58 // pred_check_branch
          %1153 = sbr.rel (%p1151) target = $region75
        $region74: #{mnih2015_mh_forward.7} parent=58 // pred_region
          _
        $region75: #{mnih2015_mh_forward.7} parent=58 // pred_fallthru
          _
      $region59: #{mnih2015_mh_forward.7} parent=5 // pred_fallthru
        _
      %p1154 = scmp.le.s32.totalorder 2, %s11
      // Predicated region
      $region76: #{mnih2015_mh_forward.7} parent=5 // pred_check
        %p1155 = pneg %p1154
      $region77: #{mnih2015_mh_forward.7} parent=5 // pred_check_branch
        %1157 = sbr.rel (%p1155) target = $region79
      $region78: #{mnih2015_mh_forward.7} parent=5 // pred_region
        %s1158 = ssub.s32 %s11, 2
      $region79: #{mnih2015_mh_forward.7} parent=5 // pred_fallthru
        _
    $region6: #{mnih2015_mh_forward.7} parent=1 // loop_footer
      %s15 = sadd.s32 1, %s11
    $region7: #{mnih2015_mh_forward.7} parent=1 // loop_footer_branch
      %10 = sbr.rel target = $region3
    $region8: #{mnih2015_mh_forward.7} parent=1 // loop_exit
      _

</llo_original>
